<compile_context>
chip_gen: v5e
topology: v5e:2x2
jax: 0.10.0
libtpu: 0.0.40
codegen_flags: <defaults>
</compile_context>

<pallas_src>
import jax
import jax.numpy as jnp
import numpy as np
from jax.experimental import pallas as pl
from jax.experimental.pallas import tpu as pltpu


# --------------------------- kernel helpers -----------------------------------
def _shifted_taps(x):
    """x: (BT, Lc, C). Returns (x[t-1], x[t+1]) with zeros at the sequence edges."""
    bt, lc, c = x.shape
    zero = jnp.zeros((bt, 1, c), x.dtype)
    x_prev = jnp.concatenate([zero, x[:, : lc - 1, :]], axis=1)   # x[t-1]
    x_next = jnp.concatenate([x[:, 1:, :], zero], axis=1)         # x[t+1]
    return x_prev, x_next


def _conv3_fused(x, w, b):
    """kernel-size-3 / padding-1 conv as ONE fused-K matmul.

    x: (BT, Lc, Cin) f32; w: (3*Cin, Cout) rows ordered [k=0; k=1; k=2] (taps
    t-1, t, t+1), possibly bf16; b: (1, Cout) f32.  Returns (BT, Lc, Cout) f32.
    """
    bt, lc, cin = x.shape
    x_prev, x_next = _shifted_taps(x)
    cat = jnp.concatenate([x_prev, x, x_next], axis=-1)           # (BT, Lc, 3*Cin)
    y = jnp.dot(cat.reshape(bt * lc, 3 * cin).astype(w.dtype), w,
                preferred_element_type=jnp.float32) + b
    return y.reshape(bt, lc, -1)


def _maxpool2(x):
    """MaxPool1d(2) over the sequence axis (reshape form; see header note)."""
    bt, lc, c = x.shape
    return jnp.max(x.reshape(bt, lc // 2, 2, c), axis=2)          # (BT, Lc//2, C)


# ------------------------------- kernel ---------------------------------------
def cnn1d_kernel(x_ref, w1_ref, b1_ref, w2_ref, b2_ref, w3_ref, b3_ref,
                 fw1_ref, fb1_ref, fw2_ref, fb2_ref, out_ref):
    x = x_ref[...]                                   # (BT, L, 1) channels-last, f32
    bt, L, _ = x.shape

    # ---- conv1 (1 -> 32) + ReLU: degenerate contraction, VPU broadcasts ----
    x_prev, x_next = _shifted_taps(x)
    y1 = (x_prev * w1_ref[0]                          # x[t-1] * W[k=0]
          + x * w1_ref[1]                             # x[t]   * W[k=1]
          + x_next * w1_ref[2]                        # x[t+1] * W[k=2]
          + b1_ref[...])                              # (BT, L, 32)
    p1 = _maxpool2(jnp.maximum(y1, 0.0))              # (BT, L/2, 32)

    # ---- conv2 (32 -> 64) + ReLU: single K=96 matmul ----
    y2 = jnp.maximum(_conv3_fused(p1, w2_ref[...], b2_ref[...]), 0.0)
    p2 = _maxpool2(y2)                                # (BT, L/4, 64)

    # ---- conv3 (64 -> 64) + ReLU: single K=192 matmul ----
    y3 = jnp.maximum(_conv3_fused(p2, w3_ref[...], b3_ref[...]), 0.0)  # (BT, L/4, 64)

    # ---- fc1 + ReLU WITHOUT flattening (no sublane->lane relayout):
    #      out = sum_l  y3[:, l, :] @ fw1[l]   with fw1 shipped as (L3, 64, 64).
    l3 = y3.shape[1]
    acc = None
    for l in range(l3):                               # L3 static & small -> unrolled
        w_l = fw1_ref[l]                              # (64, 64)
        term = jnp.dot(y3[:, l, :].astype(w_l.dtype), w_l,
                       preferred_element_type=jnp.float32)
        acc = term if acc is None else acc + term
    h = jnp.maximum(acc + fb1_ref[...], 0.0)          # (BT, 64)

    # dropout(p=0.5): identity in eval / inference mode.
    # TODO(synk): training-mode dropout (PRNG mask) not implemented.

    # ---- fc2: lane-dense output (n_classes padded to 128 cols) ----
    fw2 = fw2_ref[...]
    out_ref[...] = jnp.dot(h.astype(fw2.dtype), fw2,
                           preferred_element_type=jnp.float32) + fb2_ref[...]


# ------------------------------- wrapper --------------------------------------
def cnn1d_forward(x_ncl, params, *, block_b=None, use_bf16=False):
    """x_ncl: (B, 1, L) float32, PyTorch NCL layout. Returns (B, n_classes) f32."""
    B, _, L = x_ncl.shape
    assert L % 4 == 0, "L must be divisible by 4 (two MaxPool1d(2) stages)"
    L3 = L // 4
    c1 = params["conv1_w"].shape[0]          # 32
    c2 = params["conv2_w"].shape[0]          # 64
    c3 = params["conv3_w"].shape[0]          # 64
    n_hidden = params["fc1_w"].shape[0]      # 64
    n_classes = params["fc2_w"].shape[0]
    ncp = max(128, ((n_classes + 127) // 128) * 128)   # lane-dense output width

    # ---- TPU-generation-aware batch tiling ----
    kind = ""
    try:
        kind = jax.devices()[0].device_kind.lower()
    except Exception:
        pass
    num_tc = 2 if ("v7" in kind or "7x" in kind) else 1    # v7x: 2 TensorCores/chip

    # Rough per-row live-set estimate (f32 bytes): conv1 taps/out, conv2 cat/out,
    # conv3 cat/out, fc intermediates. Used only to cap block_b under VMEM budget.
    vmem_per_row = 4 * (L * 70 + (L // 2) * 200 + (L // 4) * 340 + 2 * ncp)
    vmem_budget = 24 << 20                                  # below the 32 MiB scoped limit

    if block_b is None:
        # One block per TensorCore when possible (single grid step on v5e/v6e),
        # >= 8 sublane rows, <= 128, and within the VMEM budget.
        block_b = min(128, max(8, pl.next_power_of_2(pl.cdiv(B, num_tc))))
        while block_b > 8 and block_b * vmem_per_row > vmem_budget:
            block_b //= 2

    grid_b = pl.cdiv(B, block_b)
    if num_tc > 1:                                          # even grid for the 2 v7x cores
        grid_b = pl.cdiv(grid_b, num_tc) * num_tc
    b_pad = grid_b * block_b

    mxu_dtype = jnp.bfloat16 if use_bf16 else jnp.float32

    # ---- re-layout inputs / weights (glue, done once outside the kernel) ----
    x = jnp.transpose(x_ncl, (0, 2, 1)).astype(jnp.float32)          # (B, L, 1)
    if b_pad != B:
        x = jnp.pad(x, ((0, b_pad - B), (0, 0), (0, 0)))

    w1 = jnp.transpose(params["conv1_w"], (2, 1, 0))                 # (3, 1, 32) -- VPU, f32
    b1 = params["conv1_b"].reshape(1, c1)
    # fuse the 3 taps into the contraction: (Cout,Cin,3) -> (3,Cin,Cout) -> (3*Cin,Cout)
    w2 = jnp.transpose(params["conv2_w"], (2, 1, 0)).reshape(3 * c1, c2).astype(mxu_dtype)
    b2 = params["conv2_b"].reshape(1, c2)
    w3 = jnp.transpose(params["conv3_w"], (2, 1, 0)).reshape(3 * c2, c3).astype(mxu_dtype)
    b3 = params["conv3_b"].reshape(1, c3)
    # torch Flatten is channel-major (idx = c*L3 + l); ship fc1 as (L3, C3, hidden)
    # so the kernel contracts (l, c) as L3 small matmuls without flattening.
    fw1 = jnp.transpose(params["fc1_w"].reshape(n_hidden, c3, L3), (2, 1, 0)).astype(mxu_dtype)
    fb1 = params["fc1_b"].reshape(1, n_hidden)
    # pad fc2 to a lane-dense 128-wide output (zero columns sliced off afterwards)
    fw2 = jnp.pad(params["fc2_w"].T, ((0, 0), (0, ncp - n_classes))).astype(mxu_dtype)
    fb2 = jnp.pad(params["fc2_b"].reshape(1, n_classes), ((0, 0), (0, ncp - n_classes)))

    out = pl.pallas_call(
        cnn1d_kernel,
        out_shape=jax.ShapeDtypeStruct((b_pad, ncp), jnp.float32),
        grid_spec=pltpu.PrefetchScalarGridSpec(
            num_scalar_prefetch=0,
            grid=(grid_b,),
            in_specs=[
                pl.BlockSpec((block_b, L, 1), lambda b: (b, 0, 0)),      # x
                pl.BlockSpec((3, 1, c1), lambda b: (0, 0, 0)),           # conv1 w
                pl.BlockSpec((1, c1), lambda b: (0, 0)),                 # conv1 b
                pl.BlockSpec((3 * c1, c2), lambda b: (0, 0)),            # conv2 w (fused K)
                pl.BlockSpec((1, c2), lambda b: (0, 0)),                 # conv2 b
                pl.BlockSpec((3 * c2, c3), lambda b: (0, 0)),            # conv3 w (fused K)
                pl.BlockSpec((1, c3), lambda b: (0, 0)),                 # conv3 b
                pl.BlockSpec((L3, c3, n_hidden), lambda b: (0, 0, 0)),   # fc1 w (L3,64,64)
                pl.BlockSpec((1, n_hidden), lambda b: (0, 0)),           # fc1 b
                pl.BlockSpec((n_hidden, ncp), lambda b: (0, 0)),         # fc2 w (padded)
                pl.BlockSpec((1, ncp), lambda b: (0, 0)),                # fc2 b (padded)
            ],
            out_specs=pl.BlockSpec((block_b, ncp), lambda b: (b, 0)),
        ),
        compiler_params=pltpu.CompilerParams(
            dimension_semantics=("parallel",),
            vmem_limit_bytes=32 << 20),
    )(x, w1, b1, w2, b2, w3, b3, fw1, fb1, fw2, fb2)
    return out[:B, :n_classes]


# ---------------- pure-JAX reference (mirrors the PyTorch forward) -------------
def torch_ref_forward(x_ncl, p):
    def conv1d(x, w, b):     # x (B,Cin,L), w (Cout,Cin,3), b (Cout,)
        L = x.shape[-1]
        xp = jnp.pad(x, ((0, 0), (0, 0), (1, 1)))
        y = sum(jnp.einsum("bcl,oc->bol", xp[:, :, k:k + L], w[:, :, k])
                for k in range(3))
        return y + b[None, :, None]

    def pool(x):             # MaxPool1d(2)
        B, C, L = x.shape
        return x.reshape(B, C, L // 2, 2).max(axis=-1)

    h = jnp.maximum(conv1d(x_ncl, p["conv1_w"], p["conv1_b"]), 0.0)
    h = pool(h)
    h = jnp.maximum(conv1d(h, p["conv2_w"], p["conv2_b"]), 0.0)
    h = pool(h)
    h = jnp.maximum(conv1d(h, p["conv3_w"], p["conv3_b"]), 0.0)
    h = h.reshape(h.shape[0], -1)                           # torch Flatten (C-major)
    h = jnp.maximum(h @ p["fc1_w"].T + p["fc1_b"], 0.0)
    # dropout == identity in eval
    return h @ p["fc2_w"].T + p["fc2_b"]


def make_params(key, L, n_classes):
    L3 = L // 4
    ks = jax.random.split(key, 10)

    def init(k, shape, scale):
        return (scale * jax.random.normal(k, shape)).astype(jnp.float32)

    return {
        "conv1_w": init(ks[0], (32, 1, 3), 0.3),
        "conv1_b": init(ks[1], (32,), 0.1),
        "conv2_w": init(ks[2], (64, 32, 3), 0.1),
        "conv2_b": init(ks[3], (64,), 0.1),
        "conv3_w": init(ks[4], (64, 64, 3), 0.1),
        "conv3_b": init(ks[5], (64,), 0.1),
        "fc1_w": init(ks[6], (64, 64 * L3), 0.05),
        "fc1_b": init(ks[7], (64,), 0.1),
        "fc2_w": init(ks[8], (n_classes, 64), 0.1),
        "fc2_b": init(ks[9], (n_classes,), 0.1),
    }


if __name__ == "__main__":
    B, L, n_classes = 16, 16, 6          # CNN1D(input_shape=(16,), n_classes=6)
    key = jax.random.PRNGKey(0)
    kx, kp = jax.random.split(key)

    x = jax.random.normal(kx, (B, 1, L), dtype=jnp.float32)   # PyTorch NCL input
    params = make_params(kp, L, n_classes)

    ref = jax.block_until_ready(torch_ref_forward(x, params))

    # f32 path: exact parity with the reference.
    out = jax.block_until_ready(cnn1d_forward(x, params))
    assert out.shape == (B, n_classes), out.shape
    np.testing.assert_allclose(np.asarray(out), np.asarray(ref), rtol=1e-3, atol=1e-3)

    # bf16-MXU-operand path (f32 accumulation / f32 VPU math): sanity bound only.
    out_bf16 = jax.block_until_ready(cnn1d_forward(x, params, use_bf16=True))
    assert out_bf16.shape == (B, n_classes)
    assert float(jnp.max(jnp.abs(out_bf16 - ref))) < 0.1

    print("KERNEL_OK")
</pallas_src>

<mosaic_0001>
module attributes {stable_mosaic.version = 11 : i64} {
  func.func @cnn1d_kernel(%arg0: i32, %arg1: memref<16x16x1xf32, #tpu.memory_space<vmem>>, %arg2: memref<3x1x32xf32, #tpu.memory_space<vmem>>, %arg3: memref<1x32xf32, #tpu.memory_space<vmem>>, %arg4: memref<96x64xf32, #tpu.memory_space<vmem>>, %arg5: memref<1x64xf32, #tpu.memory_space<vmem>>, %arg6: memref<192x64xf32, #tpu.memory_space<vmem>>, %arg7: memref<1x64xf32, #tpu.memory_space<vmem>>, %arg8: memref<4x64x64xf32, #tpu.memory_space<vmem>>, %arg9: memref<1x64xf32, #tpu.memory_space<vmem>>, %arg10: memref<64x128xf32, #tpu.memory_space<vmem>>, %arg11: memref<1x128xf32, #tpu.memory_space<vmem>>, %arg12: memref<16x128xf32, #tpu.memory_space<vmem>>) attributes {dimension_semantics = [#tpu.dimension_semantics<parallel>], iteration_bounds = array<i64: 1>, scalar_prefetch = 0 : i64, scratch_operands = 0 : i64, tpu.core_type = #tpu.core_type<tc>, window_params = [{transform_indices = @transform_0, window_bounds = array<i64: 16, 16, 1>}, {pipeline_mode = #tpu.pipeline_mode<synchronous>, transform_indices = @transform_1, window_bounds = array<i64: 3, 1, 32>}, {pipeline_mode = #tpu.pipeline_mode<synchronous>, transform_indices = @transform_2, window_bounds = array<i64: 1, 32>}, {pipeline_mode = #tpu.pipeline_mode<synchronous>, transform_indices = @transform_3, window_bounds = array<i64: 96, 64>}, {pipeline_mode = #tpu.pipeline_mode<synchronous>, transform_indices = @transform_4, window_bounds = array<i64: 1, 64>}, {pipeline_mode = #tpu.pipeline_mode<synchronous>, transform_indices = @transform_5, window_bounds = array<i64: 192, 64>}, {pipeline_mode = #tpu.pipeline_mode<synchronous>, transform_indices = @transform_6, window_bounds = array<i64: 1, 64>}, {pipeline_mode = #tpu.pipeline_mode<synchronous>, transform_indices = @transform_7, window_bounds = array<i64: 4, 64, 64>}, {pipeline_mode = #tpu.pipeline_mode<synchronous>, transform_indices = @transform_8, window_bounds = array<i64: 1, 64>}, {pipeline_mode = #tpu.pipeline_mode<synchronous>, transform_indices = @transform_9, window_bounds = array<i64: 64, 128>}, {pipeline_mode = #tpu.pipeline_mode<synchronous>, transform_indices = @transform_10, window_bounds = array<i64: 1, 128>}, {transform_indices = @transform_11, window_bounds = array<i64: 16, 128>}]} {
    %c0 = arith.constant 0 : index
    %c0_0 = arith.constant 0 : index
    %c0_1 = arith.constant 0 : index
    %0 = vector.load %arg1[%c0, %c0_0, %c0_1] : memref<16x16x1xf32, #tpu.memory_space<vmem>>, vector<16x16x1xf32>
    %cst = arith.constant 0.000000e+00 : f32
    %1 = vector.broadcast %cst : f32 to vector<16x1x1xf32>
    %2 = vector.extract_strided_slice %0 {offsets = [0, 0, 0], sizes = [16, 15, 1], strides = [1, 1, 1]} : vector<16x16x1xf32> to vector<16x15x1xf32>
    %3 = tpu.concatenate %1, %2 in 1 : vector<16x1x1xf32>, vector<16x15x1xf32> -> vector<16x16x1xf32>
    %4 = vector.extract_strided_slice %0 {offsets = [0, 1, 0], sizes = [16, 15, 1], strides = [1, 1, 1]} : vector<16x16x1xf32> to vector<16x15x1xf32>
    %5 = tpu.concatenate %4, %1 in 1 : vector<16x15x1xf32>, vector<16x1x1xf32> -> vector<16x16x1xf32>
    %c0_2 = arith.constant 0 : index
    %c0_3 = arith.constant 0 : index
    %c0_4 = arith.constant 0 : index
    %6 = vector.load %arg2[%c0_2, %c0_3, %c0_4] : memref<3x1x32xf32, #tpu.memory_space<vmem>>, vector<1x1x32xf32>
    %7 = vector.shape_cast %6 : vector<1x1x32xf32> to vector<1x32xf32>
    %8 = vector.shape_cast %7 : vector<1x32xf32> to vector<1x1x32xf32>
    %9 = vector.broadcast %3 : vector<16x16x1xf32> to vector<16x16x32xf32>
    %10 = vector.broadcast %8 : vector<1x1x32xf32> to vector<16x16x32xf32>
    %11 = arith.mulf %9, %10 : vector<16x16x32xf32>
    %c1 = arith.constant 1 : index
    %c0_5 = arith.constant 0 : index
    %c0_6 = arith.constant 0 : index
    %12 = vector.load %arg2[%c1, %c0_5, %c0_6] : memref<3x1x32xf32, #tpu.memory_space<vmem>>, vector<1x1x32xf32>
    %13 = vector.shape_cast %12 : vector<1x1x32xf32> to vector<1x32xf32>
    %14 = vector.shape_cast %13 : vector<1x32xf32> to vector<1x1x32xf32>
    %15 = vector.broadcast %0 : vector<16x16x1xf32> to vector<16x16x32xf32>
    %16 = vector.broadcast %14 : vector<1x1x32xf32> to vector<16x16x32xf32>
    %17 = arith.mulf %15, %16 : vector<16x16x32xf32>
    %18 = arith.addf %11, %17 : vector<16x16x32xf32>
    %c2 = arith.constant 2 : index
    %c0_7 = arith.constant 0 : index
    %c0_8 = arith.constant 0 : index
    %19 = vector.load %arg2[%c2, %c0_7, %c0_8] : memref<3x1x32xf32, #tpu.memory_space<vmem>>, vector<1x1x32xf32>
    %20 = vector.shape_cast %19 : vector<1x1x32xf32> to vector<1x32xf32>
    %21 = vector.shape_cast %20 : vector<1x32xf32> to vector<1x1x32xf32>
    %22 = vector.broadcast %5 : vector<16x16x1xf32> to vector<16x16x32xf32>
    %23 = vector.broadcast %21 : vector<1x1x32xf32> to vector<16x16x32xf32>
    %24 = arith.mulf %22, %23 : vector<16x16x32xf32>
    %25 = arith.addf %18, %24 : vector<16x16x32xf32>
    %c0_9 = arith.constant 0 : index
    %c0_10 = arith.constant 0 : index
    %26 = vector.load %arg3[%c0_9, %c0_10] : memref<1x32xf32, #tpu.memory_space<vmem>>, vector<1x32xf32>
    %27 = vector.shape_cast %26 : vector<1x32xf32> to vector<1x1x32xf32>
    %28 = vector.broadcast %27 : vector<1x1x32xf32> to vector<16x16x32xf32>
    %29 = arith.addf %25, %28 : vector<16x16x32xf32>
    %cst_11 = arith.constant 0.000000e+00 : f32
    %30 = vector.broadcast %cst_11 : f32 to vector<16x16x32xf32>
    %31 = arith.maximumf %29, %30 : vector<16x16x32xf32>
    %32 = vector.shape_cast %31 : vector<16x16x32xf32> to vector<16x8x2x32xf32>
    %cst_12 = arith.constant dense<0xFF800000> : vector<16x8x32xf32>
    %33 = vector.multi_reduction <maximumf>, %32, %cst_12 [2] : vector<16x8x2x32xf32> to vector<16x8x32xf32>
    %c0_13 = arith.constant 0 : index
    %c0_14 = arith.constant 0 : index
    %34 = vector.load %arg4[%c0_13, %c0_14] : memref<96x64xf32, #tpu.memory_space<vmem>>, vector<96x64xf32>
    %c0_15 = arith.constant 0 : index
    %c0_16 = arith.constant 0 : index
    %35 = vector.load %arg5[%c0_15, %c0_16] : memref<1x64xf32, #tpu.memory_space<vmem>>, vector<1x64xf32>
    %cst_17 = arith.constant 0.000000e+00 : f32
    %36 = vector.broadcast %cst_17 : f32 to vector<16x1x32xf32>
    %37 = vector.extract_strided_slice %33 {offsets = [0, 0, 0], sizes = [16, 7, 32], strides = [1, 1, 1]} : vector<16x8x32xf32> to vector<16x7x32xf32>
    %38 = tpu.concatenate %36, %37 in 1 : vector<16x1x32xf32>, vector<16x7x32xf32> -> vector<16x8x32xf32>
    %39 = vector.extract_strided_slice %33 {offsets = [0, 1, 0], sizes = [16, 7, 32], strides = [1, 1, 1]} : vector<16x8x32xf32> to vector<16x7x32xf32>
    %40 = tpu.concatenate %39, %36 in 1 : vector<16x7x32xf32>, vector<16x1x32xf32> -> vector<16x8x32xf32>
    %41 = tpu.concatenate %38, %33, %40 in 2 : vector<16x8x32xf32>, vector<16x8x32xf32>, vector<16x8x32xf32> -> vector<16x8x96xf32>
    %42 = vector.shape_cast %41 : vector<16x8x96xf32> to vector<128x96xf32>
    %cst_18 = arith.constant dense<0.000000e+00> : vector<128x64xf32>
    %43 = tpu.matmul %42, %34, %cst_18 {dimension_numbers = #tpu.dot_dimension_numbers<[1], [0], [0], [1], [0, 0, 1, 1], [], []>} : vector<128x96xf32>, vector<96x64xf32>, vector<128x64xf32> -> vector<128x64xf32>
    %44 = vector.broadcast %35 : vector<1x64xf32> to vector<128x64xf32>
    %45 = arith.addf %43, %44 : vector<128x64xf32>
    %46 = vector.shape_cast %45 : vector<128x64xf32> to vector<16x8x64xf32>
    %cst_19 = arith.constant 0.000000e+00 : f32
    %47 = vector.broadcast %cst_19 : f32 to vector<16x8x64xf32>
    %48 = arith.maximumf %46, %47 : vector<16x8x64xf32>
    %49 = vector.shape_cast %48 : vector<16x8x64xf32> to vector<16x4x2x64xf32>
    %cst_20 = arith.constant dense<0xFF800000> : vector<16x4x64xf32>
    %50 = vector.multi_reduction <maximumf>, %49, %cst_20 [2] : vector<16x4x2x64xf32> to vector<16x4x64xf32>
    %c0_21 = arith.constant 0 : index
    %c0_22 = arith.constant 0 : index
    %51 = vector.load %arg6[%c0_21, %c0_22] : memref<192x64xf32, #tpu.memory_space<vmem>>, vector<192x64xf32>
    %c0_23 = arith.constant 0 : index
    %c0_24 = arith.constant 0 : index
    %52 = vector.load %arg7[%c0_23, %c0_24] : memref<1x64xf32, #tpu.memory_space<vmem>>, vector<1x64xf32>
    %cst_25 = arith.constant 0.000000e+00 : f32
    %53 = vector.broadcast %cst_25 : f32 to vector<16x1x64xf32>
    %54 = vector.extract_strided_slice %50 {offsets = [0, 0, 0], sizes = [16, 3, 64], strides = [1, 1, 1]} : vector<16x4x64xf32> to vector<16x3x64xf32>
    %55 = tpu.concatenate %53, %54 in 1 : vector<16x1x64xf32>, vector<16x3x64xf32> -> vector<16x4x64xf32>
    %56 = vector.extract_strided_slice %50 {offsets = [0, 1, 0], sizes = [16, 3, 64], strides = [1, 1, 1]} : vector<16x4x64xf32> to vector<16x3x64xf32>
    %57 = tpu.concatenate %56, %53 in 1 : vector<16x3x64xf32>, vector<16x1x64xf32> -> vector<16x4x64xf32>
    %58 = tpu.concatenate %55, %50, %57 in 2 : vector<16x4x64xf32>, vector<16x4x64xf32>, vector<16x4x64xf32> -> vector<16x4x192xf32>
    %59 = vector.shape_cast %58 : vector<16x4x192xf32> to vector<64x192xf32>
    %cst_26 = arith.constant dense<0.000000e+00> : vector<64x64xf32>
    %60 = tpu.matmul %59, %51, %cst_26 {dimension_numbers = #tpu.dot_dimension_numbers<[1], [0], [0], [1], [0, 0, 1, 1], [], []>} : vector<64x192xf32>, vector<192x64xf32>, vector<64x64xf32> -> vector<64x64xf32>
    %61 = vector.broadcast %52 : vector<1x64xf32> to vector<64x64xf32>
    %62 = arith.addf %60, %61 : vector<64x64xf32>
    %63 = vector.shape_cast %62 : vector<64x64xf32> to vector<16x4x64xf32>
    %cst_27 = arith.constant 0.000000e+00 : f32
    %64 = vector.broadcast %cst_27 : f32 to vector<16x4x64xf32>
    %65 = arith.maximumf %63, %64 : vector<16x4x64xf32>
    %c0_28 = arith.constant 0 : index
    %c0_29 = arith.constant 0 : index
    %c0_30 = arith.constant 0 : index
    %66 = vector.load %arg8[%c0_28, %c0_29, %c0_30] : memref<4x64x64xf32, #tpu.memory_space<vmem>>, vector<1x64x64xf32>
    %67 = vector.shape_cast %66 : vector<1x64x64xf32> to vector<64x64xf32>
    %68 = vector.extract_strided_slice %65 {offsets = [0, 0, 0], sizes = [16, 1, 64], strides = [1, 1, 1]} : vector<16x4x64xf32> to vector<16x1x64xf32>
    %69 = vector.shape_cast %68 : vector<16x1x64xf32> to vector<16x64xf32>
    %cst_31 = arith.constant dense<0.000000e+00> : vector<16x64xf32>
    %70 = tpu.matmul %69, %67, %cst_31 {dimension_numbers = #tpu.dot_dimension_numbers<[1], [0], [0], [1], [0, 0, 1, 1], [], []>} : vector<16x64xf32>, vector<64x64xf32>, vector<16x64xf32> -> vector<16x64xf32>
    %c1_32 = arith.constant 1 : index
    %c0_33 = arith.constant 0 : index
    %c0_34 = arith.constant 0 : index
    %71 = vector.load %arg8[%c1_32, %c0_33, %c0_34] : memref<4x64x64xf32, #tpu.memory_space<vmem>>, vector<1x64x64xf32>
    %72 = vector.shape_cast %71 : vector<1x64x64xf32> to vector<64x64xf32>
    %73 = vector.extract_strided_slice %65 {offsets = [0, 1, 0], sizes = [16, 1, 64], strides = [1, 1, 1]} : vector<16x4x64xf32> to vector<16x1x64xf32>
    %74 = vector.shape_cast %73 : vector<16x1x64xf32> to vector<16x64xf32>
    %cst_35 = arith.constant dense<0.000000e+00> : vector<16x64xf32>
    %75 = tpu.matmul %74, %72, %cst_35 {dimension_numbers = #tpu.dot_dimension_numbers<[1], [0], [0], [1], [0, 0, 1, 1], [], []>} : vector<16x64xf32>, vector<64x64xf32>, vector<16x64xf32> -> vector<16x64xf32>
    %76 = arith.addf %70, %75 : vector<16x64xf32>
    %c2_36 = arith.constant 2 : index
    %c0_37 = arith.constant 0 : index
    %c0_38 = arith.constant 0 : index
    %77 = vector.load %arg8[%c2_36, %c0_37, %c0_38] : memref<4x64x64xf32, #tpu.memory_space<vmem>>, vector<1x64x64xf32>
    %78 = vector.shape_cast %77 : vector<1x64x64xf32> to vector<64x64xf32>
    %79 = vector.extract_strided_slice %65 {offsets = [0, 2, 0], sizes = [16, 1, 64], strides = [1, 1, 1]} : vector<16x4x64xf32> to vector<16x1x64xf32>
    %80 = vector.shape_cast %79 : vector<16x1x64xf32> to vector<16x64xf32>
    %cst_39 = arith.constant dense<0.000000e+00> : vector<16x64xf32>
    %81 = tpu.matmul %80, %78, %cst_39 {dimension_numbers = #tpu.dot_dimension_numbers<[1], [0], [0], [1], [0, 0, 1, 1], [], []>} : vector<16x64xf32>, vector<64x64xf32>, vector<16x64xf32> -> vector<16x64xf32>
    %82 = arith.addf %76, %81 : vector<16x64xf32>
    %c3 = arith.constant 3 : index
    %c0_40 = arith.constant 0 : index
    %c0_41 = arith.constant 0 : index
    %83 = vector.load %arg8[%c3, %c0_40, %c0_41] : memref<4x64x64xf32, #tpu.memory_space<vmem>>, vector<1x64x64xf32>
    %84 = vector.shape_cast %83 : vector<1x64x64xf32> to vector<64x64xf32>
    %85 = vector.extract_strided_slice %65 {offsets = [0, 3, 0], sizes = [16, 1, 64], strides = [1, 1, 1]} : vector<16x4x64xf32> to vector<16x1x64xf32>
    %86 = vector.shape_cast %85 : vector<16x1x64xf32> to vector<16x64xf32>
    %cst_42 = arith.constant dense<0.000000e+00> : vector<16x64xf32>
    %87 = tpu.matmul %86, %84, %cst_42 {dimension_numbers = #tpu.dot_dimension_numbers<[1], [0], [0], [1], [0, 0, 1, 1], [], []>} : vector<16x64xf32>, vector<64x64xf32>, vector<16x64xf32> -> vector<16x64xf32>
    %88 = arith.addf %82, %87 : vector<16x64xf32>
    %c0_43 = arith.constant 0 : index
    %c0_44 = arith.constant 0 : index
    %89 = vector.load %arg9[%c0_43, %c0_44] : memref<1x64xf32, #tpu.memory_space<vmem>>, vector<1x64xf32>
    %90 = vector.broadcast %89 : vector<1x64xf32> to vector<16x64xf32>
    %91 = arith.addf %88, %90 : vector<16x64xf32>
    %cst_45 = arith.constant 0.000000e+00 : f32
    %92 = vector.broadcast %cst_45 : f32 to vector<16x64xf32>
    %93 = arith.maximumf %91, %92 : vector<16x64xf32>
    %c0_46 = arith.constant 0 : index
    %c0_47 = arith.constant 0 : index
    %94 = vector.load %arg10[%c0_46, %c0_47] : memref<64x128xf32, #tpu.memory_space<vmem>>, vector<64x128xf32>
    %cst_48 = arith.constant dense<0.000000e+00> : vector<16x128xf32>
    %95 = tpu.matmul %93, %94, %cst_48 {dimension_numbers = #tpu.dot_dimension_numbers<[1], [0], [0], [1], [0, 0, 1, 1], [], []>} : vector<16x64xf32>, vector<64x128xf32>, vector<16x128xf32> -> vector<16x128xf32>
    %c0_49 = arith.constant 0 : index
    %c0_50 = arith.constant 0 : index
    %96 = vector.load %arg11[%c0_49, %c0_50] : memref<1x128xf32, #tpu.memory_space<vmem>>, vector<1x128xf32>
    %97 = vector.broadcast %96 : vector<1x128xf32> to vector<16x128xf32>
    %98 = arith.addf %95, %97 : vector<16x128xf32>
    %c0_51 = arith.constant 0 : index
    %c0_52 = arith.constant 0 : index
    %99 = vector.load %arg12[%c0_51, %c0_52] : memref<16x128xf32, #tpu.memory_space<vmem>>, vector<16x128xf32>
    tpu.vector_store %arg12[%c0_51, %c0_52], %98 {strides = array<i32>} : memref<16x128xf32, #tpu.memory_space<vmem>>, vector<16x128xf32>,
    return
  }
  func.func @transform_0(%arg0: i32) -> (i32, i32, i32) {
    %c0_i32 = arith.constant 0 : i32
    %c0_i32_0 = arith.constant 0 : i32
    %c0_i32_1 = arith.constant 0 : i32
    return %arg0, %c0_i32, %c0_i32_0 : i32, i32, i32
  }
  func.func @transform_1(%arg0: i32) -> (i32, i32, i32) {
    %c0_i32 = arith.constant 0 : i32
    %c0_i32_0 = arith.constant 0 : i32
    %c0_i32_1 = arith.constant 0 : i32
    %c0_i32_2 = arith.constant 0 : i32
    return %c0_i32, %c0_i32_0, %c0_i32_1 : i32, i32, i32
  }
  func.func @transform_2(%arg0: i32) -> (i32, i32) {
    %c0_i32 = arith.constant 0 : i32
    %c0_i32_0 = arith.constant 0 : i32
    %c0_i32_1 = arith.constant 0 : i32
    return %c0_i32, %c0_i32_0 : i32, i32
  }
  func.func @transform_3(%arg0: i32) -> (i32, i32) {
    %c0_i32 = arith.constant 0 : i32
    %c0_i32_0 = arith.constant 0 : i32
    %c0_i32_1 = arith.constant 0 : i32
    return %c0_i32, %c0_i32_0 : i32, i32
  }
  func.func @transform_4(%arg0: i32) -> (i32, i32) {
    %c0_i32 = arith.constant 0 : i32
    %c0_i32_0 = arith.constant 0 : i32
    %c0_i32_1 = arith.constant 0 : i32
    return %c0_i32, %c0_i32_0 : i32, i32
  }
  func.func @transform_5(%arg0: i32) -> (i32, i32) {
    %c0_i32 = arith.constant 0 : i32
    %c0_i32_0 = arith.constant 0 : i32
    %c0_i32_1 = arith.constant 0 : i32
    return %c0_i32, %c0_i32_0 : i32, i32
  }
  func.func @transform_6(%arg0: i32) -> (i32, i32) {
    %c0_i32 = arith.constant 0 : i32
    %c0_i32_0 = arith.constant 0 : i32
    %c0_i32_1 = arith.constant 0 : i32
    return %c0_i32, %c0_i32_0 : i32, i32
  }
  func.func @transform_7(%arg0: i32) -> (i32, i32, i32) {
    %c0_i32 = arith.constant 0 : i32
    %c0_i32_0 = arith.constant 0 : i32
    %c0_i32_1 = arith.constant 0 : i32
    %c0_i32_2 = arith.constant 0 : i32
    return %c0_i32, %c0_i32_0, %c0_i32_1 : i32, i32, i32
  }
  func.func @transform_8(%arg0: i32) -> (i32, i32) {
    %c0_i32 = arith.constant 0 : i32
    %c0_i32_0 = arith.constant 0 : i32
    %c0_i32_1 = arith.constant 0 : i32
    return %c0_i32, %c0_i32_0 : i32, i32
  }
  func.func @transform_9(%arg0: i32) -> (i32, i32) {
    %c0_i32 = arith.constant 0 : i32
    %c0_i32_0 = arith.constant 0 : i32
    %c0_i32_1 = arith.constant 0 : i32
    return %c0_i32, %c0_i32_0 : i32, i32
  }
  func.func @transform_10(%arg0: i32) -> (i32, i32) {
    %c0_i32 = arith.constant 0 : i32
    %c0_i32_0 = arith.constant 0 : i32
    %c0_i32_1 = arith.constant 0 : i32
    return %c0_i32, %c0_i32_0 : i32, i32
  }
  func.func @transform_11(%arg0: i32) -> (i32, i32) {
    %c0_i32 = arith.constant 0 : i32
    %c0_i32_0 = arith.constant 0 : i32
    return %arg0, %c0_i32 : i32, i32
  }
}

</mosaic_0001>

<llo_original>
// kernel: tpu_custom_call.1
$region0: #{tpu_custom_call.1}
  #allocation0 [shape = 'u32[]', space=smem, size = 0x4, offset = 0x4, fixed_abs, tag = 'smem constant byte address 0x4 - core index']
  #allocation1 [shape = 'u32[72,128]{1,0:T(1,128)}', space=vmem, size = 0x9000, scoped, tag = 'internal scratch']
  %s0 = inlined_call_operand.vmem [shape: f32[16,16,1], index: 0, kind: input, shape index: {}]
  %s1 = inlined_call_operand.vmem [shape: f32[3,1,32], index: 1, kind: input, shape index: {}]
  %s2 = inlined_call_operand.vmem [shape: f32[1,32], index: 2, kind: input, shape index: {}]
  %s3 = inlined_call_operand.vmem [shape: f32[96,64], index: 3, kind: input, shape index: {}]
  %s4 = inlined_call_operand.vmem [shape: f32[1,64], index: 4, kind: input, shape index: {}]
  %s5 = inlined_call_operand.vmem [shape: f32[192,64], index: 5, kind: input, shape index: {}]
  %s6 = inlined_call_operand.vmem [shape: f32[1,64], index: 6, kind: input, shape index: {}]
  %s7 = inlined_call_operand.vmem [shape: f32[4,64,64], index: 7, kind: input, shape index: {}]
  %s8 = inlined_call_operand.vmem [shape: f32[1,64], index: 8, kind: input, shape index: {}]
  %s9 = inlined_call_operand.vmem [shape: f32[64,128], index: 9, kind: input, shape index: {}]
  %s10 = inlined_call_operand.vmem [shape: f32[1,128], index: 10, kind: input, shape index: {}]
  %s11 = inlined_call_operand.hbm [shape: f32[16,128], index: 11, kind: output, shape index: {}]
  %s12 = sld [smem:[#allocation0]]
  $region54: #{tpu_custom_call.1} parent=0
    _
  %s14 = ssub.s32 1, %s12
  %s15 = scalar_select 0, %s14, %s12
  $region1: #{tpu_custom_call.1} parent=0
    #allocation2 [shape = 'u8[8192]{0}', space=vmem, size = 0x2000, scoped, tag = 'output window, operand 0, single buffered']
    #allocation3 [shape = 's32[1]{0}', space=sflag, size = 0x4, scoped, tag = 'scoped memory for tpu_custom_call.1']
    %16 = vsyncpa [#allocation3], 0
    // Predicated region
    $region2: #{tpu_custom_call.1} parent=1 // pred_check
      _
    $region3: #{tpu_custom_call.1} parent=1 // pred_check_branch
      %18 = sbr.rel (0) target = $region5
    $region4: #{tpu_custom_call.1} parent=1 // pred_region
      _
    $region5: #{tpu_custom_call.1} parent=1 // pred_fallthru
      _
    // Predicated region
    $region6: #{tpu_custom_call.1} parent=1 // pred_check
      _
    $region7: #{tpu_custom_call.1} parent=1 // pred_check_branch
      %20 = sbr.rel (0) target = $region9
    $region8: #{tpu_custom_call.1} parent=1 // pred_region
      _
    $region9: #{tpu_custom_call.1} parent=1 // pred_fallthru
      _
    // Predicated region
    $region10: #{tpu_custom_call.1} parent=1 // pred_check
      _
    $region11: #{tpu_custom_call.1} parent=1 // pred_check_branch
      %22 = sbr.rel (0) target = $region13
    $region12: #{tpu_custom_call.1} parent=1 // pred_region
      _
    $region13: #{tpu_custom_call.1} parent=1 // pred_fallthru
      _
    // Predicated region
    $region14: #{tpu_custom_call.1} parent=1 // pred_check
      _
    $region15: #{tpu_custom_call.1} parent=1 // pred_check_branch
      %24 = sbr.rel (0) target = $region17
    $region16: #{tpu_custom_call.1} parent=1 // pred_region
      _
    $region17: #{tpu_custom_call.1} parent=1 // pred_fallthru
      _
    // Predicated region
    $region18: #{tpu_custom_call.1} parent=1 // pred_check
      _
    $region19: #{tpu_custom_call.1} parent=1 // pred_check_branch
      %26 = sbr.rel (0) target = $region21
    $region20: #{tpu_custom_call.1} parent=1 // pred_region
      _
    $region21: #{tpu_custom_call.1} parent=1 // pred_fallthru
      _
    // Predicated region
    $region22: #{tpu_custom_call.1} parent=1 // pred_check
      _
    $region23: #{tpu_custom_call.1} parent=1 // pred_check_branch
      %28 = sbr.rel (0) target = $region25
    $region24: #{tpu_custom_call.1} parent=1 // pred_region
      _
    $region25: #{tpu_custom_call.1} parent=1 // pred_fallthru
      _
    // Predicated region
    $region26: #{tpu_custom_call.1} parent=1 // pred_check
      _
    $region27: #{tpu_custom_call.1} parent=1 // pred_check_branch
      %30 = sbr.rel (0) target = $region29
    $region28: #{tpu_custom_call.1} parent=1 // pred_region
      _
    $region29: #{tpu_custom_call.1} parent=1 // pred_fallthru
      _
    // Predicated region
    $region30: #{tpu_custom_call.1} parent=1 // pred_check
      _
    $region31: #{tpu_custom_call.1} parent=1 // pred_check_branch
      %32 = sbr.rel (0) target = $region33
    $region32: #{tpu_custom_call.1} parent=1 // pred_region
      _
    $region33: #{tpu_custom_call.1} parent=1 // pred_fallthru
      _
    // Predicated region
    $region34: #{tpu_custom_call.1} parent=1 // pred_check
      _
    $region35: #{tpu_custom_call.1} parent=1 // pred_check_branch
      %34 = sbr.rel (0) target = $region37
    $region36: #{tpu_custom_call.1} parent=1 // pred_region
      _
    $region37: #{tpu_custom_call.1} parent=1 // pred_fallthru
      _
    // Predicated region
    $region38: #{tpu_custom_call.1} parent=1 // pred_check
      _
    $region39: #{tpu_custom_call.1} parent=1 // pred_check_branch
      %36 = sbr.rel (0) target = $region41
    $region40: #{tpu_custom_call.1} parent=1 // pred_region
      _
    $region41: #{tpu_custom_call.1} parent=1 // pred_fallthru
      _
    // Predicated region
    $region42: #{tpu_custom_call.1} parent=1 // pred_check
      _
    $region43: #{tpu_custom_call.1} parent=1 // pred_check_branch
      %38 = sbr.rel (0) target = $region45
    $region44: #{tpu_custom_call.1} parent=1 // pred_region
      _
    $region45: #{tpu_custom_call.1} parent=1 // pred_fallthru
      _
    %v39 = vld [vmem:[%s0] sm:$0xff]
    %v40 = vld [vmem:[%s0 + $0x8] sm:$0xff]
    %v41 = vld [vmem:[%s0 + $0x10] sm:$0xff]
    %v42 = vld [vmem:[%s0 + $0x18] sm:$0xff]
    %v43 = vld [vmem:[%s0 + $0x20] sm:$0xff]
    %v44 = vld [vmem:[%s0 + $0x28] sm:$0xff]
    %v45 = vld [vmem:[%s0 + $0x30] sm:$0xff]
    %v46 = vld [vmem:[%s0 + $0x38] sm:$0xff]
    %v47 = vld [vmem:[%s0 + $0x40] sm:$0xff]
    %v48 = vld [vmem:[%s0 + $0x48] sm:$0xff]
    %v49 = vld [vmem:[%s0 + $0x50] sm:$0xff]
    %v50 = vld [vmem:[%s0 + $0x58] sm:$0xff]
    %v51 = vld [vmem:[%s0 + $0x60] sm:$0xff]
    %v52 = vld [vmem:[%s0 + $0x68] sm:$0xff]
    %v53 = vld [vmem:[%s0 + $0x70] sm:$0xff]
    %v54 = vld [vmem:[%s0 + $0x78] sm:$0xff]
    %v55 = vld [vmem:[%s0 + $0x80] sm:$0xff]
    %v56 = vld [vmem:[%s0 + $0x88] sm:$0xff]
    %v57 = vld [vmem:[%s0 + $0x90] sm:$0xff]
    %v58 = vld [vmem:[%s0 + $0x98] sm:$0xff]
    %v59 = vld [vmem:[%s0 + $0xa0] sm:$0xff]
    %v60 = vld [vmem:[%s0 + $0xa8] sm:$0xff]
    %v61 = vld [vmem:[%s0 + $0xb0] sm:$0xff]
    %v62 = vld [vmem:[%s0 + $0xb8] sm:$0xff]
    %v63 = vld [vmem:[%s0 + $0xc0] sm:$0xff]
    %v64 = vld [vmem:[%s0 + $0xc8] sm:$0xff]
    %v65 = vld [vmem:[%s0 + $0xd0] sm:$0xff]
    %v66 = vld [vmem:[%s0 + $0xd8] sm:$0xff]
    %v67 = vld [vmem:[%s0 + $0xe0] sm:$0xff]
    %v68 = vld [vmem:[%s0 + $0xe8] sm:$0xff]
    %v69 = vld [vmem:[%s0 + $0xf0] sm:$0xff]
    %v70 = vld [vmem:[%s0 + $0xf8] sm:$0xff]
    %vm103 = vcmask 1040384
    %v104 = vrot.slane %v39, 7
    %v105 = vrot.slane %v40, 7
    %v106 = vsel %vm103, %v104, %v105
    %v107 = vrot.slane %v41, 7
    %v108 = vrot.slane %v42, 7
    %v109 = vsel %vm103, %v107, %v108
    %v110 = vrot.slane %v43, 7
    %v111 = vrot.slane %v44, 7
    %v112 = vsel %vm103, %v110, %v111
    %v113 = vrot.slane %v45, 7
    %v114 = vrot.slane %v46, 7
    %v115 = vsel %vm103, %v113, %v114
    %v116 = vrot.slane %v47, 7
    %v117 = vrot.slane %v48, 7
    %v118 = vsel %vm103, %v116, %v117
    %v119 = vrot.slane %v49, 7
    %v120 = vrot.slane %v50, 7
    %v121 = vsel %vm103, %v119, %v120
    %v122 = vrot.slane %v51, 7
    %v123 = vrot.slane %v52, 7
    %v124 = vsel %vm103, %v122, %v123
    %v125 = vrot.slane %v53, 7
    %v126 = vrot.slane %v54, 7
    %v127 = vsel %vm103, %v125, %v126
    %v128 = vrot.slane %v55, 7
    %v129 = vrot.slane %v56, 7
    %v130 = vsel %vm103, %v128, %v129
    %v131 = vrot.slane %v57, 7
    %v132 = vrot.slane %v58, 7
    %v133 = vsel %vm103, %v131, %v132
    %v134 = vrot.slane %v59, 7
    %v135 = vrot.slane %v60, 7
    %v136 = vsel %vm103, %v134, %v135
    %v137 = vrot.slane %v61, 7
    %v138 = vrot.slane %v62, 7
    %v139 = vsel %vm103, %v137, %v138
    %v140 = vrot.slane %v63, 7
    %v141 = vrot.slane %v64, 7
    %v142 = vsel %vm103, %v140, %v141
    %v143 = vrot.slane %v65, 7
    %v144 = vrot.slane %v66, 7
    %v145 = vsel %vm103, %v143, %v144
    %v146 = vrot.slane %v67, 7
    %v147 = vrot.slane %v68, 7
    %v148 = vsel %vm103, %v146, %v147
    %v149 = vrot.slane %v69, 7
    %v150 = vrot.slane %v70, 7
    %v151 = vsel %vm103, %v149, %v150
    %v168 = vsel %vm103, 0.0, %v104
    %v169 = vsel %vm103, 0.0, %v107
    %v170 = vsel %vm103, 0.0, %v110
    %v171 = vsel %vm103, 0.0, %v113
    %v172 = vsel %vm103, 0.0, %v116
    %v173 = vsel %vm103, 0.0, %v119
    %v174 = vsel %vm103, 0.0, %v122
    %v175 = vsel %vm103, 0.0, %v125
    %v176 = vsel %vm103, 0.0, %v128
    %v177 = vsel %vm103, 0.0, %v131
    %v178 = vsel %vm103, 0.0, %v134
    %v179 = vsel %vm103, 0.0, %v137
    %v180 = vsel %vm103, 0.0, %v140
    %v181 = vsel %vm103, 0.0, %v143
    %v182 = vsel %vm103, 0.0, %v146
    %v183 = vsel %vm103, 0.0, %v149
    %vm184 = vcmask 1046528
    %v185 = vrot.slane %v39, 1
    %v186 = vrot.slane %v40, 1
    %v187 = vsel %vm184, %v185, %v186
    %v188 = vrot.slane %v41, 1
    %v189 = vrot.slane %v42, 1
    %v190 = vsel %vm184, %v188, %v189
    %v191 = vrot.slane %v43, 1
    %v192 = vrot.slane %v44, 1
    %v193 = vsel %vm184, %v191, %v192
    %v194 = vrot.slane %v45, 1
    %v195 = vrot.slane %v46, 1
    %v196 = vsel %vm184, %v194, %v195
    %v197 = vrot.slane %v47, 1
    %v198 = vrot.slane %v48, 1
    %v199 = vsel %vm184, %v197, %v198
    %v200 = vrot.slane %v49, 1
    %v201 = vrot.slane %v50, 1
    %v202 = vsel %vm184, %v200, %v201
    %v203 = vrot.slane %v51, 1
    %v204 = vrot.slane %v52, 1
    %v205 = vsel %vm184, %v203, %v204
    %v206 = vrot.slane %v53, 1
    %v207 = vrot.slane %v54, 1
    %v208 = vsel %vm184, %v206, %v207
    %v209 = vrot.slane %v55, 1
    %v210 = vrot.slane %v56, 1
    %v211 = vsel %vm184, %v209, %v210
    %v212 = vrot.slane %v57, 1
    %v213 = vrot.slane %v58, 1
    %v214 = vsel %vm184, %v212, %v213
    %v215 = vrot.slane %v59, 1
    %v216 = vrot.slane %v60, 1
    %v217 = vsel %vm184, %v215, %v216
    %v218 = vrot.slane %v61, 1
    %v219 = vrot.slane %v62, 1
    %v220 = vsel %vm184, %v218, %v219
    %v221 = vrot.slane %v63, 1
    %v222 = vrot.slane %v64, 1
    %v223 = vsel %vm184, %v221, %v222
    %v224 = vrot.slane %v65, 1
    %v225 = vrot.slane %v66, 1
    %v226 = vsel %vm184, %v224, %v225
    %v227 = vrot.slane %v67, 1
    %v228 = vrot.slane %v68, 1
    %v229 = vsel %vm184, %v227, %v228
    %v230 = vrot.slane %v69, 1
    %v231 = vrot.slane %v70, 1
    %v232 = vsel %vm184, %v230, %v231
    %v249 = vsel %vm184, %v186, 0.0
    %v250 = vsel %vm184, %v189, 0.0
    %v251 = vsel %vm184, %v192, 0.0
    %v252 = vsel %vm184, %v195, 0.0
    %v253 = vsel %vm184, %v198, 0.0
    %v254 = vsel %vm184, %v201, 0.0
    %v255 = vsel %vm184, %v204, 0.0
    %v256 = vsel %vm184, %v207, 0.0
    %v257 = vsel %vm184, %v210, 0.0
    %v258 = vsel %vm184, %v213, 0.0
    %v259 = vsel %vm184, %v216, 0.0
    %v260 = vsel %vm184, %v219, 0.0
    %v261 = vsel %vm184, %v222, 0.0
    %v262 = vsel %vm184, %v225, 0.0
    %v263 = vsel %vm184, %v228, 0.0
    %v264 = vsel %vm184, %v231, 0.0
    %v265 = vld [vmem:[%s1] sm:$0x1]
    %267 = vset.pattern.permute.xlu0 0
    %268 = vperm.xlu0 %267, %v168
    %v269 = vpop.permute.xlu0 %268
    %271 = vset.pattern.permute.xlu0 0
    %272 = vperm.xlu0 %271, %v106
    %v273 = vpop.permute.xlu0 %272
    %276 = vset.pattern.permute.xlu0 0
    %277 = vperm.xlu0 %276, %v169
    %v278 = vpop.permute.xlu0 %277
    %280 = vset.pattern.permute.xlu0 0
    %281 = vperm.xlu0 %280, %v109
    %v282 = vpop.permute.xlu0 %281
    %285 = vset.pattern.permute.xlu0 0
    %286 = vperm.xlu0 %285, %v170
    %v287 = vpop.permute.xlu0 %286
    %289 = vset.pattern.permute.xlu0 0
    %290 = vperm.xlu0 %289, %v112
    %v291 = vpop.permute.xlu0 %290
    %294 = vset.pattern.permute.xlu0 0
    %295 = vperm.xlu0 %294, %v171
    %v296 = vpop.permute.xlu0 %295
    %298 = vset.pattern.permute.xlu0 0
    %299 = vperm.xlu0 %298, %v115
    %v300 = vpop.permute.xlu0 %299
    %303 = vset.pattern.permute.xlu0 0
    %304 = vperm.xlu0 %303, %v172
    %v305 = vpop.permute.xlu0 %304
    %307 = vset.pattern.permute.xlu0 0
    %308 = vperm.xlu0 %307, %v118
    %v309 = vpop.permute.xlu0 %308
    %312 = vset.pattern.permute.xlu0 0
    %313 = vperm.xlu0 %312, %v173
    %v314 = vpop.permute.xlu0 %313
    %316 = vset.pattern.permute.xlu0 0
    %317 = vperm.xlu0 %316, %v121
    %v318 = vpop.permute.xlu0 %317
    %321 = vset.pattern.permute.xlu0 0
    %322 = vperm.xlu0 %321, %v174
    %v323 = vpop.permute.xlu0 %322
    %325 = vset.pattern.permute.xlu0 0
    %326 = vperm.xlu0 %325, %v124
    %v327 = vpop.permute.xlu0 %326
    %330 = vset.pattern.permute.xlu0 0
    %331 = vperm.xlu0 %330, %v175
    %v332 = vpop.permute.xlu0 %331
    %334 = vset.pattern.permute.xlu0 0
    %335 = vperm.xlu0 %334, %v127
    %v336 = vpop.permute.xlu0 %335
    %339 = vset.pattern.permute.xlu0 0
    %340 = vperm.xlu0 %339, %v176
    %v341 = vpop.permute.xlu0 %340
    %343 = vset.pattern.permute.xlu0 0
    %344 = vperm.xlu0 %343, %v130
    %v345 = vpop.permute.xlu0 %344
    %348 = vset.pattern.permute.xlu0 0
    %349 = vperm.xlu0 %348, %v177
    %v350 = vpop.permute.xlu0 %349
    %352 = vset.pattern.permute.xlu0 0
    %353 = vperm.xlu0 %352, %v133
    %v354 = vpop.permute.xlu0 %353
    %357 = vset.pattern.permute.xlu0 0
    %358 = vperm.xlu0 %357, %v178
    %v359 = vpop.permute.xlu0 %358
    %361 = vset.pattern.permute.xlu0 0
    %362 = vperm.xlu0 %361, %v136
    %v363 = vpop.permute.xlu0 %362
    %366 = vset.pattern.permute.xlu0 0
    %367 = vperm.xlu0 %366, %v179
    %v368 = vpop.permute.xlu0 %367
    %370 = vset.pattern.permute.xlu0 0
    %371 = vperm.xlu0 %370, %v139
    %v372 = vpop.permute.xlu0 %371
    %375 = vset.pattern.permute.xlu0 0
    %376 = vperm.xlu0 %375, %v180
    %v377 = vpop.permute.xlu0 %376
    %379 = vset.pattern.permute.xlu0 0
    %380 = vperm.xlu0 %379, %v142
    %v381 = vpop.permute.xlu0 %380
    %384 = vset.pattern.permute.xlu0 0
    %385 = vperm.xlu0 %384, %v181
    %v386 = vpop.permute.xlu0 %385
    %388 = vset.pattern.permute.xlu0 0
    %389 = vperm.xlu0 %388, %v145
    %v390 = vpop.permute.xlu0 %389
    %393 = vset.pattern.permute.xlu0 0
    %394 = vperm.xlu0 %393, %v182
    %v395 = vpop.permute.xlu0 %394
    %397 = vset.pattern.permute.xlu0 0
    %398 = vperm.xlu0 %397, %v148
    %v399 = vpop.permute.xlu0 %398
    %402 = vset.pattern.permute.xlu0 0
    %403 = vperm.xlu0 %402, %v183
    %v404 = vpop.permute.xlu0 %403
    %406 = vset.pattern.permute.xlu0 0
    %407 = vperm.xlu0 %406, %v151
    %v408 = vpop.permute.xlu0 %407
    %v411 = vperm.slane %v265, 0
    %v413 = vmul.f32 %v269, %v411
    %v414 = vmul.f32 %v273, %v411
    %v415 = vmul.f32 %v278, %v411
    %v416 = vmul.f32 %v282, %v411
    %v417 = vmul.f32 %v287, %v411
    %v418 = vmul.f32 %v291, %v411
    %v419 = vmul.f32 %v296, %v411
    %v420 = vmul.f32 %v300, %v411
    %v421 = vmul.f32 %v305, %v411
    %v422 = vmul.f32 %v309, %v411
    %v423 = vmul.f32 %v314, %v411
    %v424 = vmul.f32 %v318, %v411
    %v425 = vmul.f32 %v323, %v411
    %v426 = vmul.f32 %v327, %v411
    %v427 = vmul.f32 %v332, %v411
    %v428 = vmul.f32 %v336, %v411
    %v429 = vmul.f32 %v341, %v411
    %v430 = vmul.f32 %v345, %v411
    %v431 = vmul.f32 %v350, %v411
    %v432 = vmul.f32 %v354, %v411
    %v433 = vmul.f32 %v359, %v411
    %v434 = vmul.f32 %v363, %v411
    %v435 = vmul.f32 %v368, %v411
    %v436 = vmul.f32 %v372, %v411
    %v437 = vmul.f32 %v377, %v411
    %v438 = vmul.f32 %v381, %v411
    %v439 = vmul.f32 %v386, %v411
    %v440 = vmul.f32 %v390, %v411
    %v441 = vmul.f32 %v395, %v411
    %v442 = vmul.f32 %v399, %v411
    %v443 = vmul.f32 %v404, %v411
    %v444 = vmul.f32 %v408, %v411
    %s445 = scalar_lea.vmem %s1, 1
    %v446 = vld [vmem:[%s445] sm:$0x1]
    %447 = vset.pattern.permute.xlu0 0
    %448 = vperm.xlu0 %447, %v39
    %v449 = vpop.permute.xlu0 %448
    %451 = vset.pattern.permute.xlu0 0
    %452 = vperm.xlu0 %451, %v40
    %v453 = vpop.permute.xlu0 %452
    %455 = vset.pattern.permute.xlu0 0
    %456 = vperm.xlu0 %455, %v41
    %v457 = vpop.permute.xlu0 %456
    %459 = vset.pattern.permute.xlu0 0
    %460 = vperm.xlu0 %459, %v42
    %v461 = vpop.permute.xlu0 %460
    %463 = vset.pattern.permute.xlu0 0
    %464 = vperm.xlu0 %463, %v43
    %v465 = vpop.permute.xlu0 %464
    %467 = vset.pattern.permute.xlu0 0
    %468 = vperm.xlu0 %467, %v44
    %v469 = vpop.permute.xlu0 %468
    %471 = vset.pattern.permute.xlu0 0
    %472 = vperm.xlu0 %471, %v45
    %v473 = vpop.permute.xlu0 %472
    %475 = vset.pattern.permute.xlu0 0
    %476 = vperm.xlu0 %475, %v46
    %v477 = vpop.permute.xlu0 %476
    %479 = vset.pattern.permute.xlu0 0
    %480 = vperm.xlu0 %479, %v47
    %v481 = vpop.permute.xlu0 %480
    %483 = vset.pattern.permute.xlu0 0
    %484 = vperm.xlu0 %483, %v48
    %v485 = vpop.permute.xlu0 %484
    %487 = vset.pattern.permute.xlu0 0
    %488 = vperm.xlu0 %487, %v49
    %v489 = vpop.permute.xlu0 %488
    %491 = vset.pattern.permute.xlu0 0
    %492 = vperm.xlu0 %491, %v50
    %v493 = vpop.permute.xlu0 %492
    %495 = vset.pattern.permute.xlu0 0
    %496 = vperm.xlu0 %495, %v51
    %v497 = vpop.permute.xlu0 %496
    %499 = vset.pattern.permute.xlu0 0
    %500 = vperm.xlu0 %499, %v52
    %v501 = vpop.permute.xlu0 %500
    %503 = vset.pattern.permute.xlu0 0
    %504 = vperm.xlu0 %503, %v53
    %v505 = vpop.permute.xlu0 %504
    %507 = vset.pattern.permute.xlu0 0
    %508 = vperm.xlu0 %507, %v54
    %v509 = vpop.permute.xlu0 %508
    %511 = vset.pattern.permute.xlu0 0
    %512 = vperm.xlu0 %511, %v55
    %v513 = vpop.permute.xlu0 %512
    %515 = vset.pattern.permute.xlu0 0
    %516 = vperm.xlu0 %515, %v56
    %v517 = vpop.permute.xlu0 %516
    %519 = vset.pattern.permute.xlu0 0
    %520 = vperm.xlu0 %519, %v57
    %v521 = vpop.permute.xlu0 %520
    %523 = vset.pattern.permute.xlu0 0
    %524 = vperm.xlu0 %523, %v58
    %v525 = vpop.permute.xlu0 %524
    %527 = vset.pattern.permute.xlu0 0
    %528 = vperm.xlu0 %527, %v59
    %v529 = vpop.permute.xlu0 %528
    %531 = vset.pattern.permute.xlu0 0
    %532 = vperm.xlu0 %531, %v60
    %v533 = vpop.permute.xlu0 %532
    %535 = vset.pattern.permute.xlu0 0
    %536 = vperm.xlu0 %535, %v61
    %v537 = vpop.permute.xlu0 %536
    %539 = vset.pattern.permute.xlu0 0
    %540 = vperm.xlu0 %539, %v62
    %v541 = vpop.permute.xlu0 %540
    %543 = vset.pattern.permute.xlu0 0
    %544 = vperm.xlu0 %543, %v63
    %v545 = vpop.permute.xlu0 %544
    %547 = vset.pattern.permute.xlu0 0
    %548 = vperm.xlu0 %547, %v64
    %v549 = vpop.permute.xlu0 %548
    %551 = vset.pattern.permute.xlu0 0
    %552 = vperm.xlu0 %551, %v65
    %v553 = vpop.permute.xlu0 %552
    %555 = vset.pattern.permute.xlu0 0
    %556 = vperm.xlu0 %555, %v66
    %v557 = vpop.permute.xlu0 %556
    %559 = vset.pattern.permute.xlu0 0
    %560 = vperm.xlu0 %559, %v67
    %v561 = vpop.permute.xlu0 %560
    %563 = vset.pattern.permute.xlu0 0
    %564 = vperm.xlu0 %563, %v68
    %v565 = vpop.permute.xlu0 %564
    %567 = vset.pattern.permute.xlu0 0
    %568 = vperm.xlu0 %567, %v69
    %v569 = vpop.permute.xlu0 %568
    %571 = vset.pattern.permute.xlu0 0
    %572 = vperm.xlu0 %571, %v70
    %v573 = vpop.permute.xlu0 %572
    %v576 = vperm.slane %v446, 0
    %v578 = vmul.f32 %v449, %v576
    %v579 = vmul.f32 %v453, %v576
    %v580 = vmul.f32 %v457, %v576
    %v581 = vmul.f32 %v461, %v576
    %v582 = vmul.f32 %v465, %v576
    %v583 = vmul.f32 %v469, %v576
    %v584 = vmul.f32 %v473, %v576
    %v585 = vmul.f32 %v477, %v576
    %v586 = vmul.f32 %v481, %v576
    %v587 = vmul.f32 %v485, %v576
    %v588 = vmul.f32 %v489, %v576
    %v589 = vmul.f32 %v493, %v576
    %v590 = vmul.f32 %v497, %v576
    %v591 = vmul.f32 %v501, %v576
    %v592 = vmul.f32 %v505, %v576
    %v593 = vmul.f32 %v509, %v576
    %v594 = vmul.f32 %v513, %v576
    %v595 = vmul.f32 %v517, %v576
    %v596 = vmul.f32 %v521, %v576
    %v597 = vmul.f32 %v525, %v576
    %v598 = vmul.f32 %v529, %v576
    %v599 = vmul.f32 %v533, %v576
    %v600 = vmul.f32 %v537, %v576
    %v601 = vmul.f32 %v541, %v576
    %v602 = vmul.f32 %v545, %v576
    %v603 = vmul.f32 %v549, %v576
    %v604 = vmul.f32 %v553, %v576
    %v605 = vmul.f32 %v557, %v576
    %v606 = vmul.f32 %v561, %v576
    %v607 = vmul.f32 %v565, %v576
    %v608 = vmul.f32 %v569, %v576
    %v609 = vmul.f32 %v573, %v576
    %v610 = vadd.f32 %v413, %v578
    %v611 = vadd.f32 %v414, %v579
    %v612 = vadd.f32 %v415, %v580
    %v613 = vadd.f32 %v416, %v581
    %v614 = vadd.f32 %v417, %v582
    %v615 = vadd.f32 %v418, %v583
    %v616 = vadd.f32 %v419, %v584
    %v617 = vadd.f32 %v420, %v585
    %v618 = vadd.f32 %v421, %v586
    %v619 = vadd.f32 %v422, %v587
    %v620 = vadd.f32 %v423, %v588
    %v621 = vadd.f32 %v424, %v589
    %v622 = vadd.f32 %v425, %v590
    %v623 = vadd.f32 %v426, %v591
    %v624 = vadd.f32 %v427, %v592
    %v625 = vadd.f32 %v428, %v593
    %v626 = vadd.f32 %v429, %v594
    %v627 = vadd.f32 %v430, %v595
    %v628 = vadd.f32 %v431, %v596
    %v629 = vadd.f32 %v432, %v597
    %v630 = vadd.f32 %v433, %v598
    %v631 = vadd.f32 %v434, %v599
    %v632 = vadd.f32 %v435, %v600
    %v633 = vadd.f32 %v436, %v601
    %v634 = vadd.f32 %v437, %v602
    %v635 = vadd.f32 %v438, %v603
    %v636 = vadd.f32 %v439, %v604
    %v637 = vadd.f32 %v440, %v605
    %v638 = vadd.f32 %v441, %v606
    %v639 = vadd.f32 %v442, %v607
    %v640 = vadd.f32 %v443, %v608
    %v641 = vadd.f32 %v444, %v609
    %s642 = scalar_lea.vmem %s1, 2
    %v643 = vld [vmem:[%s642] sm:$0x1]
    %644 = vset.pattern.permute.xlu0 0
    %645 = vperm.xlu0 %644, %v187
    %v646 = vpop.permute.xlu0 %645
    %649 = vset.pattern.permute.xlu0 0
    %650 = vperm.xlu0 %649, %v249
    %v651 = vpop.permute.xlu0 %650
    %653 = vset.pattern.permute.xlu0 0
    %654 = vperm.xlu0 %653, %v190
    %v655 = vpop.permute.xlu0 %654
    %658 = vset.pattern.permute.xlu0 0
    %659 = vperm.xlu0 %658, %v250
    %v660 = vpop.permute.xlu0 %659
    %662 = vset.pattern.permute.xlu0 0
    %663 = vperm.xlu0 %662, %v193
    %v664 = vpop.permute.xlu0 %663
    %667 = vset.pattern.permute.xlu0 0
    %668 = vperm.xlu0 %667, %v251
    %v669 = vpop.permute.xlu0 %668
    %671 = vset.pattern.permute.xlu0 0
    %672 = vperm.xlu0 %671, %v196
    %v673 = vpop.permute.xlu0 %672
    %676 = vset.pattern.permute.xlu0 0
    %677 = vperm.xlu0 %676, %v252
    %v678 = vpop.permute.xlu0 %677
    %680 = vset.pattern.permute.xlu0 0
    %681 = vperm.xlu0 %680, %v199
    %v682 = vpop.permute.xlu0 %681
    %685 = vset.pattern.permute.xlu0 0
    %686 = vperm.xlu0 %685, %v253
    %v687 = vpop.permute.xlu0 %686
    %689 = vset.pattern.permute.xlu0 0
    %690 = vperm.xlu0 %689, %v202
    %v691 = vpop.permute.xlu0 %690
    %694 = vset.pattern.permute.xlu0 0
    %695 = vperm.xlu0 %694, %v254
    %v696 = vpop.permute.xlu0 %695
    %698 = vset.pattern.permute.xlu0 0
    %699 = vperm.xlu0 %698, %v205
    %v700 = vpop.permute.xlu0 %699
    %703 = vset.pattern.permute.xlu0 0
    %704 = vperm.xlu0 %703, %v255
    %v705 = vpop.permute.xlu0 %704
    %707 = vset.pattern.permute.xlu0 0
    %708 = vperm.xlu0 %707, %v208
    %v709 = vpop.permute.xlu0 %708
    %712 = vset.pattern.permute.xlu0 0
    %713 = vperm.xlu0 %712, %v256
    %v714 = vpop.permute.xlu0 %713
    %716 = vset.pattern.permute.xlu0 0
    %717 = vperm.xlu0 %716, %v211
    %v718 = vpop.permute.xlu0 %717
    %721 = vset.pattern.permute.xlu0 0
    %722 = vperm.xlu0 %721, %v257
    %v723 = vpop.permute.xlu0 %722
    %725 = vset.pattern.permute.xlu0 0
    %726 = vperm.xlu0 %725, %v214
    %v727 = vpop.permute.xlu0 %726
    %730 = vset.pattern.permute.xlu0 0
    %731 = vperm.xlu0 %730, %v258
    %v732 = vpop.permute.xlu0 %731
    %734 = vset.pattern.permute.xlu0 0
    %735 = vperm.xlu0 %734, %v217
    %v736 = vpop.permute.xlu0 %735
    %739 = vset.pattern.permute.xlu0 0
    %740 = vperm.xlu0 %739, %v259
    %v741 = vpop.permute.xlu0 %740
    %743 = vset.pattern.permute.xlu0 0
    %744 = vperm.xlu0 %743, %v220
    %v745 = vpop.permute.xlu0 %744
    %748 = vset.pattern.permute.xlu0 0
    %749 = vperm.xlu0 %748, %v260
    %v750 = vpop.permute.xlu0 %749
    %752 = vset.pattern.permute.xlu0 0
    %753 = vperm.xlu0 %752, %v223
    %v754 = vpop.permute.xlu0 %753
    %757 = vset.pattern.permute.xlu0 0
    %758 = vperm.xlu0 %757, %v261
    %v759 = vpop.permute.xlu0 %758
    %761 = vset.pattern.permute.xlu0 0
    %762 = vperm.xlu0 %761, %v226
    %v763 = vpop.permute.xlu0 %762
    %766 = vset.pattern.permute.xlu0 0
    %767 = vperm.xlu0 %766, %v262
    %v768 = vpop.permute.xlu0 %767
    %770 = vset.pattern.permute.xlu0 0
    %771 = vperm.xlu0 %770, %v229
    %v772 = vpop.permute.xlu0 %771
    %775 = vset.pattern.permute.xlu0 0
    %776 = vperm.xlu0 %775, %v263
    %v777 = vpop.permute.xlu0 %776
    %779 = vset.pattern.permute.xlu0 0
    %780 = vperm.xlu0 %779, %v232
    %v781 = vpop.permute.xlu0 %780
    %784 = vset.pattern.permute.xlu0 0
    %785 = vperm.xlu0 %784, %v264
    %v786 = vpop.permute.xlu0 %785
    %v789 = vperm.slane %v643, 0
    %v791 = vmul.f32 %v646, %v789
    %v792 = vmul.f32 %v651, %v789
    %v793 = vmul.f32 %v655, %v789
    %v794 = vmul.f32 %v660, %v789
    %v795 = vmul.f32 %v664, %v789
    %v796 = vmul.f32 %v669, %v789
    %v797 = vmul.f32 %v673, %v789
    %v798 = vmul.f32 %v678, %v789
    %v799 = vmul.f32 %v682, %v789
    %v800 = vmul.f32 %v687, %v789
    %v801 = vmul.f32 %v691, %v789
    %v802 = vmul.f32 %v696, %v789
    %v803 = vmul.f32 %v700, %v789
    %v804 = vmul.f32 %v705, %v789
    %v805 = vmul.f32 %v709, %v789
    %v806 = vmul.f32 %v714, %v789
    %v807 = vmul.f32 %v718, %v789
    %v808 = vmul.f32 %v723, %v789
    %v809 = vmul.f32 %v727, %v789
    %v810 = vmul.f32 %v732, %v789
    %v811 = vmul.f32 %v736, %v789
    %v812 = vmul.f32 %v741, %v789
    %v813 = vmul.f32 %v745, %v789
    %v814 = vmul.f32 %v750, %v789
    %v815 = vmul.f32 %v754, %v789
    %v816 = vmul.f32 %v759, %v789
    %v817 = vmul.f32 %v763, %v789
    %v818 = vmul.f32 %v768, %v789
    %v819 = vmul.f32 %v772, %v789
    %v820 = vmul.f32 %v777, %v789
    %v821 = vmul.f32 %v781, %v789
    %v822 = vmul.f32 %v786, %v789
    %v823 = vadd.f32 %v610, %v791
    %v824 = vadd.f32 %v611, %v792
    %v825 = vadd.f32 %v612, %v793
    %v826 = vadd.f32 %v613, %v794
    %v827 = vadd.f32 %v614, %v795
    %v828 = vadd.f32 %v615, %v796
    %v829 = vadd.f32 %v616, %v797
    %v830 = vadd.f32 %v617, %v798
    %v831 = vadd.f32 %v618, %v799
    %v832 = vadd.f32 %v619, %v800
    %v833 = vadd.f32 %v620, %v801
    %v834 = vadd.f32 %v621, %v802
    %v835 = vadd.f32 %v622, %v803
    %v836 = vadd.f32 %v623, %v804
    %v837 = vadd.f32 %v624, %v805
    %v838 = vadd.f32 %v625, %v806
    %v839 = vadd.f32 %v626, %v807
    %v840 = vadd.f32 %v627, %v808
    %v841 = vadd.f32 %v628, %v809
    %v842 = vadd.f32 %v629, %v810
    %v843 = vadd.f32 %v630, %v811
    %v844 = vadd.f32 %v631, %v812
    %v845 = vadd.f32 %v632, %v813
    %v846 = vadd.f32 %v633, %v814
    %v847 = vadd.f32 %v634, %v815
    %v848 = vadd.f32 %v635, %v816
    %v849 = vadd.f32 %v636, %v817
    %v850 = vadd.f32 %v637, %v818
    %v851 = vadd.f32 %v638, %v819
    %v852 = vadd.f32 %v639, %v820
    %v853 = vadd.f32 %v640, %v821
    %v854 = vadd.f32 %v641, %v822
    %v855 = vld [vmem:[%s2] sm:$0x1]
    %v857 = vperm.slane %v855, 0
    %v859 = vadd.f32 %v823, %v857
    %v860 = vadd.f32 %v824, %v857
    %v861 = vadd.f32 %v825, %v857
    %v862 = vadd.f32 %v826, %v857
    %v863 = vadd.f32 %v827, %v857
    %v864 = vadd.f32 %v828, %v857
    %v865 = vadd.f32 %v829, %v857
    %v866 = vadd.f32 %v830, %v857
    %v867 = vadd.f32 %v831, %v857
    %v868 = vadd.f32 %v832, %v857
    %v869 = vadd.f32 %v833, %v857
    %v870 = vadd.f32 %v834, %v857
    %v871 = vadd.f32 %v835, %v857
    %v872 = vadd.f32 %v836, %v857
    %v873 = vadd.f32 %v837, %v857
    %v874 = vadd.f32 %v838, %v857
    %v875 = vadd.f32 %v839, %v857
    %v876 = vadd.f32 %v840, %v857
    %v877 = vadd.f32 %v841, %v857
    %v878 = vadd.f32 %v842, %v857
    %v879 = vadd.f32 %v843, %v857
    %v880 = vadd.f32 %v844, %v857
    %v881 = vadd.f32 %v845, %v857
    %v882 = vadd.f32 %v846, %v857
    %v883 = vadd.f32 %v847, %v857
    %v884 = vadd.f32 %v848, %v857
    %v885 = vadd.f32 %v849, %v857
    %v886 = vadd.f32 %v850, %v857
    %v887 = vadd.f32 %v851, %v857
    %v888 = vadd.f32 %v852, %v857
    %v889 = vadd.f32 %v853, %v857
    %v890 = vadd.f32 %v854, %v857
    %v891 = vmax.f32 %v859, 0.0
    %v892 = vmax.f32 %v860, 0.0
    %v893 = vmax.f32 %v861, 0.0
    %v894 = vmax.f32 %v862, 0.0
    %v895 = vmax.f32 %v863, 0.0
    %v896 = vmax.f32 %v864, 0.0
    %v897 = vmax.f32 %v865, 0.0
    %v898 = vmax.f32 %v866, 0.0
    %v899 = vmax.f32 %v867, 0.0
    %v900 = vmax.f32 %v868, 0.0
    %v901 = vmax.f32 %v869, 0.0
    %v902 = vmax.f32 %v870, 0.0
    %v903 = vmax.f32 %v871, 0.0
    %v904 = vmax.f32 %v872, 0.0
    %v905 = vmax.f32 %v873, 0.0
    %v906 = vmax.f32 %v874, 0.0
    %v907 = vmax.f32 %v875, 0.0
    %v908 = vmax.f32 %v876, 0.0
    %v909 = vmax.f32 %v877, 0.0
    %v910 = vmax.f32 %v878, 0.0
    %v911 = vmax.f32 %v879, 0.0
    %v912 = vmax.f32 %v880, 0.0
    %v913 = vmax.f32 %v881, 0.0
    %v914 = vmax.f32 %v882, 0.0
    %v915 = vmax.f32 %v883, 0.0
    %v916 = vmax.f32 %v884, 0.0
    %v917 = vmax.f32 %v885, 0.0
    %v918 = vmax.f32 %v886, 0.0
    %v919 = vmax.f32 %v887, 0.0
    %v920 = vmax.f32 %v888, 0.0
    %v921 = vmax.f32 %v889, 0.0
    %v922 = vmax.f32 %v890, 0.0
    %v955 = vrot.slane %v891, 2
    %v956 = vrot.slane %v891, 4
    %v957 = vrot.slane %v891, 6
    %v958 = vrot.slane %v892, 2
    %v959 = vrot.slane %v892, 4
    %v960 = vrot.slane %v892, 6
    %v961 = vrot.slane %v893, 2
    %v962 = vrot.slane %v893, 4
    %v963 = vrot.slane %v893, 6
    %v964 = vrot.slane %v894, 2
    %v965 = vrot.slane %v894, 4
    %v966 = vrot.slane %v894, 6
    %v967 = vrot.slane %v895, 2
    %v968 = vrot.slane %v895, 4
    %v969 = vrot.slane %v895, 6
    %v970 = vrot.slane %v896, 2
    %v971 = vrot.slane %v896, 4
    %v972 = vrot.slane %v896, 6
    %v973 = vrot.slane %v897, 2
    %v974 = vrot.slane %v897, 4
    %v975 = vrot.slane %v897, 6
    %v976 = vrot.slane %v898, 2
    %v977 = vrot.slane %v898, 4
    %v978 = vrot.slane %v898, 6
    %v979 = vrot.slane %v899, 2
    %v980 = vrot.slane %v899, 4
    %v981 = vrot.slane %v899, 6
    %v982 = vrot.slane %v900, 2
    %v983 = vrot.slane %v900, 4
    %v984 = vrot.slane %v900, 6
    %v985 = vrot.slane %v901, 2
    %v986 = vrot.slane %v901, 4
    %v987 = vrot.slane %v901, 6
    %v988 = vrot.slane %v902, 2
    %v989 = vrot.slane %v902, 4
    %v990 = vrot.slane %v902, 6
    %v991 = vrot.slane %v903, 2
    %v992 = vrot.slane %v903, 4
    %v993 = vrot.slane %v903, 6
    %v994 = vrot.slane %v904, 2
    %v995 = vrot.slane %v904, 4
    %v996 = vrot.slane %v904, 6
    %v997 = vrot.slane %v905, 2
    %v998 = vrot.slane %v905, 4
    %v999 = vrot.slane %v905, 6
    %v1000 = vrot.slane %v906, 2
    %v1001 = vrot.slane %v906, 4
    %v1002 = vrot.slane %v906, 6
    %v1003 = vrot.slane %v907, 2
    %v1004 = vrot.slane %v907, 4
    %v1005 = vrot.slane %v907, 6
    %v1006 = vrot.slane %v908, 2
    %v1007 = vrot.slane %v908, 4
    %v1008 = vrot.slane %v908, 6
    %v1009 = vrot.slane %v909, 2
    %v1010 = vrot.slane %v909, 4
    %v1011 = vrot.slane %v909, 6
    %v1012 = vrot.slane %v910, 2
    %v1013 = vrot.slane %v910, 4
    %v1014 = vrot.slane %v910, 6
    %v1015 = vrot.slane %v911, 2
    %v1016 = vrot.slane %v911, 4
    %v1017 = vrot.slane %v911, 6
    %v1018 = vrot.slane %v912, 2
    %v1019 = vrot.slane %v912, 4
    %v1020 = vrot.slane %v912, 6
    %v1021 = vrot.slane %v913, 2
    %v1022 = vrot.slane %v913, 4
    %v1023 = vrot.slane %v913, 6
    %v1024 = vrot.slane %v914, 2
    %v1025 = vrot.slane %v914, 4
    %v1026 = vrot.slane %v914, 6
    %v1027 = vrot.slane %v915, 2
    %v1028 = vrot.slane %v915, 4
    %v1029 = vrot.slane %v915, 6
    %v1030 = vrot.slane %v916, 2
    %v1031 = vrot.slane %v916, 4
    %v1032 = vrot.slane %v916, 6
    %v1033 = vrot.slane %v917, 2
    %v1034 = vrot.slane %v917, 4
    %v1035 = vrot.slane %v917, 6
    %v1036 = vrot.slane %v918, 2
    %v1037 = vrot.slane %v918, 4
    %v1038 = vrot.slane %v918, 6
    %v1039 = vrot.slane %v919, 2
    %v1040 = vrot.slane %v919, 4
    %v1041 = vrot.slane %v919, 6
    %v1042 = vrot.slane %v920, 2
    %v1043 = vrot.slane %v920, 4
    %v1044 = vrot.slane %v920, 6
    %v1045 = vrot.slane %v921, 2
    %v1046 = vrot.slane %v921, 4
    %v1047 = vrot.slane %v921, 6
    %v1048 = vrot.slane %v922, 2
    %v1049 = vrot.slane %v922, 4
    %v1050 = vrot.slane %v922, 6
    %vm1147 = vcmask 254976
    %v1148 = vsel %vm1147, %v891, -inf
    %v1149 = vrot.slane %v1148, 4
    %v1150 = vmax.f32 %v1148, %v1149
    %v1151 = vrot.slane %v1150, 2
    %v1152 = vmax.f32 %v1150, %v1151
    %v1153 = vrot.slane %v1152, 1
    %v1154 = vmax.f32 %v1152, %v1153
    %v1155 = vsel %vm1147, %v955, -inf
    %v1156 = vrot.slane %v1155, 4
    %v1157 = vmax.f32 %v1155, %v1156
    %v1158 = vrot.slane %v1157, 2
    %v1159 = vmax.f32 %v1157, %v1158
    %v1160 = vrot.slane %v1159, 1
    %v1161 = vmax.f32 %v1159, %v1160
    %v1162 = vsel %vm1147, %v956, -inf
    %v1163 = vrot.slane %v1162, 4
    %v1164 = vmax.f32 %v1162, %v1163
    %v1165 = vrot.slane %v1164, 2
    %v1166 = vmax.f32 %v1164, %v1165
    %v1167 = vrot.slane %v1166, 1
    %v1168 = vmax.f32 %v1166, %v1167
    %v1169 = vsel %vm1147, %v957, -inf
    %v1170 = vrot.slane %v1169, 4
    %v1171 = vmax.f32 %v1169, %v1170
    %v1172 = vrot.slane %v1171, 2
    %v1173 = vmax.f32 %v1171, %v1172
    %v1174 = vrot.slane %v1173, 1
    %v1175 = vmax.f32 %v1173, %v1174
    %v1176 = vsel %vm1147, %v892, -inf
    %v1177 = vrot.slane %v1176, 4
    %v1178 = vmax.f32 %v1176, %v1177
    %v1179 = vrot.slane %v1178, 2
    %v1180 = vmax.f32 %v1178, %v1179
    %v1181 = vrot.slane %v1180, 1
    %v1182 = vmax.f32 %v1180, %v1181
    %v1183 = vsel %vm1147, %v958, -inf
    %v1184 = vrot.slane %v1183, 4
    %v1185 = vmax.f32 %v1183, %v1184
    %v1186 = vrot.slane %v1185, 2
    %v1187 = vmax.f32 %v1185, %v1186
    %v1188 = vrot.slane %v1187, 1
    %v1189 = vmax.f32 %v1187, %v1188
    %v1190 = vsel %vm1147, %v959, -inf
    %v1191 = vrot.slane %v1190, 4
    %v1192 = vmax.f32 %v1190, %v1191
    %v1193 = vrot.slane %v1192, 2
    %v1194 = vmax.f32 %v1192, %v1193
    %v1195 = vrot.slane %v1194, 1
    %v1196 = vmax.f32 %v1194, %v1195
    %v1197 = vsel %vm1147, %v960, -inf
    %v1198 = vrot.slane %v1197, 4
    %v1199 = vmax.f32 %v1197, %v1198
    %v1200 = vrot.slane %v1199, 2
    %v1201 = vmax.f32 %v1199, %v1200
    %v1202 = vrot.slane %v1201, 1
    %v1203 = vmax.f32 %v1201, %v1202
    %v1204 = vsel %vm1147, %v893, -inf
    %v1205 = vrot.slane %v1204, 4
    %v1206 = vmax.f32 %v1204, %v1205
    %v1207 = vrot.slane %v1206, 2
    %v1208 = vmax.f32 %v1206, %v1207
    %v1209 = vrot.slane %v1208, 1
    %v1210 = vmax.f32 %v1208, %v1209
    %v1211 = vsel %vm1147, %v961, -inf
    %v1212 = vrot.slane %v1211, 4
    %v1213 = vmax.f32 %v1211, %v1212
    %v1214 = vrot.slane %v1213, 2
    %v1215 = vmax.f32 %v1213, %v1214
    %v1216 = vrot.slane %v1215, 1
    %v1217 = vmax.f32 %v1215, %v1216
    %v1218 = vsel %vm1147, %v962, -inf
    %v1219 = vrot.slane %v1218, 4
    %v1220 = vmax.f32 %v1218, %v1219
    %v1221 = vrot.slane %v1220, 2
    %v1222 = vmax.f32 %v1220, %v1221
    %v1223 = vrot.slane %v1222, 1
    %v1224 = vmax.f32 %v1222, %v1223
    %v1225 = vsel %vm1147, %v963, -inf
    %v1226 = vrot.slane %v1225, 4
    %v1227 = vmax.f32 %v1225, %v1226
    %v1228 = vrot.slane %v1227, 2
    %v1229 = vmax.f32 %v1227, %v1228
    %v1230 = vrot.slane %v1229, 1
    %v1231 = vmax.f32 %v1229, %v1230
    %v1232 = vsel %vm1147, %v894, -inf
    %v1233 = vrot.slane %v1232, 4
    %v1234 = vmax.f32 %v1232, %v1233
    %v1235 = vrot.slane %v1234, 2
    %v1236 = vmax.f32 %v1234, %v1235
    %v1237 = vrot.slane %v1236, 1
    %v1238 = vmax.f32 %v1236, %v1237
    %v1239 = vsel %vm1147, %v964, -inf
    %v1240 = vrot.slane %v1239, 4
    %v1241 = vmax.f32 %v1239, %v1240
    %v1242 = vrot.slane %v1241, 2
    %v1243 = vmax.f32 %v1241, %v1242
    %v1244 = vrot.slane %v1243, 1
    %v1245 = vmax.f32 %v1243, %v1244
    %v1246 = vsel %vm1147, %v965, -inf
    %v1247 = vrot.slane %v1246, 4
    %v1248 = vmax.f32 %v1246, %v1247
    %v1249 = vrot.slane %v1248, 2
    %v1250 = vmax.f32 %v1248, %v1249
    %v1251 = vrot.slane %v1250, 1
    %v1252 = vmax.f32 %v1250, %v1251
    %v1253 = vsel %vm1147, %v966, -inf
    %v1254 = vrot.slane %v1253, 4
    %v1255 = vmax.f32 %v1253, %v1254
    %v1256 = vrot.slane %v1255, 2
    %v1257 = vmax.f32 %v1255, %v1256
    %v1258 = vrot.slane %v1257, 1
    %v1259 = vmax.f32 %v1257, %v1258
    %v1260 = vsel %vm1147, %v895, -inf
    %v1261 = vrot.slane %v1260, 4
    %v1262 = vmax.f32 %v1260, %v1261
    %v1263 = vrot.slane %v1262, 2
    %v1264 = vmax.f32 %v1262, %v1263
    %v1265 = vrot.slane %v1264, 1
    %v1266 = vmax.f32 %v1264, %v1265
    %v1267 = vsel %vm1147, %v967, -inf
    %v1268 = vrot.slane %v1267, 4
    %v1269 = vmax.f32 %v1267, %v1268
    %v1270 = vrot.slane %v1269, 2
    %v1271 = vmax.f32 %v1269, %v1270
    %v1272 = vrot.slane %v1271, 1
    %v1273 = vmax.f32 %v1271, %v1272
    %v1274 = vsel %vm1147, %v968, -inf
    %v1275 = vrot.slane %v1274, 4
    %v1276 = vmax.f32 %v1274, %v1275
    %v1277 = vrot.slane %v1276, 2
    %v1278 = vmax.f32 %v1276, %v1277
    %v1279 = vrot.slane %v1278, 1
    %v1280 = vmax.f32 %v1278, %v1279
    %v1281 = vsel %vm1147, %v969, -inf
    %v1282 = vrot.slane %v1281, 4
    %v1283 = vmax.f32 %v1281, %v1282
    %v1284 = vrot.slane %v1283, 2
    %v1285 = vmax.f32 %v1283, %v1284
    %v1286 = vrot.slane %v1285, 1
    %v1287 = vmax.f32 %v1285, %v1286
    %v1288 = vsel %vm1147, %v896, -inf
    %v1289 = vrot.slane %v1288, 4
    %v1290 = vmax.f32 %v1288, %v1289
    %v1291 = vrot.slane %v1290, 2
    %v1292 = vmax.f32 %v1290, %v1291
    %v1293 = vrot.slane %v1292, 1
    %v1294 = vmax.f32 %v1292, %v1293
    %v1295 = vsel %vm1147, %v970, -inf
    %v1296 = vrot.slane %v1295, 4
    %v1297 = vmax.f32 %v1295, %v1296
    %v1298 = vrot.slane %v1297, 2
    %v1299 = vmax.f32 %v1297, %v1298
    %v1300 = vrot.slane %v1299, 1
    %v1301 = vmax.f32 %v1299, %v1300
    %v1302 = vsel %vm1147, %v971, -inf
    %v1303 = vrot.slane %v1302, 4
    %v1304 = vmax.f32 %v1302, %v1303
    %v1305 = vrot.slane %v1304, 2
    %v1306 = vmax.f32 %v1304, %v1305
    %v1307 = vrot.slane %v1306, 1
    %v1308 = vmax.f32 %v1306, %v1307
    %v1309 = vsel %vm1147, %v972, -inf
    %v1310 = vrot.slane %v1309, 4
    %v1311 = vmax.f32 %v1309, %v1310
    %v1312 = vrot.slane %v1311, 2
    %v1313 = vmax.f32 %v1311, %v1312
    %v1314 = vrot.slane %v1313, 1
    %v1315 = vmax.f32 %v1313, %v1314
    %v1316 = vsel %vm1147, %v897, -inf
    %v1317 = vrot.slane %v1316, 4
    %v1318 = vmax.f32 %v1316, %v1317
    %v1319 = vrot.slane %v1318, 2
    %v1320 = vmax.f32 %v1318, %v1319
    %v1321 = vrot.slane %v1320, 1
    %v1322 = vmax.f32 %v1320, %v1321
    %v1323 = vsel %vm1147, %v973, -inf
    %v1324 = vrot.slane %v1323, 4
    %v1325 = vmax.f32 %v1323, %v1324
    %v1326 = vrot.slane %v1325, 2
    %v1327 = vmax.f32 %v1325, %v1326
    %v1328 = vrot.slane %v1327, 1
    %v1329 = vmax.f32 %v1327, %v1328
    %v1330 = vsel %vm1147, %v974, -inf
    %v1331 = vrot.slane %v1330, 4
    %v1332 = vmax.f32 %v1330, %v1331
    %v1333 = vrot.slane %v1332, 2
    %v1334 = vmax.f32 %v1332, %v1333
    %v1335 = vrot.slane %v1334, 1
    %v1336 = vmax.f32 %v1334, %v1335
    %v1337 = vsel %vm1147, %v975, -inf
    %v1338 = vrot.slane %v1337, 4
    %v1339 = vmax.f32 %v1337, %v1338
    %v1340 = vrot.slane %v1339, 2
    %v1341 = vmax.f32 %v1339, %v1340
    %v1342 = vrot.slane %v1341, 1
    %v1343 = vmax.f32 %v1341, %v1342
    %v1344 = vsel %vm1147, %v898, -inf
    %v1345 = vrot.slane %v1344, 4
    %v1346 = vmax.f32 %v1344, %v1345
    %v1347 = vrot.slane %v1346, 2
    %v1348 = vmax.f32 %v1346, %v1347
    %v1349 = vrot.slane %v1348, 1
    %v1350 = vmax.f32 %v1348, %v1349
    %v1351 = vsel %vm1147, %v976, -inf
    %v1352 = vrot.slane %v1351, 4
    %v1353 = vmax.f32 %v1351, %v1352
    %v1354 = vrot.slane %v1353, 2
    %v1355 = vmax.f32 %v1353, %v1354
    %v1356 = vrot.slane %v1355, 1
    %v1357 = vmax.f32 %v1355, %v1356
    %v1358 = vsel %vm1147, %v977, -inf
    %v1359 = vrot.slane %v1358, 4
    %v1360 = vmax.f32 %v1358, %v1359
    %v1361 = vrot.slane %v1360, 2
    %v1362 = vmax.f32 %v1360, %v1361
    %v1363 = vrot.slane %v1362, 1
    %v1364 = vmax.f32 %v1362, %v1363
    %v1365 = vsel %vm1147, %v978, -inf
    %v1366 = vrot.slane %v1365, 4
    %v1367 = vmax.f32 %v1365, %v1366
    %v1368 = vrot.slane %v1367, 2
    %v1369 = vmax.f32 %v1367, %v1368
    %v1370 = vrot.slane %v1369, 1
    %v1371 = vmax.f32 %v1369, %v1370
    %v1372 = vsel %vm1147, %v899, -inf
    %v1373 = vrot.slane %v1372, 4
    %v1374 = vmax.f32 %v1372, %v1373
    %v1375 = vrot.slane %v1374, 2
    %v1376 = vmax.f32 %v1374, %v1375
    %v1377 = vrot.slane %v1376, 1
    %v1378 = vmax.f32 %v1376, %v1377
    %v1379 = vsel %vm1147, %v979, -inf
    %v1380 = vrot.slane %v1379, 4
    %v1381 = vmax.f32 %v1379, %v1380
    %v1382 = vrot.slane %v1381, 2
    %v1383 = vmax.f32 %v1381, %v1382
    %v1384 = vrot.slane %v1383, 1
    %v1385 = vmax.f32 %v1383, %v1384
    %v1386 = vsel %vm1147, %v980, -inf
    %v1387 = vrot.slane %v1386, 4
    %v1388 = vmax.f32 %v1386, %v1387
    %v1389 = vrot.slane %v1388, 2
    %v1390 = vmax.f32 %v1388, %v1389
    %v1391 = vrot.slane %v1390, 1
    %v1392 = vmax.f32 %v1390, %v1391
    %v1393 = vsel %vm1147, %v981, -inf
    %v1394 = vrot.slane %v1393, 4
    %v1395 = vmax.f32 %v1393, %v1394
    %v1396 = vrot.slane %v1395, 2
    %v1397 = vmax.f32 %v1395, %v1396
    %v1398 = vrot.slane %v1397, 1
    %v1399 = vmax.f32 %v1397, %v1398
    %v1400 = vsel %vm1147, %v900, -inf
    %v1401 = vrot.slane %v1400, 4
    %v1402 = vmax.f32 %v1400, %v1401
    %v1403 = vrot.slane %v1402, 2
    %v1404 = vmax.f32 %v1402, %v1403
    %v1405 = vrot.slane %v1404, 1
    %v1406 = vmax.f32 %v1404, %v1405
    %v1407 = vsel %vm1147, %v982, -inf
    %v1408 = vrot.slane %v1407, 4
    %v1409 = vmax.f32 %v1407, %v1408
    %v1410 = vrot.slane %v1409, 2
    %v1411 = vmax.f32 %v1409, %v1410
    %v1412 = vrot.slane %v1411, 1
    %v1413 = vmax.f32 %v1411, %v1412
    %v1414 = vsel %vm1147, %v983, -inf
    %v1415 = vrot.slane %v1414, 4
    %v1416 = vmax.f32 %v1414, %v1415
    %v1417 = vrot.slane %v1416, 2
    %v1418 = vmax.f32 %v1416, %v1417
    %v1419 = vrot.slane %v1418, 1
    %v1420 = vmax.f32 %v1418, %v1419
    %v1421 = vsel %vm1147, %v984, -inf
    %v1422 = vrot.slane %v1421, 4
    %v1423 = vmax.f32 %v1421, %v1422
    %v1424 = vrot.slane %v1423, 2
    %v1425 = vmax.f32 %v1423, %v1424
    %v1426 = vrot.slane %v1425, 1
    %v1427 = vmax.f32 %v1425, %v1426
    %v1428 = vsel %vm1147, %v901, -inf
    %v1429 = vrot.slane %v1428, 4
    %v1430 = vmax.f32 %v1428, %v1429
    %v1431 = vrot.slane %v1430, 2
    %v1432 = vmax.f32 %v1430, %v1431
    %v1433 = vrot.slane %v1432, 1
    %v1434 = vmax.f32 %v1432, %v1433
    %v1435 = vsel %vm1147, %v985, -inf
    %v1436 = vrot.slane %v1435, 4
    %v1437 = vmax.f32 %v1435, %v1436
    %v1438 = vrot.slane %v1437, 2
    %v1439 = vmax.f32 %v1437, %v1438
    %v1440 = vrot.slane %v1439, 1
    %v1441 = vmax.f32 %v1439, %v1440
    %v1442 = vsel %vm1147, %v986, -inf
    %v1443 = vrot.slane %v1442, 4
    %v1444 = vmax.f32 %v1442, %v1443
    %v1445 = vrot.slane %v1444, 2
    %v1446 = vmax.f32 %v1444, %v1445
    %v1447 = vrot.slane %v1446, 1
    %v1448 = vmax.f32 %v1446, %v1447
    %v1449 = vsel %vm1147, %v987, -inf
    %v1450 = vrot.slane %v1449, 4
    %v1451 = vmax.f32 %v1449, %v1450
    %v1452 = vrot.slane %v1451, 2
    %v1453 = vmax.f32 %v1451, %v1452
    %v1454 = vrot.slane %v1453, 1
    %v1455 = vmax.f32 %v1453, %v1454
    %v1456 = vsel %vm1147, %v902, -inf
    %v1457 = vrot.slane %v1456, 4
    %v1458 = vmax.f32 %v1456, %v1457
    %v1459 = vrot.slane %v1458, 2
    %v1460 = vmax.f32 %v1458, %v1459
    %v1461 = vrot.slane %v1460, 1
    %v1462 = vmax.f32 %v1460, %v1461
    %v1463 = vsel %vm1147, %v988, -inf
    %v1464 = vrot.slane %v1463, 4
    %v1465 = vmax.f32 %v1463, %v1464
    %v1466 = vrot.slane %v1465, 2
    %v1467 = vmax.f32 %v1465, %v1466
    %v1468 = vrot.slane %v1467, 1
    %v1469 = vmax.f32 %v1467, %v1468
    %v1470 = vsel %vm1147, %v989, -inf
    %v1471 = vrot.slane %v1470, 4
    %v1472 = vmax.f32 %v1470, %v1471
    %v1473 = vrot.slane %v1472, 2
    %v1474 = vmax.f32 %v1472, %v1473
    %v1475 = vrot.slane %v1474, 1
    %v1476 = vmax.f32 %v1474, %v1475
    %v1477 = vsel %vm1147, %v990, -inf
    %v1478 = vrot.slane %v1477, 4
    %v1479 = vmax.f32 %v1477, %v1478
    %v1480 = vrot.slane %v1479, 2
    %v1481 = vmax.f32 %v1479, %v1480
    %v1482 = vrot.slane %v1481, 1
    %v1483 = vmax.f32 %v1481, %v1482
    %v1484 = vsel %vm1147, %v903, -inf
    %v1485 = vrot.slane %v1484, 4
    %v1486 = vmax.f32 %v1484, %v1485
    %v1487 = vrot.slane %v1486, 2
    %v1488 = vmax.f32 %v1486, %v1487
    %v1489 = vrot.slane %v1488, 1
    %v1490 = vmax.f32 %v1488, %v1489
    %v1491 = vsel %vm1147, %v991, -inf
    %v1492 = vrot.slane %v1491, 4
    %v1493 = vmax.f32 %v1491, %v1492
    %v1494 = vrot.slane %v1493, 2
    %v1495 = vmax.f32 %v1493, %v1494
    %v1496 = vrot.slane %v1495, 1
    %v1497 = vmax.f32 %v1495, %v1496
    %v1498 = vsel %vm1147, %v992, -inf
    %v1499 = vrot.slane %v1498, 4
    %v1500 = vmax.f32 %v1498, %v1499
    %v1501 = vrot.slane %v1500, 2
    %v1502 = vmax.f32 %v1500, %v1501
    %v1503 = vrot.slane %v1502, 1
    %v1504 = vmax.f32 %v1502, %v1503
    %v1505 = vsel %vm1147, %v993, -inf
    %v1506 = vrot.slane %v1505, 4
    %v1507 = vmax.f32 %v1505, %v1506
    %v1508 = vrot.slane %v1507, 2
    %v1509 = vmax.f32 %v1507, %v1508
    %v1510 = vrot.slane %v1509, 1
    %v1511 = vmax.f32 %v1509, %v1510
    %v1512 = vsel %vm1147, %v904, -inf
    %v1513 = vrot.slane %v1512, 4
    %v1514 = vmax.f32 %v1512, %v1513
    %v1515 = vrot.slane %v1514, 2
    %v1516 = vmax.f32 %v1514, %v1515
    %v1517 = vrot.slane %v1516, 1
    %v1518 = vmax.f32 %v1516, %v1517
    %v1519 = vsel %vm1147, %v994, -inf
    %v1520 = vrot.slane %v1519, 4
    %v1521 = vmax.f32 %v1519, %v1520
    %v1522 = vrot.slane %v1521, 2
    %v1523 = vmax.f32 %v1521, %v1522
    %v1524 = vrot.slane %v1523, 1
    %v1525 = vmax.f32 %v1523, %v1524
    %v1526 = vsel %vm1147, %v995, -inf
    %v1527 = vrot.slane %v1526, 4
    %v1528 = vmax.f32 %v1526, %v1527
    %v1529 = vrot.slane %v1528, 2
    %v1530 = vmax.f32 %v1528, %v1529
    %v1531 = vrot.slane %v1530, 1
    %v1532 = vmax.f32 %v1530, %v1531
    %v1533 = vsel %vm1147, %v996, -inf
    %v1534 = vrot.slane %v1533, 4
    %v1535 = vmax.f32 %v1533, %v1534
    %v1536 = vrot.slane %v1535, 2
    %v1537 = vmax.f32 %v1535, %v1536
    %v1538 = vrot.slane %v1537, 1
    %v1539 = vmax.f32 %v1537, %v1538
    %v1540 = vsel %vm1147, %v905, -inf
    %v1541 = vrot.slane %v1540, 4
    %v1542 = vmax.f32 %v1540, %v1541
    %v1543 = vrot.slane %v1542, 2
    %v1544 = vmax.f32 %v1542, %v1543
    %v1545 = vrot.slane %v1544, 1
    %v1546 = vmax.f32 %v1544, %v1545
    %v1547 = vsel %vm1147, %v997, -inf
    %v1548 = vrot.slane %v1547, 4
    %v1549 = vmax.f32 %v1547, %v1548
    %v1550 = vrot.slane %v1549, 2
    %v1551 = vmax.f32 %v1549, %v1550
    %v1552 = vrot.slane %v1551, 1
    %v1553 = vmax.f32 %v1551, %v1552
    %v1554 = vsel %vm1147, %v998, -inf
    %v1555 = vrot.slane %v1554, 4
    %v1556 = vmax.f32 %v1554, %v1555
    %v1557 = vrot.slane %v1556, 2
    %v1558 = vmax.f32 %v1556, %v1557
    %v1559 = vrot.slane %v1558, 1
    %v1560 = vmax.f32 %v1558, %v1559
    %v1561 = vsel %vm1147, %v999, -inf
    %v1562 = vrot.slane %v1561, 4
    %v1563 = vmax.f32 %v1561, %v1562
    %v1564 = vrot.slane %v1563, 2
    %v1565 = vmax.f32 %v1563, %v1564
    %v1566 = vrot.slane %v1565, 1
    %v1567 = vmax.f32 %v1565, %v1566
    %v1568 = vsel %vm1147, %v906, -inf
    %v1569 = vrot.slane %v1568, 4
    %v1570 = vmax.f32 %v1568, %v1569
    %v1571 = vrot.slane %v1570, 2
    %v1572 = vmax.f32 %v1570, %v1571
    %v1573 = vrot.slane %v1572, 1
    %v1574 = vmax.f32 %v1572, %v1573
    %v1575 = vsel %vm1147, %v1000, -inf
    %v1576 = vrot.slane %v1575, 4
    %v1577 = vmax.f32 %v1575, %v1576
    %v1578 = vrot.slane %v1577, 2
    %v1579 = vmax.f32 %v1577, %v1578
    %v1580 = vrot.slane %v1579, 1
    %v1581 = vmax.f32 %v1579, %v1580
    %v1582 = vsel %vm1147, %v1001, -inf
    %v1583 = vrot.slane %v1582, 4
    %v1584 = vmax.f32 %v1582, %v1583
    %v1585 = vrot.slane %v1584, 2
    %v1586 = vmax.f32 %v1584, %v1585
    %v1587 = vrot.slane %v1586, 1
    %v1588 = vmax.f32 %v1586, %v1587
    %v1589 = vsel %vm1147, %v1002, -inf
    %v1590 = vrot.slane %v1589, 4
    %v1591 = vmax.f32 %v1589, %v1590
    %v1592 = vrot.slane %v1591, 2
    %v1593 = vmax.f32 %v1591, %v1592
    %v1594 = vrot.slane %v1593, 1
    %v1595 = vmax.f32 %v1593, %v1594
    %v1596 = vsel %vm1147, %v907, -inf
    %v1597 = vrot.slane %v1596, 4
    %v1598 = vmax.f32 %v1596, %v1597
    %v1599 = vrot.slane %v1598, 2
    %v1600 = vmax.f32 %v1598, %v1599
    %v1601 = vrot.slane %v1600, 1
    %v1602 = vmax.f32 %v1600, %v1601
    %v1603 = vsel %vm1147, %v1003, -inf
    %v1604 = vrot.slane %v1603, 4
    %v1605 = vmax.f32 %v1603, %v1604
    %v1606 = vrot.slane %v1605, 2
    %v1607 = vmax.f32 %v1605, %v1606
    %v1608 = vrot.slane %v1607, 1
    %v1609 = vmax.f32 %v1607, %v1608
    %v1610 = vsel %vm1147, %v1004, -inf
    %v1611 = vrot.slane %v1610, 4
    %v1612 = vmax.f32 %v1610, %v1611
    %v1613 = vrot.slane %v1612, 2
    %v1614 = vmax.f32 %v1612, %v1613
    %v1615 = vrot.slane %v1614, 1
    %v1616 = vmax.f32 %v1614, %v1615
    %v1617 = vsel %vm1147, %v1005, -inf
    %v1618 = vrot.slane %v1617, 4
    %v1619 = vmax.f32 %v1617, %v1618
    %v1620 = vrot.slane %v1619, 2
    %v1621 = vmax.f32 %v1619, %v1620
    %v1622 = vrot.slane %v1621, 1
    %v1623 = vmax.f32 %v1621, %v1622
    %v1624 = vsel %vm1147, %v908, -inf
    %v1625 = vrot.slane %v1624, 4
    %v1626 = vmax.f32 %v1624, %v1625
    %v1627 = vrot.slane %v1626, 2
    %v1628 = vmax.f32 %v1626, %v1627
    %v1629 = vrot.slane %v1628, 1
    %v1630 = vmax.f32 %v1628, %v1629
    %v1631 = vsel %vm1147, %v1006, -inf
    %v1632 = vrot.slane %v1631, 4
    %v1633 = vmax.f32 %v1631, %v1632
    %v1634 = vrot.slane %v1633, 2
    %v1635 = vmax.f32 %v1633, %v1634
    %v1636 = vrot.slane %v1635, 1
    %v1637 = vmax.f32 %v1635, %v1636
    %v1638 = vsel %vm1147, %v1007, -inf
    %v1639 = vrot.slane %v1638, 4
    %v1640 = vmax.f32 %v1638, %v1639
    %v1641 = vrot.slane %v1640, 2
    %v1642 = vmax.f32 %v1640, %v1641
    %v1643 = vrot.slane %v1642, 1
    %v1644 = vmax.f32 %v1642, %v1643
    %v1645 = vsel %vm1147, %v1008, -inf
    %v1646 = vrot.slane %v1645, 4
    %v1647 = vmax.f32 %v1645, %v1646
    %v1648 = vrot.slane %v1647, 2
    %v1649 = vmax.f32 %v1647, %v1648
    %v1650 = vrot.slane %v1649, 1
    %v1651 = vmax.f32 %v1649, %v1650
    %v1652 = vsel %vm1147, %v909, -inf
    %v1653 = vrot.slane %v1652, 4
    %v1654 = vmax.f32 %v1652, %v1653
    %v1655 = vrot.slane %v1654, 2
    %v1656 = vmax.f32 %v1654, %v1655
    %v1657 = vrot.slane %v1656, 1
    %v1658 = vmax.f32 %v1656, %v1657
    %v1659 = vsel %vm1147, %v1009, -inf
    %v1660 = vrot.slane %v1659, 4
    %v1661 = vmax.f32 %v1659, %v1660
    %v1662 = vrot.slane %v1661, 2
    %v1663 = vmax.f32 %v1661, %v1662
    %v1664 = vrot.slane %v1663, 1
    %v1665 = vmax.f32 %v1663, %v1664
    %v1666 = vsel %vm1147, %v1010, -inf
    %v1667 = vrot.slane %v1666, 4
    %v1668 = vmax.f32 %v1666, %v1667
    %v1669 = vrot.slane %v1668, 2
    %v1670 = vmax.f32 %v1668, %v1669
    %v1671 = vrot.slane %v1670, 1
    %v1672 = vmax.f32 %v1670, %v1671
    %v1673 = vsel %vm1147, %v1011, -inf
    %v1674 = vrot.slane %v1673, 4
    %v1675 = vmax.f32 %v1673, %v1674
    %v1676 = vrot.slane %v1675, 2
    %v1677 = vmax.f32 %v1675, %v1676
    %v1678 = vrot.slane %v1677, 1
    %v1679 = vmax.f32 %v1677, %v1678
    %v1680 = vsel %vm1147, %v910, -inf
    %v1681 = vrot.slane %v1680, 4
    %v1682 = vmax.f32 %v1680, %v1681
    %v1683 = vrot.slane %v1682, 2
    %v1684 = vmax.f32 %v1682, %v1683
    %v1685 = vrot.slane %v1684, 1
    %v1686 = vmax.f32 %v1684, %v1685
    %v1687 = vsel %vm1147, %v1012, -inf
    %v1688 = vrot.slane %v1687, 4
    %v1689 = vmax.f32 %v1687, %v1688
    %v1690 = vrot.slane %v1689, 2
    %v1691 = vmax.f32 %v1689, %v1690
    %v1692 = vrot.slane %v1691, 1
    %v1693 = vmax.f32 %v1691, %v1692
    %v1694 = vsel %vm1147, %v1013, -inf
    %v1695 = vrot.slane %v1694, 4
    %v1696 = vmax.f32 %v1694, %v1695
    %v1697 = vrot.slane %v1696, 2
    %v1698 = vmax.f32 %v1696, %v1697
    %v1699 = vrot.slane %v1698, 1
    %v1700 = vmax.f32 %v1698, %v1699
    %v1701 = vsel %vm1147, %v1014, -inf
    %v1702 = vrot.slane %v1701, 4
    %v1703 = vmax.f32 %v1701, %v1702
    %v1704 = vrot.slane %v1703, 2
    %v1705 = vmax.f32 %v1703, %v1704
    %v1706 = vrot.slane %v1705, 1
    %v1707 = vmax.f32 %v1705, %v1706
    %v1708 = vsel %vm1147, %v911, -inf
    %v1709 = vrot.slane %v1708, 4
    %v1710 = vmax.f32 %v1708, %v1709
    %v1711 = vrot.slane %v1710, 2
    %v1712 = vmax.f32 %v1710, %v1711
    %v1713 = vrot.slane %v1712, 1
    %v1714 = vmax.f32 %v1712, %v1713
    %v1715 = vsel %vm1147, %v1015, -inf
    %v1716 = vrot.slane %v1715, 4
    %v1717 = vmax.f32 %v1715, %v1716
    %v1718 = vrot.slane %v1717, 2
    %v1719 = vmax.f32 %v1717, %v1718
    %v1720 = vrot.slane %v1719, 1
    %v1721 = vmax.f32 %v1719, %v1720
    %v1722 = vsel %vm1147, %v1016, -inf
    %v1723 = vrot.slane %v1722, 4
    %v1724 = vmax.f32 %v1722, %v1723
    %v1725 = vrot.slane %v1724, 2
    %v1726 = vmax.f32 %v1724, %v1725
    %v1727 = vrot.slane %v1726, 1
    %v1728 = vmax.f32 %v1726, %v1727
    %v1729 = vsel %vm1147, %v1017, -inf
    %v1730 = vrot.slane %v1729, 4
    %v1731 = vmax.f32 %v1729, %v1730
    %v1732 = vrot.slane %v1731, 2
    %v1733 = vmax.f32 %v1731, %v1732
    %v1734 = vrot.slane %v1733, 1
    %v1735 = vmax.f32 %v1733, %v1734
    %v1736 = vsel %vm1147, %v912, -inf
    %v1737 = vrot.slane %v1736, 4
    %v1738 = vmax.f32 %v1736, %v1737
    %v1739 = vrot.slane %v1738, 2
    %v1740 = vmax.f32 %v1738, %v1739
    %v1741 = vrot.slane %v1740, 1
    %v1742 = vmax.f32 %v1740, %v1741
    %v1743 = vsel %vm1147, %v1018, -inf
    %v1744 = vrot.slane %v1743, 4
    %v1745 = vmax.f32 %v1743, %v1744
    %v1746 = vrot.slane %v1745, 2
    %v1747 = vmax.f32 %v1745, %v1746
    %v1748 = vrot.slane %v1747, 1
    %v1749 = vmax.f32 %v1747, %v1748
    %v1750 = vsel %vm1147, %v1019, -inf
    %v1751 = vrot.slane %v1750, 4
    %v1752 = vmax.f32 %v1750, %v1751
    %v1753 = vrot.slane %v1752, 2
    %v1754 = vmax.f32 %v1752, %v1753
    %v1755 = vrot.slane %v1754, 1
    %v1756 = vmax.f32 %v1754, %v1755
    %v1757 = vsel %vm1147, %v1020, -inf
    %v1758 = vrot.slane %v1757, 4
    %v1759 = vmax.f32 %v1757, %v1758
    %v1760 = vrot.slane %v1759, 2
    %v1761 = vmax.f32 %v1759, %v1760
    %v1762 = vrot.slane %v1761, 1
    %v1763 = vmax.f32 %v1761, %v1762
    %v1764 = vsel %vm1147, %v913, -inf
    %v1765 = vrot.slane %v1764, 4
    %v1766 = vmax.f32 %v1764, %v1765
    %v1767 = vrot.slane %v1766, 2
    %v1768 = vmax.f32 %v1766, %v1767
    %v1769 = vrot.slane %v1768, 1
    %v1770 = vmax.f32 %v1768, %v1769
    %v1771 = vsel %vm1147, %v1021, -inf
    %v1772 = vrot.slane %v1771, 4
    %v1773 = vmax.f32 %v1771, %v1772
    %v1774 = vrot.slane %v1773, 2
    %v1775 = vmax.f32 %v1773, %v1774
    %v1776 = vrot.slane %v1775, 1
    %v1777 = vmax.f32 %v1775, %v1776
    %v1778 = vsel %vm1147, %v1022, -inf
    %v1779 = vrot.slane %v1778, 4
    %v1780 = vmax.f32 %v1778, %v1779
    %v1781 = vrot.slane %v1780, 2
    %v1782 = vmax.f32 %v1780, %v1781
    %v1783 = vrot.slane %v1782, 1
    %v1784 = vmax.f32 %v1782, %v1783
    %v1785 = vsel %vm1147, %v1023, -inf
    %v1786 = vrot.slane %v1785, 4
    %v1787 = vmax.f32 %v1785, %v1786
    %v1788 = vrot.slane %v1787, 2
    %v1789 = vmax.f32 %v1787, %v1788
    %v1790 = vrot.slane %v1789, 1
    %v1791 = vmax.f32 %v1789, %v1790
    %v1792 = vsel %vm1147, %v914, -inf
    %v1793 = vrot.slane %v1792, 4
    %v1794 = vmax.f32 %v1792, %v1793
    %v1795 = vrot.slane %v1794, 2
    %v1796 = vmax.f32 %v1794, %v1795
    %v1797 = vrot.slane %v1796, 1
    %v1798 = vmax.f32 %v1796, %v1797
    %v1799 = vsel %vm1147, %v1024, -inf
    %v1800 = vrot.slane %v1799, 4
    %v1801 = vmax.f32 %v1799, %v1800
    %v1802 = vrot.slane %v1801, 2
    %v1803 = vmax.f32 %v1801, %v1802
    %v1804 = vrot.slane %v1803, 1
    %v1805 = vmax.f32 %v1803, %v1804
    %v1806 = vsel %vm1147, %v1025, -inf
    %v1807 = vrot.slane %v1806, 4
    %v1808 = vmax.f32 %v1806, %v1807
    %v1809 = vrot.slane %v1808, 2
    %v1810 = vmax.f32 %v1808, %v1809
    %v1811 = vrot.slane %v1810, 1
    %v1812 = vmax.f32 %v1810, %v1811
    %v1813 = vsel %vm1147, %v1026, -inf
    %v1814 = vrot.slane %v1813, 4
    %v1815 = vmax.f32 %v1813, %v1814
    %v1816 = vrot.slane %v1815, 2
    %v1817 = vmax.f32 %v1815, %v1816
    %v1818 = vrot.slane %v1817, 1
    %v1819 = vmax.f32 %v1817, %v1818
    %v1820 = vsel %vm1147, %v915, -inf
    %v1821 = vrot.slane %v1820, 4
    %v1822 = vmax.f32 %v1820, %v1821
    %v1823 = vrot.slane %v1822, 2
    %v1824 = vmax.f32 %v1822, %v1823
    %v1825 = vrot.slane %v1824, 1
    %v1826 = vmax.f32 %v1824, %v1825
    %v1827 = vsel %vm1147, %v1027, -inf
    %v1828 = vrot.slane %v1827, 4
    %v1829 = vmax.f32 %v1827, %v1828
    %v1830 = vrot.slane %v1829, 2
    %v1831 = vmax.f32 %v1829, %v1830
    %v1832 = vrot.slane %v1831, 1
    %v1833 = vmax.f32 %v1831, %v1832
    %v1834 = vsel %vm1147, %v1028, -inf
    %v1835 = vrot.slane %v1834, 4
    %v1836 = vmax.f32 %v1834, %v1835
    %v1837 = vrot.slane %v1836, 2
    %v1838 = vmax.f32 %v1836, %v1837
    %v1839 = vrot.slane %v1838, 1
    %v1840 = vmax.f32 %v1838, %v1839
    %v1841 = vsel %vm1147, %v1029, -inf
    %v1842 = vrot.slane %v1841, 4
    %v1843 = vmax.f32 %v1841, %v1842
    %v1844 = vrot.slane %v1843, 2
    %v1845 = vmax.f32 %v1843, %v1844
    %v1846 = vrot.slane %v1845, 1
    %v1847 = vmax.f32 %v1845, %v1846
    %v1848 = vsel %vm1147, %v916, -inf
    %v1849 = vrot.slane %v1848, 4
    %v1850 = vmax.f32 %v1848, %v1849
    %v1851 = vrot.slane %v1850, 2
    %v1852 = vmax.f32 %v1850, %v1851
    %v1853 = vrot.slane %v1852, 1
    %v1854 = vmax.f32 %v1852, %v1853
    %v1855 = vsel %vm1147, %v1030, -inf
    %v1856 = vrot.slane %v1855, 4
    %v1857 = vmax.f32 %v1855, %v1856
    %v1858 = vrot.slane %v1857, 2
    %v1859 = vmax.f32 %v1857, %v1858
    %v1860 = vrot.slane %v1859, 1
    %v1861 = vmax.f32 %v1859, %v1860
    %v1862 = vsel %vm1147, %v1031, -inf
    %v1863 = vrot.slane %v1862, 4
    %v1864 = vmax.f32 %v1862, %v1863
    %v1865 = vrot.slane %v1864, 2
    %v1866 = vmax.f32 %v1864, %v1865
    %v1867 = vrot.slane %v1866, 1
    %v1868 = vmax.f32 %v1866, %v1867
    %v1869 = vsel %vm1147, %v1032, -inf
    %v1870 = vrot.slane %v1869, 4
    %v1871 = vmax.f32 %v1869, %v1870
    %v1872 = vrot.slane %v1871, 2
    %v1873 = vmax.f32 %v1871, %v1872
    %v1874 = vrot.slane %v1873, 1
    %v1875 = vmax.f32 %v1873, %v1874
    %v1876 = vsel %vm1147, %v917, -inf
    %v1877 = vrot.slane %v1876, 4
    %v1878 = vmax.f32 %v1876, %v1877
    %v1879 = vrot.slane %v1878, 2
    %v1880 = vmax.f32 %v1878, %v1879
    %v1881 = vrot.slane %v1880, 1
    %v1882 = vmax.f32 %v1880, %v1881
    %v1883 = vsel %vm1147, %v1033, -inf
    %v1884 = vrot.slane %v1883, 4
    %v1885 = vmax.f32 %v1883, %v1884
    %v1886 = vrot.slane %v1885, 2
    %v1887 = vmax.f32 %v1885, %v1886
    %v1888 = vrot.slane %v1887, 1
    %v1889 = vmax.f32 %v1887, %v1888
    %v1890 = vsel %vm1147, %v1034, -inf
    %v1891 = vrot.slane %v1890, 4
    %v1892 = vmax.f32 %v1890, %v1891
    %v1893 = vrot.slane %v1892, 2
    %v1894 = vmax.f32 %v1892, %v1893
    %v1895 = vrot.slane %v1894, 1
    %v1896 = vmax.f32 %v1894, %v1895
    %v1897 = vsel %vm1147, %v1035, -inf
    %v1898 = vrot.slane %v1897, 4
    %v1899 = vmax.f32 %v1897, %v1898
    %v1900 = vrot.slane %v1899, 2
    %v1901 = vmax.f32 %v1899, %v1900
    %v1902 = vrot.slane %v1901, 1
    %v1903 = vmax.f32 %v1901, %v1902
    %v1904 = vsel %vm1147, %v918, -inf
    %v1905 = vrot.slane %v1904, 4
    %v1906 = vmax.f32 %v1904, %v1905
    %v1907 = vrot.slane %v1906, 2
    %v1908 = vmax.f32 %v1906, %v1907
    %v1909 = vrot.slane %v1908, 1
    %v1910 = vmax.f32 %v1908, %v1909
    %v1911 = vsel %vm1147, %v1036, -inf
    %v1912 = vrot.slane %v1911, 4
    %v1913 = vmax.f32 %v1911, %v1912
    %v1914 = vrot.slane %v1913, 2
    %v1915 = vmax.f32 %v1913, %v1914
    %v1916 = vrot.slane %v1915, 1
    %v1917 = vmax.f32 %v1915, %v1916
    %v1918 = vsel %vm1147, %v1037, -inf
    %v1919 = vrot.slane %v1918, 4
    %v1920 = vmax.f32 %v1918, %v1919
    %v1921 = vrot.slane %v1920, 2
    %v1922 = vmax.f32 %v1920, %v1921
    %v1923 = vrot.slane %v1922, 1
    %v1924 = vmax.f32 %v1922, %v1923
    %v1925 = vsel %vm1147, %v1038, -inf
    %v1926 = vrot.slane %v1925, 4
    %v1927 = vmax.f32 %v1925, %v1926
    %v1928 = vrot.slane %v1927, 2
    %v1929 = vmax.f32 %v1927, %v1928
    %v1930 = vrot.slane %v1929, 1
    %v1931 = vmax.f32 %v1929, %v1930
    %v1932 = vsel %vm1147, %v919, -inf
    %v1933 = vrot.slane %v1932, 4
    %v1934 = vmax.f32 %v1932, %v1933
    %v1935 = vrot.slane %v1934, 2
    %v1936 = vmax.f32 %v1934, %v1935
    %v1937 = vrot.slane %v1936, 1
    %v1938 = vmax.f32 %v1936, %v1937
    %v1939 = vsel %vm1147, %v1039, -inf
    %v1940 = vrot.slane %v1939, 4
    %v1941 = vmax.f32 %v1939, %v1940
    %v1942 = vrot.slane %v1941, 2
    %v1943 = vmax.f32 %v1941, %v1942
    %v1944 = vrot.slane %v1943, 1
    %v1945 = vmax.f32 %v1943, %v1944
    %v1946 = vsel %vm1147, %v1040, -inf
    %v1947 = vrot.slane %v1946, 4
    %v1948 = vmax.f32 %v1946, %v1947
    %v1949 = vrot.slane %v1948, 2
    %v1950 = vmax.f32 %v1948, %v1949
    %v1951 = vrot.slane %v1950, 1
    %v1952 = vmax.f32 %v1950, %v1951
    %v1953 = vsel %vm1147, %v1041, -inf
    %v1954 = vrot.slane %v1953, 4
    %v1955 = vmax.f32 %v1953, %v1954
    %v1956 = vrot.slane %v1955, 2
    %v1957 = vmax.f32 %v1955, %v1956
    %v1958 = vrot.slane %v1957, 1
    %v1959 = vmax.f32 %v1957, %v1958
    %v1960 = vsel %vm1147, %v920, -inf
    %v1961 = vrot.slane %v1960, 4
    %v1962 = vmax.f32 %v1960, %v1961
    %v1963 = vrot.slane %v1962, 2
    %v1964 = vmax.f32 %v1962, %v1963
    %v1965 = vrot.slane %v1964, 1
    %v1966 = vmax.f32 %v1964, %v1965
    %v1967 = vsel %vm1147, %v1042, -inf
    %v1968 = vrot.slane %v1967, 4
    %v1969 = vmax.f32 %v1967, %v1968
    %v1970 = vrot.slane %v1969, 2
    %v1971 = vmax.f32 %v1969, %v1970
    %v1972 = vrot.slane %v1971, 1
    %v1973 = vmax.f32 %v1971, %v1972
    %v1974 = vsel %vm1147, %v1043, -inf
    %v1975 = vrot.slane %v1974, 4
    %v1976 = vmax.f32 %v1974, %v1975
    %v1977 = vrot.slane %v1976, 2
    %v1978 = vmax.f32 %v1976, %v1977
    %v1979 = vrot.slane %v1978, 1
    %v1980 = vmax.f32 %v1978, %v1979
    %v1981 = vsel %vm1147, %v1044, -inf
    %v1982 = vrot.slane %v1981, 4
    %v1983 = vmax.f32 %v1981, %v1982
    %v1984 = vrot.slane %v1983, 2
    %v1985 = vmax.f32 %v1983, %v1984
    %v1986 = vrot.slane %v1985, 1
    %v1987 = vmax.f32 %v1985, %v1986
    %v1988 = vsel %vm1147, %v921, -inf
    %v1989 = vrot.slane %v1988, 4
    %v1990 = vmax.f32 %v1988, %v1989
    %v1991 = vrot.slane %v1990, 2
    %v1992 = vmax.f32 %v1990, %v1991
    %v1993 = vrot.slane %v1992, 1
    %v1994 = vmax.f32 %v1992, %v1993
    %v1995 = vsel %vm1147, %v1045, -inf
    %v1996 = vrot.slane %v1995, 4
    %v1997 = vmax.f32 %v1995, %v1996
    %v1998 = vrot.slane %v1997, 2
    %v1999 = vmax.f32 %v1997, %v1998
    %v2000 = vrot.slane %v1999, 1
    %v2001 = vmax.f32 %v1999, %v2000
    %v2002 = vsel %vm1147, %v1046, -inf
    %v2003 = vrot.slane %v2002, 4
    %v2004 = vmax.f32 %v2002, %v2003
    %v2005 = vrot.slane %v2004, 2
    %v2006 = vmax.f32 %v2004, %v2005
    %v2007 = vrot.slane %v2006, 1
    %v2008 = vmax.f32 %v2006, %v2007
    %v2009 = vsel %vm1147, %v1047, -inf
    %v2010 = vrot.slane %v2009, 4
    %v2011 = vmax.f32 %v2009, %v2010
    %v2012 = vrot.slane %v2011, 2
    %v2013 = vmax.f32 %v2011, %v2012
    %v2014 = vrot.slane %v2013, 1
    %v2015 = vmax.f32 %v2013, %v2014
    %v2016 = vsel %vm1147, %v922, -inf
    %v2017 = vrot.slane %v2016, 4
    %v2018 = vmax.f32 %v2016, %v2017
    %v2019 = vrot.slane %v2018, 2
    %v2020 = vmax.f32 %v2018, %v2019
    %v2021 = vrot.slane %v2020, 1
    %v2022 = vmax.f32 %v2020, %v2021
    %v2023 = vsel %vm1147, %v1048, -inf
    %v2024 = vrot.slane %v2023, 4
    %v2025 = vmax.f32 %v2023, %v2024
    %v2026 = vrot.slane %v2025, 2
    %v2027 = vmax.f32 %v2025, %v2026
    %v2028 = vrot.slane %v2027, 1
    %v2029 = vmax.f32 %v2027, %v2028
    %v2030 = vsel %vm1147, %v1049, -inf
    %v2031 = vrot.slane %v2030, 4
    %v2032 = vmax.f32 %v2030, %v2031
    %v2033 = vrot.slane %v2032, 2
    %v2034 = vmax.f32 %v2032, %v2033
    %v2035 = vrot.slane %v2034, 1
    %v2036 = vmax.f32 %v2034, %v2035
    %v2037 = vsel %vm1147, %v1050, -inf
    %v2038 = vrot.slane %v2037, 4
    %v2039 = vmax.f32 %v2037, %v2038
    %v2040 = vrot.slane %v2039, 2
    %v2041 = vmax.f32 %v2039, %v2040
    %v2042 = vrot.slane %v2041, 1
    %v2043 = vmax.f32 %v2041, %v2042
    %v2044 = vld [vmem:[%s3] sm:$0xff]
    %v2045 = vld [vmem:[%s3 + $0x8] sm:$0xff]
    %v2046 = vld [vmem:[%s3 + $0x10] sm:$0xff]
    %v2047 = vld [vmem:[%s3 + $0x18] sm:$0xff]
    %v2048 = vld [vmem:[%s3 + $0x20] sm:$0xff]
    %v2049 = vld [vmem:[%s3 + $0x28] sm:$0xff]
    %v2050 = vld [vmem:[%s3 + $0x30] sm:$0xff]
    %v2051 = vld [vmem:[%s3 + $0x38] sm:$0xff]
    %v2052 = vld [vmem:[%s3 + $0x40] sm:$0xff]
    %v2053 = vld [vmem:[%s3 + $0x48] sm:$0xff]
    %v2054 = vld [vmem:[%s3 + $0x50] sm:$0xff]
    %v2055 = vld [vmem:[%s3 + $0x58] sm:$0xff]
    %v2056 = vld [vmem:[%s4] sm:$0x1]
    %vm2169 = vcmask 1042434
    %v2170 = vsel %vm2169, %v1161, %v1154
    %vm2171 = vcmask 1043459
    %v2172 = vsel %vm2171, %v1168, %v2170
    %vm2173 = vcmask 1044484
    %v2174 = vsel %vm2173, %v1175, %v2172
    %vm2175 = vcmask 1045509
    %v2176 = vsel %vm2175, %v1182, %v2174
    %vm2177 = vcmask 1046534
    %v2178 = vsel %vm2177, %v1189, %v2176
    %vm2179 = vcmask 1047559
    %v2180 = vsel %vm2179, %v1196, %v2178
    %v2181 = vsel %vm2169, %v1217, %v1210
    %v2182 = vsel %vm2171, %v1224, %v2181
    %v2183 = vsel %vm2173, %v1231, %v2182
    %v2184 = vsel %vm2175, %v1238, %v2183
    %v2185 = vsel %vm2177, %v1245, %v2184
    %v2186 = vsel %vm2179, %v1252, %v2185
    %v2187 = vsel %vm2169, %v1273, %v1266
    %v2188 = vsel %vm2171, %v1280, %v2187
    %v2189 = vsel %vm2173, %v1287, %v2188
    %v2190 = vsel %vm2175, %v1294, %v2189
    %v2191 = vsel %vm2177, %v1301, %v2190
    %v2192 = vsel %vm2179, %v1308, %v2191
    %v2193 = vsel %vm2169, %v1329, %v1322
    %v2194 = vsel %vm2171, %v1336, %v2193
    %v2195 = vsel %vm2173, %v1343, %v2194
    %v2196 = vsel %vm2175, %v1350, %v2195
    %v2197 = vsel %vm2177, %v1357, %v2196
    %v2198 = vsel %vm2179, %v1364, %v2197
    %v2199 = vsel %vm2169, %v1385, %v1378
    %v2200 = vsel %vm2171, %v1392, %v2199
    %v2201 = vsel %vm2173, %v1399, %v2200
    %v2202 = vsel %vm2175, %v1406, %v2201
    %v2203 = vsel %vm2177, %v1413, %v2202
    %v2204 = vsel %vm2179, %v1420, %v2203
    %v2205 = vsel %vm2169, %v1441, %v1434
    %v2206 = vsel %vm2171, %v1448, %v2205
    %v2207 = vsel %vm2173, %v1455, %v2206
    %v2208 = vsel %vm2175, %v1462, %v2207
    %v2209 = vsel %vm2177, %v1469, %v2208
    %v2210 = vsel %vm2179, %v1476, %v2209
    %v2211 = vsel %vm2169, %v1497, %v1490
    %v2212 = vsel %vm2171, %v1504, %v2211
    %v2213 = vsel %vm2173, %v1511, %v2212
    %v2214 = vsel %vm2175, %v1518, %v2213
    %v2215 = vsel %vm2177, %v1525, %v2214
    %v2216 = vsel %vm2179, %v1532, %v2215
    %v2217 = vsel %vm2169, %v1553, %v1546
    %v2218 = vsel %vm2171, %v1560, %v2217
    %v2219 = vsel %vm2173, %v1567, %v2218
    %v2220 = vsel %vm2175, %v1574, %v2219
    %v2221 = vsel %vm2177, %v1581, %v2220
    %v2222 = vsel %vm2179, %v1588, %v2221
    %v2223 = vsel %vm2169, %v1609, %v1602
    %v2224 = vsel %vm2171, %v1616, %v2223
    %v2225 = vsel %vm2173, %v1623, %v2224
    %v2226 = vsel %vm2175, %v1630, %v2225
    %v2227 = vsel %vm2177, %v1637, %v2226
    %v2228 = vsel %vm2179, %v1644, %v2227
    %v2229 = vsel %vm2169, %v1665, %v1658
    %v2230 = vsel %vm2171, %v1672, %v2229
    %v2231 = vsel %vm2173, %v1679, %v2230
    %v2232 = vsel %vm2175, %v1686, %v2231
    %v2233 = vsel %vm2177, %v1693, %v2232
    %v2234 = vsel %vm2179, %v1700, %v2233
    %v2235 = vsel %vm2169, %v1721, %v1714
    %v2236 = vsel %vm2171, %v1728, %v2235
    %v2237 = vsel %vm2173, %v1735, %v2236
    %v2238 = vsel %vm2175, %v1742, %v2237
    %v2239 = vsel %vm2177, %v1749, %v2238
    %v2240 = vsel %vm2179, %v1756, %v2239
    %v2241 = vsel %vm2169, %v1777, %v1770
    %v2242 = vsel %vm2171, %v1784, %v2241
    %v2243 = vsel %vm2173, %v1791, %v2242
    %v2244 = vsel %vm2175, %v1798, %v2243
    %v2245 = vsel %vm2177, %v1805, %v2244
    %v2246 = vsel %vm2179, %v1812, %v2245
    %v2247 = vsel %vm2169, %v1833, %v1826
    %v2248 = vsel %vm2171, %v1840, %v2247
    %v2249 = vsel %vm2173, %v1847, %v2248
    %v2250 = vsel %vm2175, %v1854, %v2249
    %v2251 = vsel %vm2177, %v1861, %v2250
    %v2252 = vsel %vm2179, %v1868, %v2251
    %v2253 = vsel %vm2169, %v1889, %v1882
    %v2254 = vsel %vm2171, %v1896, %v2253
    %v2255 = vsel %vm2173, %v1903, %v2254
    %v2256 = vsel %vm2175, %v1910, %v2255
    %v2257 = vsel %vm2177, %v1917, %v2256
    %v2258 = vsel %vm2179, %v1924, %v2257
    %v2259 = vsel %vm2169, %v1945, %v1938
    %v2260 = vsel %vm2171, %v1952, %v2259
    %v2261 = vsel %vm2173, %v1959, %v2260
    %v2262 = vsel %vm2175, %v1966, %v2261
    %v2263 = vsel %vm2177, %v1973, %v2262
    %v2264 = vsel %vm2179, %v1980, %v2263
    %v2265 = vsel %vm2169, %v2001, %v1994
    %v2266 = vsel %vm2171, %v2008, %v2265
    %v2267 = vsel %vm2173, %v2015, %v2266
    %v2268 = vsel %vm2175, %v2022, %v2267
    %v2269 = vsel %vm2177, %v2029, %v2268
    %v2270 = vsel %vm2179, %v2036, %v2269
    %v2287 = vsel %vm103, 0.0, %v2180
    %v2288 = vsel %vm103, 0.0, %v2186
    %v2289 = vsel %vm103, 0.0, %v2192
    %v2290 = vsel %vm103, 0.0, %v2198
    %v2291 = vsel %vm103, 0.0, %v2204
    %v2292 = vsel %vm103, 0.0, %v2210
    %v2293 = vsel %vm103, 0.0, %v2216
    %v2294 = vsel %vm103, 0.0, %v2222
    %v2295 = vsel %vm103, 0.0, %v2228
    %v2296 = vsel %vm103, 0.0, %v2234
    %v2297 = vsel %vm103, 0.0, %v2240
    %v2298 = vsel %vm103, 0.0, %v2246
    %v2299 = vsel %vm103, 0.0, %v2252
    %v2300 = vsel %vm103, 0.0, %v2258
    %v2301 = vsel %vm103, 0.0, %v2264
    %v2302 = vsel %vm103, 0.0, %v2270
    %vm2319 = vcmask 1041409
    %v2320 = vsel %vm2319, %v1168, %v1161
    %v2321 = vsel %vm2169, %v1175, %v2320
    %v2322 = vsel %vm2171, %v1182, %v2321
    %v2323 = vsel %vm2173, %v1189, %v2322
    %v2324 = vsel %vm2175, %v1196, %v2323
    %v2325 = vsel %vm2177, %v1203, %v2324
    %v2326 = vsel %vm2319, %v1224, %v1217
    %v2327 = vsel %vm2169, %v1231, %v2326
    %v2328 = vsel %vm2171, %v1238, %v2327
    %v2329 = vsel %vm2173, %v1245, %v2328
    %v2330 = vsel %vm2175, %v1252, %v2329
    %v2331 = vsel %vm2177, %v1259, %v2330
    %v2332 = vsel %vm2319, %v1280, %v1273
    %v2333 = vsel %vm2169, %v1287, %v2332
    %v2334 = vsel %vm2171, %v1294, %v2333
    %v2335 = vsel %vm2173, %v1301, %v2334
    %v2336 = vsel %vm2175, %v1308, %v2335
    %v2337 = vsel %vm2177, %v1315, %v2336
    %v2338 = vsel %vm2319, %v1336, %v1329
    %v2339 = vsel %vm2169, %v1343, %v2338
    %v2340 = vsel %vm2171, %v1350, %v2339
    %v2341 = vsel %vm2173, %v1357, %v2340
    %v2342 = vsel %vm2175, %v1364, %v2341
    %v2343 = vsel %vm2177, %v1371, %v2342
    %v2344 = vsel %vm2319, %v1392, %v1385
    %v2345 = vsel %vm2169, %v1399, %v2344
    %v2346 = vsel %vm2171, %v1406, %v2345
    %v2347 = vsel %vm2173, %v1413, %v2346
    %v2348 = vsel %vm2175, %v1420, %v2347
    %v2349 = vsel %vm2177, %v1427, %v2348
    %v2350 = vsel %vm2319, %v1448, %v1441
    %v2351 = vsel %vm2169, %v1455, %v2350
    %v2352 = vsel %vm2171, %v1462, %v2351
    %v2353 = vsel %vm2173, %v1469, %v2352
    %v2354 = vsel %vm2175, %v1476, %v2353
    %v2355 = vsel %vm2177, %v1483, %v2354
    %v2356 = vsel %vm2319, %v1504, %v1497
    %v2357 = vsel %vm2169, %v1511, %v2356
    %v2358 = vsel %vm2171, %v1518, %v2357
    %v2359 = vsel %vm2173, %v1525, %v2358
    %v2360 = vsel %vm2175, %v1532, %v2359
    %v2361 = vsel %vm2177, %v1539, %v2360
    %v2362 = vsel %vm2319, %v1560, %v1553
    %v2363 = vsel %vm2169, %v1567, %v2362
    %v2364 = vsel %vm2171, %v1574, %v2363
    %v2365 = vsel %vm2173, %v1581, %v2364
    %v2366 = vsel %vm2175, %v1588, %v2365
    %v2367 = vsel %vm2177, %v1595, %v2366
    %v2368 = vsel %vm2319, %v1616, %v1609
    %v2369 = vsel %vm2169, %v1623, %v2368
    %v2370 = vsel %vm2171, %v1630, %v2369
    %v2371 = vsel %vm2173, %v1637, %v2370
    %v2372 = vsel %vm2175, %v1644, %v2371
    %v2373 = vsel %vm2177, %v1651, %v2372
    %v2374 = vsel %vm2319, %v1672, %v1665
    %v2375 = vsel %vm2169, %v1679, %v2374
    %v2376 = vsel %vm2171, %v1686, %v2375
    %v2377 = vsel %vm2173, %v1693, %v2376
    %v2378 = vsel %vm2175, %v1700, %v2377
    %v2379 = vsel %vm2177, %v1707, %v2378
    %v2380 = vsel %vm2319, %v1728, %v1721
    %v2381 = vsel %vm2169, %v1735, %v2380
    %v2382 = vsel %vm2171, %v1742, %v2381
    %v2383 = vsel %vm2173, %v1749, %v2382
    %v2384 = vsel %vm2175, %v1756, %v2383
    %v2385 = vsel %vm2177, %v1763, %v2384
    %v2386 = vsel %vm2319, %v1784, %v1777
    %v2387 = vsel %vm2169, %v1791, %v2386
    %v2388 = vsel %vm2171, %v1798, %v2387
    %v2389 = vsel %vm2173, %v1805, %v2388
    %v2390 = vsel %vm2175, %v1812, %v2389
    %v2391 = vsel %vm2177, %v1819, %v2390
    %v2392 = vsel %vm2319, %v1840, %v1833
    %v2393 = vsel %vm2169, %v1847, %v2392
    %v2394 = vsel %vm2171, %v1854, %v2393
    %v2395 = vsel %vm2173, %v1861, %v2394
    %v2396 = vsel %vm2175, %v1868, %v2395
    %v2397 = vsel %vm2177, %v1875, %v2396
    %v2398 = vsel %vm2319, %v1896, %v1889
    %v2399 = vsel %vm2169, %v1903, %v2398
    %v2400 = vsel %vm2171, %v1910, %v2399
    %v2401 = vsel %vm2173, %v1917, %v2400
    %v2402 = vsel %vm2175, %v1924, %v2401
    %v2403 = vsel %vm2177, %v1931, %v2402
    %v2404 = vsel %vm2319, %v1952, %v1945
    %v2405 = vsel %vm2169, %v1959, %v2404
    %v2406 = vsel %vm2171, %v1966, %v2405
    %v2407 = vsel %vm2173, %v1973, %v2406
    %v2408 = vsel %vm2175, %v1980, %v2407
    %v2409 = vsel %vm2177, %v1987, %v2408
    %v2410 = vsel %vm2319, %v2008, %v2001
    %v2411 = vsel %vm2169, %v2015, %v2410
    %v2412 = vsel %vm2171, %v2022, %v2411
    %v2413 = vsel %vm2173, %v2029, %v2412
    %v2414 = vsel %vm2175, %v2036, %v2413
    %v2415 = vsel %vm2177, %v2043, %v2414
    %v2432 = vsel %vm184, %v2325, 0.0
    %v2433 = vsel %vm184, %v2331, 0.0
    %v2434 = vsel %vm184, %v2337, 0.0
    %v2435 = vsel %vm184, %v2343, 0.0
    %v2436 = vsel %vm184, %v2349, 0.0
    %v2437 = vsel %vm184, %v2355, 0.0
    %v2438 = vsel %vm184, %v2361, 0.0
    %v2439 = vsel %vm184, %v2367, 0.0
    %v2440 = vsel %vm184, %v2373, 0.0
    %v2441 = vsel %vm184, %v2379, 0.0
    %v2442 = vsel %vm184, %v2385, 0.0
    %v2443 = vsel %vm184, %v2391, 0.0
    %v2444 = vsel %vm184, %v2397, 0.0
    %v2445 = vsel %vm184, %v2403, 0.0
    %v2446 = vsel %vm184, %v2409, 0.0
    %v2447 = vsel %vm184, %v2415, 0.0
    %v2448 = vsel %vm2319, %v1161, %v1154
    %v2449 = vsel %vm2169, %v1168, %v2448
    %v2450 = vsel %vm2171, %v1175, %v2449
    %v2451 = vsel %vm2173, %v1182, %v2450
    %v2452 = vsel %vm2175, %v1189, %v2451
    %v2453 = vsel %vm2177, %v1196, %v2452
    %v2454 = vsel %vm2179, %v1203, %v2453
    %v2455 = vsel %vm2319, %v1217, %v1210
    %v2456 = vsel %vm2169, %v1224, %v2455
    %v2457 = vsel %vm2171, %v1231, %v2456
    %v2458 = vsel %vm2173, %v1238, %v2457
    %v2459 = vsel %vm2175, %v1245, %v2458
    %v2460 = vsel %vm2177, %v1252, %v2459
    %v2461 = vsel %vm2179, %v1259, %v2460
    %v2462 = vsel %vm2319, %v1273, %v1266
    %v2463 = vsel %vm2169, %v1280, %v2462
    %v2464 = vsel %vm2171, %v1287, %v2463
    %v2465 = vsel %vm2173, %v1294, %v2464
    %v2466 = vsel %vm2175, %v1301, %v2465
    %v2467 = vsel %vm2177, %v1308, %v2466
    %v2468 = vsel %vm2179, %v1315, %v2467
    %v2469 = vsel %vm2319, %v1329, %v1322
    %v2470 = vsel %vm2169, %v1336, %v2469
    %v2471 = vsel %vm2171, %v1343, %v2470
    %v2472 = vsel %vm2173, %v1350, %v2471
    %v2473 = vsel %vm2175, %v1357, %v2472
    %v2474 = vsel %vm2177, %v1364, %v2473
    %v2475 = vsel %vm2179, %v1371, %v2474
    %v2476 = vsel %vm2319, %v1385, %v1378
    %v2477 = vsel %vm2169, %v1392, %v2476
    %v2478 = vsel %vm2171, %v1399, %v2477
    %v2479 = vsel %vm2173, %v1406, %v2478
    %v2480 = vsel %vm2175, %v1413, %v2479
    %v2481 = vsel %vm2177, %v1420, %v2480
    %v2482 = vsel %vm2179, %v1427, %v2481
    %v2483 = vsel %vm2319, %v1441, %v1434
    %v2484 = vsel %vm2169, %v1448, %v2483
    %v2485 = vsel %vm2171, %v1455, %v2484
    %v2486 = vsel %vm2173, %v1462, %v2485
    %v2487 = vsel %vm2175, %v1469, %v2486
    %v2488 = vsel %vm2177, %v1476, %v2487
    %v2489 = vsel %vm2179, %v1483, %v2488
    %v2490 = vsel %vm2319, %v1497, %v1490
    %v2491 = vsel %vm2169, %v1504, %v2490
    %v2492 = vsel %vm2171, %v1511, %v2491
    %v2493 = vsel %vm2173, %v1518, %v2492
    %v2494 = vsel %vm2175, %v1525, %v2493
    %v2495 = vsel %vm2177, %v1532, %v2494
    %v2496 = vsel %vm2179, %v1539, %v2495
    %v2497 = vsel %vm2319, %v1553, %v1546
    %v2498 = vsel %vm2169, %v1560, %v2497
    %v2499 = vsel %vm2171, %v1567, %v2498
    %v2500 = vsel %vm2173, %v1574, %v2499
    %v2501 = vsel %vm2175, %v1581, %v2500
    %v2502 = vsel %vm2177, %v1588, %v2501
    %v2503 = vsel %vm2179, %v1595, %v2502
    %v2504 = vsel %vm2319, %v1609, %v1602
    %v2505 = vsel %vm2169, %v1616, %v2504
    %v2506 = vsel %vm2171, %v1623, %v2505
    %v2507 = vsel %vm2173, %v1630, %v2506
    %v2508 = vsel %vm2175, %v1637, %v2507
    %v2509 = vsel %vm2177, %v1644, %v2508
    %v2510 = vsel %vm2179, %v1651, %v2509
    %v2511 = vsel %vm2319, %v1665, %v1658
    %v2512 = vsel %vm2169, %v1672, %v2511
    %v2513 = vsel %vm2171, %v1679, %v2512
    %v2514 = vsel %vm2173, %v1686, %v2513
    %v2515 = vsel %vm2175, %v1693, %v2514
    %v2516 = vsel %vm2177, %v1700, %v2515
    %v2517 = vsel %vm2179, %v1707, %v2516
    %v2518 = vsel %vm2319, %v1721, %v1714
    %v2519 = vsel %vm2169, %v1728, %v2518
    %v2520 = vsel %vm2171, %v1735, %v2519
    %v2521 = vsel %vm2173, %v1742, %v2520
    %v2522 = vsel %vm2175, %v1749, %v2521
    %v2523 = vsel %vm2177, %v1756, %v2522
    %v2524 = vsel %vm2179, %v1763, %v2523
    %v2525 = vsel %vm2319, %v1777, %v1770
    %v2526 = vsel %vm2169, %v1784, %v2525
    %v2527 = vsel %vm2171, %v1791, %v2526
    %v2528 = vsel %vm2173, %v1798, %v2527
    %v2529 = vsel %vm2175, %v1805, %v2528
    %v2530 = vsel %vm2177, %v1812, %v2529
    %v2531 = vsel %vm2179, %v1819, %v2530
    %v2532 = vsel %vm2319, %v1833, %v1826
    %v2533 = vsel %vm2169, %v1840, %v2532
    %v2534 = vsel %vm2171, %v1847, %v2533
    %v2535 = vsel %vm2173, %v1854, %v2534
    %v2536 = vsel %vm2175, %v1861, %v2535
    %v2537 = vsel %vm2177, %v1868, %v2536
    %v2538 = vsel %vm2179, %v1875, %v2537
    %v2539 = vsel %vm2319, %v1889, %v1882
    %v2540 = vsel %vm2169, %v1896, %v2539
    %v2541 = vsel %vm2171, %v1903, %v2540
    %v2542 = vsel %vm2173, %v1910, %v2541
    %v2543 = vsel %vm2175, %v1917, %v2542
    %v2544 = vsel %vm2177, %v1924, %v2543
    %v2545 = vsel %vm2179, %v1931, %v2544
    %v2546 = vsel %vm2319, %v1945, %v1938
    %v2547 = vsel %vm2169, %v1952, %v2546
    %v2548 = vsel %vm2171, %v1959, %v2547
    %v2549 = vsel %vm2173, %v1966, %v2548
    %v2550 = vsel %vm2175, %v1973, %v2549
    %v2551 = vsel %vm2177, %v1980, %v2550
    %v2552 = vsel %vm2179, %v1987, %v2551
    %v2553 = vsel %vm2319, %v2001, %v1994
    %v2554 = vsel %vm2169, %v2008, %v2553
    %v2555 = vsel %vm2171, %v2015, %v2554
    %v2556 = vsel %vm2173, %v2022, %v2555
    %v2557 = vsel %vm2175, %v2029, %v2556
    %v2558 = vsel %vm2177, %v2036, %v2557
    %v2559 = vsel %vm2179, %v2043, %v2558
    %2560 = vrot.lane.b32.xlu0 %v2454, 32
    %v2561 = vpop.permute.xlu0 %2560
    %2562 = vrot.lane.b32.xlu0 %v2461, 32
    %v2563 = vpop.permute.xlu0 %2562
    %2564 = vrot.lane.b32.xlu0 %v2468, 32
    %v2565 = vpop.permute.xlu0 %2564
    %2566 = vrot.lane.b32.xlu0 %v2475, 32
    %v2567 = vpop.permute.xlu0 %2566
    %2568 = vrot.lane.b32.xlu0 %v2482, 32
    %v2569 = vpop.permute.xlu0 %2568
    %2570 = vrot.lane.b32.xlu0 %v2489, 32
    %v2571 = vpop.permute.xlu0 %2570
    %2572 = vrot.lane.b32.xlu0 %v2496, 32
    %v2573 = vpop.permute.xlu0 %2572
    %2574 = vrot.lane.b32.xlu0 %v2503, 32
    %v2575 = vpop.permute.xlu0 %2574
    %2576 = vrot.lane.b32.xlu0 %v2510, 32
    %v2577 = vpop.permute.xlu0 %2576
    %2578 = vrot.lane.b32.xlu0 %v2517, 32
    %v2579 = vpop.permute.xlu0 %2578
    %2580 = vrot.lane.b32.xlu0 %v2524, 32
    %v2581 = vpop.permute.xlu0 %2580
    %2582 = vrot.lane.b32.xlu0 %v2531, 32
    %v2583 = vpop.permute.xlu0 %2582
    %2584 = vrot.lane.b32.xlu0 %v2538, 32
    %v2585 = vpop.permute.xlu0 %2584
    %2586 = vrot.lane.b32.xlu0 %v2545, 32
    %v2587 = vpop.permute.xlu0 %2586
    %2588 = vrot.lane.b32.xlu0 %v2552, 32
    %v2589 = vpop.permute.xlu0 %2588
    %2590 = vrot.lane.b32.xlu0 %v2559, 32
    %v2591 = vpop.permute.xlu0 %2590
    %2624 = vrot.lane.b32.xlu0 %v2432, 64
    %v2625 = vpop.permute.xlu0 %2624
    %2626 = vrot.lane.b32.xlu0 %v2433, 64
    %v2627 = vpop.permute.xlu0 %2626
    %2628 = vrot.lane.b32.xlu0 %v2434, 64
    %v2629 = vpop.permute.xlu0 %2628
    %2630 = vrot.lane.b32.xlu0 %v2435, 64
    %v2631 = vpop.permute.xlu0 %2630
    %2632 = vrot.lane.b32.xlu0 %v2436, 64
    %v2633 = vpop.permute.xlu0 %2632
    %2634 = vrot.lane.b32.xlu0 %v2437, 64
    %v2635 = vpop.permute.xlu0 %2634
    %2636 = vrot.lane.b32.xlu0 %v2438, 64
    %v2637 = vpop.permute.xlu0 %2636
    %2638 = vrot.lane.b32.xlu0 %v2439, 64
    %v2639 = vpop.permute.xlu0 %2638
    %2640 = vrot.lane.b32.xlu0 %v2440, 64
    %v2641 = vpop.permute.xlu0 %2640
    %2642 = vrot.lane.b32.xlu0 %v2441, 64
    %v2643 = vpop.permute.xlu0 %2642
    %2644 = vrot.lane.b32.xlu0 %v2442, 64
    %v2645 = vpop.permute.xlu0 %2644
    %2646 = vrot.lane.b32.xlu0 %v2443, 64
    %v2647 = vpop.permute.xlu0 %2646
    %2648 = vrot.lane.b32.xlu0 %v2444, 64
    %v2649 = vpop.permute.xlu0 %2648
    %2650 = vrot.lane.b32.xlu0 %v2445, 64
    %v2651 = vpop.permute.xlu0 %2650
    %2652 = vrot.lane.b32.xlu0 %v2446, 64
    %v2653 = vpop.permute.xlu0 %2652
    %2654 = vrot.lane.b32.xlu0 %v2447, 64
    %v2655 = vpop.permute.xlu0 %2654
    %vm2672 = vcmask 261120
    %v2673 = vsel %vm2672, %v2287, %v2561
    %v2674 = vsel %vm2672, %v2288, %v2563
    %v2675 = vsel %vm2672, %v2289, %v2565
    %v2676 = vsel %vm2672, %v2290, %v2567
    %v2677 = vsel %vm2672, %v2291, %v2569
    %v2678 = vsel %vm2672, %v2292, %v2571
    %v2679 = vsel %vm2672, %v2293, %v2573
    %v2680 = vsel %vm2672, %v2294, %v2575
    %v2681 = vsel %vm2672, %v2295, %v2577
    %v2682 = vsel %vm2672, %v2296, %v2579
    %v2683 = vsel %vm2672, %v2297, %v2581
    %v2684 = vsel %vm2672, %v2298, %v2583
    %v2685 = vsel %vm2672, %v2299, %v2585
    %v2686 = vsel %vm2672, %v2300, %v2587
    %v2687 = vsel %vm2672, %v2301, %v2589
    %v2688 = vsel %vm2672, %v2302, %v2591
    %vm2689 = vcmask 523264
    %v2690 = vsel %vm2689, %v2673, %v2625
    %v2691 = vsel %vm2689, %v2674, %v2627
    %v2692 = vsel %vm2689, %v2675, %v2629
    %v2693 = vsel %vm2689, %v2676, %v2631
    %v2694 = vsel %vm2689, %v2677, %v2633
    %v2695 = vsel %vm2689, %v2678, %v2635
    %v2696 = vsel %vm2689, %v2679, %v2637
    %v2697 = vsel %vm2689, %v2680, %v2639
    %v2698 = vsel %vm2689, %v2681, %v2641
    %v2699 = vsel %vm2689, %v2682, %v2643
    %v2700 = vsel %vm2689, %v2683, %v2645
    %v2701 = vsel %vm2689, %v2684, %v2647
    %v2702 = vsel %vm2689, %v2685, %v2649
    %v2703 = vsel %vm2689, %v2686, %v2651
    %v2704 = vsel %vm2689, %v2687, %v2653
    %v2705 = vsel %vm2689, %v2688, %v2655
    %v2707 = vperm.slane %v2056, 0
    %vm2709 = vcmask 785408
    %v2711 = vsel %vm2709, %v2690, 0
    %v2714 = vsel %vm2709, %v2691, 0
    %v2717 = vsel %vm2709, %v2692, 0
    %v2720 = vsel %vm2709, %v2693, 0
    %v2723 = vsel %vm2709, %v2694, 0
    %v2726 = vsel %vm2709, %v2695, 0
    %v2729 = vsel %vm2709, %v2696, 0
    %v2732 = vsel %vm2709, %v2697, 0
    %v2735 = vsel %vm2709, %v2698, 0
    %v2738 = vsel %vm2709, %v2699, 0
    %v2741 = vsel %vm2709, %v2700, 0
    %v2744 = vsel %vm2709, %v2701, 0
    %v2747 = vsel %vm2709, %v2702, 0
    %v2750 = vsel %vm2709, %v2703, 0
    %v2753 = vsel %vm2709, %v2704, 0
    %v2756 = vsel %vm2709, %v2705, 0
    %2758 = vmatpush.msra.mxu0 0.0
    %2759 = vmatpush.msra.mxu0 0.0
    %2760 = vmatpush.msra.mxu0 0.0
    %2761 = vmatpush.msra.mxu0 0.0
    %2762 = vmatpush.msra.mxu0 %v2055
    %2763 = vmatpush.msra.mxu0 %v2054
    %2764 = vmatpush.msra.mxu0 %v2053
    %2765 = vmatpush.msra.mxu0 %v2052
    %2766 = vmatpush.msra.mxu0 %v2051
    %2767 = vmatpush.msra.mxu0 %v2050
    %2768 = vmatpush.msra.mxu0 %v2049
    %2769 = vmatpush.msra.mxu0 %v2048
    %2770 = vmatpush.msra.mxu0 %v2047
    %2771 = vmatpush.msra.mxu0 %v2046
    %2772 = vmatpush.msra.mxu0 %v2045
    %2773 = vmatpush.msra.mxu0 %v2044
    %2774 = vmatmul.f32.gmra.mxu0 %v2711
    %v2775 = vpop.f32.mrf.mxu0
    %v2776 = vadd.f32 %v2707, %v2775
    %2777 = vmatmul.f32.gmra.mxu0 %v2714
    %v2778 = vpop.f32.mrf.mxu0
    %v2779 = vadd.f32 %v2707, %v2778
    %2780 = vmatmul.f32.gmra.mxu0 %v2717
    %v2781 = vpop.f32.mrf.mxu0
    %v2782 = vadd.f32 %v2707, %v2781
    %2783 = vmatmul.f32.gmra.mxu0 %v2720
    %v2784 = vpop.f32.mrf.mxu0
    %v2785 = vadd.f32 %v2707, %v2784
    %2786 = vmatmul.f32.gmra.mxu0 %v2723
    %v2787 = vpop.f32.mrf.mxu0
    %v2788 = vadd.f32 %v2707, %v2787
    %2789 = vmatmul.f32.gmra.mxu0 %v2726
    %v2790 = vpop.f32.mrf.mxu0
    %v2791 = vadd.f32 %v2707, %v2790
    %2792 = vmatmul.f32.gmra.mxu0 %v2729
    %v2793 = vpop.f32.mrf.mxu0
    %v2794 = vadd.f32 %v2707, %v2793
    %2795 = vmatmul.f32.gmra.mxu0 %v2732
    %v2796 = vpop.f32.mrf.mxu0
    %v2797 = vadd.f32 %v2707, %v2796
    %2798 = vmatmul.f32.gmra.mxu0 %v2735
    %v2799 = vpop.f32.mrf.mxu0
    %v2800 = vadd.f32 %v2707, %v2799
    %2801 = vmatmul.f32.gmra.mxu0 %v2738
    %v2802 = vpop.f32.mrf.mxu0
    %v2803 = vadd.f32 %v2707, %v2802
    %2804 = vmatmul.f32.gmra.mxu0 %v2741
    %v2805 = vpop.f32.mrf.mxu0
    %v2806 = vadd.f32 %v2707, %v2805
    %2807 = vmatmul.f32.gmra.mxu0 %v2744
    %v2808 = vpop.f32.mrf.mxu0
    %v2809 = vadd.f32 %v2707, %v2808
    %2810 = vmatmul.f32.gmra.mxu0 %v2747
    %v2811 = vpop.f32.mrf.mxu0
    %v2812 = vadd.f32 %v2707, %v2811
    %2813 = vmatmul.f32.gmra.mxu0 %v2750
    %v2814 = vpop.f32.mrf.mxu0
    %v2815 = vadd.f32 %v2707, %v2814
    %2816 = vmatmul.f32.gmra.mxu0 %v2753
    %v2817 = vpop.f32.mrf.mxu0
    %v2818 = vadd.f32 %v2707, %v2817
    %2819 = vmatmul.f32.gmra.mxu0 %v2756
    %v2820 = vpop.f32.mrf.mxu0
    %v2821 = vadd.f32 %v2707, %v2820
    %2822 = vdwg.mxu0
    %v2823 = vmax.f32 %v2776, 0.0
    %v2824 = vmax.f32 %v2779, 0.0
    %v2825 = vmax.f32 %v2782, 0.0
    %v2826 = vmax.f32 %v2785, 0.0
    %v2827 = vmax.f32 %v2788, 0.0
    %v2828 = vmax.f32 %v2791, 0.0
    %v2829 = vmax.f32 %v2794, 0.0
    %v2830 = vmax.f32 %v2797, 0.0
    %v2831 = vmax.f32 %v2800, 0.0
    %v2832 = vmax.f32 %v2803, 0.0
    %v2833 = vmax.f32 %v2806, 0.0
    %v2834 = vmax.f32 %v2809, 0.0
    %v2835 = vmax.f32 %v2812, 0.0
    %v2836 = vmax.f32 %v2815, 0.0
    %v2837 = vmax.f32 %v2818, 0.0
    %v2838 = vmax.f32 %v2821, 0.0
    %v2855 = vrot.slane %v2823, 2
    %v2856 = vrot.slane %v2823, 4
    %v2857 = vrot.slane %v2823, 6
    %v2858 = vrot.slane %v2824, 2
    %v2859 = vrot.slane %v2824, 4
    %v2860 = vrot.slane %v2824, 6
    %v2861 = vrot.slane %v2825, 2
    %v2862 = vrot.slane %v2825, 4
    %v2863 = vrot.slane %v2825, 6
    %v2864 = vrot.slane %v2826, 2
    %v2865 = vrot.slane %v2826, 4
    %v2866 = vrot.slane %v2826, 6
    %v2867 = vrot.slane %v2827, 2
    %v2868 = vrot.slane %v2827, 4
    %v2869 = vrot.slane %v2827, 6
    %v2870 = vrot.slane %v2828, 2
    %v2871 = vrot.slane %v2828, 4
    %v2872 = vrot.slane %v2828, 6
    %v2873 = vrot.slane %v2829, 2
    %v2874 = vrot.slane %v2829, 4
    %v2875 = vrot.slane %v2829, 6
    %v2876 = vrot.slane %v2830, 2
    %v2877 = vrot.slane %v2830, 4
    %v2878 = vrot.slane %v2830, 6
    %v2879 = vrot.slane %v2831, 2
    %v2880 = vrot.slane %v2831, 4
    %v2881 = vrot.slane %v2831, 6
    %v2882 = vrot.slane %v2832, 2
    %v2883 = vrot.slane %v2832, 4
    %v2884 = vrot.slane %v2832, 6
    %v2885 = vrot.slane %v2833, 2
    %v2886 = vrot.slane %v2833, 4
    %v2887 = vrot.slane %v2833, 6
    %v2888 = vrot.slane %v2834, 2
    %v2889 = vrot.slane %v2834, 4
    %v2890 = vrot.slane %v2834, 6
    %v2891 = vrot.slane %v2835, 2
    %v2892 = vrot.slane %v2835, 4
    %v2893 = vrot.slane %v2835, 6
    %v2894 = vrot.slane %v2836, 2
    %v2895 = vrot.slane %v2836, 4
    %v2896 = vrot.slane %v2836, 6
    %v2897 = vrot.slane %v2837, 2
    %v2898 = vrot.slane %v2837, 4
    %v2899 = vrot.slane %v2837, 6
    %v2900 = vrot.slane %v2838, 2
    %v2901 = vrot.slane %v2838, 4
    %v2902 = vrot.slane %v2838, 6
    %vm2951 = vcmask 517120
    %v2952 = vsel %vm2951, %v2823, -inf
    %v2953 = vrot.slane %v2952, 4
    %v2954 = vmax.f32 %v2952, %v2953
    %v2955 = vrot.slane %v2954, 2
    %v2956 = vmax.f32 %v2954, %v2955
    %v2957 = vrot.slane %v2956, 1
    %v2958 = vmax.f32 %v2956, %v2957
    %v2959 = vsel %vm2951, %v2855, -inf
    %v2960 = vrot.slane %v2959, 4
    %v2961 = vmax.f32 %v2959, %v2960
    %v2962 = vrot.slane %v2961, 2
    %v2963 = vmax.f32 %v2961, %v2962
    %v2964 = vrot.slane %v2963, 1
    %v2965 = vmax.f32 %v2963, %v2964
    %v2966 = vsel %vm2951, %v2856, -inf
    %v2967 = vrot.slane %v2966, 4
    %v2968 = vmax.f32 %v2966, %v2967
    %v2969 = vrot.slane %v2968, 2
    %v2970 = vmax.f32 %v2968, %v2969
    %v2971 = vrot.slane %v2970, 1
    %v2972 = vmax.f32 %v2970, %v2971
    %v2973 = vsel %vm2951, %v2857, -inf
    %v2974 = vrot.slane %v2973, 4
    %v2975 = vmax.f32 %v2973, %v2974
    %v2976 = vrot.slane %v2975, 2
    %v2977 = vmax.f32 %v2975, %v2976
    %v2978 = vrot.slane %v2977, 1
    %v2979 = vmax.f32 %v2977, %v2978
    %v2980 = vsel %vm2951, %v2824, -inf
    %v2981 = vrot.slane %v2980, 4
    %v2982 = vmax.f32 %v2980, %v2981
    %v2983 = vrot.slane %v2982, 2
    %v2984 = vmax.f32 %v2982, %v2983
    %v2985 = vrot.slane %v2984, 1
    %v2986 = vmax.f32 %v2984, %v2985
    %v2987 = vsel %vm2951, %v2858, -inf
    %v2988 = vrot.slane %v2987, 4
    %v2989 = vmax.f32 %v2987, %v2988
    %v2990 = vrot.slane %v2989, 2
    %v2991 = vmax.f32 %v2989, %v2990
    %v2992 = vrot.slane %v2991, 1
    %v2993 = vmax.f32 %v2991, %v2992
    %v2994 = vsel %vm2951, %v2859, -inf
    %v2995 = vrot.slane %v2994, 4
    %v2996 = vmax.f32 %v2994, %v2995
    %v2997 = vrot.slane %v2996, 2
    %v2998 = vmax.f32 %v2996, %v2997
    %v2999 = vrot.slane %v2998, 1
    %v3000 = vmax.f32 %v2998, %v2999
    %v3001 = vsel %vm2951, %v2860, -inf
    %v3002 = vrot.slane %v3001, 4
    %v3003 = vmax.f32 %v3001, %v3002
    %v3004 = vrot.slane %v3003, 2
    %v3005 = vmax.f32 %v3003, %v3004
    %v3006 = vrot.slane %v3005, 1
    %v3007 = vmax.f32 %v3005, %v3006
    %v3008 = vsel %vm2951, %v2825, -inf
    %v3009 = vrot.slane %v3008, 4
    %v3010 = vmax.f32 %v3008, %v3009
    %v3011 = vrot.slane %v3010, 2
    %v3012 = vmax.f32 %v3010, %v3011
    %v3013 = vrot.slane %v3012, 1
    %v3014 = vmax.f32 %v3012, %v3013
    %v3015 = vsel %vm2951, %v2861, -inf
    %v3016 = vrot.slane %v3015, 4
    %v3017 = vmax.f32 %v3015, %v3016
    %v3018 = vrot.slane %v3017, 2
    %v3019 = vmax.f32 %v3017, %v3018
    %v3020 = vrot.slane %v3019, 1
    %v3021 = vmax.f32 %v3019, %v3020
    %v3022 = vsel %vm2951, %v2862, -inf
    %v3023 = vrot.slane %v3022, 4
    %v3024 = vmax.f32 %v3022, %v3023
    %v3025 = vrot.slane %v3024, 2
    %v3026 = vmax.f32 %v3024, %v3025
    %v3027 = vrot.slane %v3026, 1
    %v3028 = vmax.f32 %v3026, %v3027
    %v3029 = vsel %vm2951, %v2863, -inf
    %v3030 = vrot.slane %v3029, 4
    %v3031 = vmax.f32 %v3029, %v3030
    %v3032 = vrot.slane %v3031, 2
    %v3033 = vmax.f32 %v3031, %v3032
    %v3034 = vrot.slane %v3033, 1
    %v3035 = vmax.f32 %v3033, %v3034
    %v3036 = vsel %vm2951, %v2826, -inf
    %v3037 = vrot.slane %v3036, 4
    %v3038 = vmax.f32 %v3036, %v3037
    %v3039 = vrot.slane %v3038, 2
    %v3040 = vmax.f32 %v3038, %v3039
    %v3041 = vrot.slane %v3040, 1
    %v3042 = vmax.f32 %v3040, %v3041
    %v3043 = vsel %vm2951, %v2864, -inf
    %v3044 = vrot.slane %v3043, 4
    %v3045 = vmax.f32 %v3043, %v3044
    %v3046 = vrot.slane %v3045, 2
    %v3047 = vmax.f32 %v3045, %v3046
    %v3048 = vrot.slane %v3047, 1
    %v3049 = vmax.f32 %v3047, %v3048
    %v3050 = vsel %vm2951, %v2865, -inf
    %v3051 = vrot.slane %v3050, 4
    %v3052 = vmax.f32 %v3050, %v3051
    %v3053 = vrot.slane %v3052, 2
    %v3054 = vmax.f32 %v3052, %v3053
    %v3055 = vrot.slane %v3054, 1
    %v3056 = vmax.f32 %v3054, %v3055
    %v3057 = vsel %vm2951, %v2866, -inf
    %v3058 = vrot.slane %v3057, 4
    %v3059 = vmax.f32 %v3057, %v3058
    %v3060 = vrot.slane %v3059, 2
    %v3061 = vmax.f32 %v3059, %v3060
    %v3062 = vrot.slane %v3061, 1
    %v3063 = vmax.f32 %v3061, %v3062
    %v3064 = vsel %vm2951, %v2827, -inf
    %v3065 = vrot.slane %v3064, 4
    %v3066 = vmax.f32 %v3064, %v3065
    %v3067 = vrot.slane %v3066, 2
    %v3068 = vmax.f32 %v3066, %v3067
    %v3069 = vrot.slane %v3068, 1
    %v3070 = vmax.f32 %v3068, %v3069
    %v3071 = vsel %vm2951, %v2867, -inf
    %v3072 = vrot.slane %v3071, 4
    %v3073 = vmax.f32 %v3071, %v3072
    %v3074 = vrot.slane %v3073, 2
    %v3075 = vmax.f32 %v3073, %v3074
    %v3076 = vrot.slane %v3075, 1
    %v3077 = vmax.f32 %v3075, %v3076
    %v3078 = vsel %vm2951, %v2868, -inf
    %v3079 = vrot.slane %v3078, 4
    %v3080 = vmax.f32 %v3078, %v3079
    %v3081 = vrot.slane %v3080, 2
    %v3082 = vmax.f32 %v3080, %v3081
    %v3083 = vrot.slane %v3082, 1
    %v3084 = vmax.f32 %v3082, %v3083
    %v3085 = vsel %vm2951, %v2869, -inf
    %v3086 = vrot.slane %v3085, 4
    %v3087 = vmax.f32 %v3085, %v3086
    %v3088 = vrot.slane %v3087, 2
    %v3089 = vmax.f32 %v3087, %v3088
    %v3090 = vrot.slane %v3089, 1
    %v3091 = vmax.f32 %v3089, %v3090
    %v3092 = vsel %vm2951, %v2828, -inf
    %v3093 = vrot.slane %v3092, 4
    %v3094 = vmax.f32 %v3092, %v3093
    %v3095 = vrot.slane %v3094, 2
    %v3096 = vmax.f32 %v3094, %v3095
    %v3097 = vrot.slane %v3096, 1
    %v3098 = vmax.f32 %v3096, %v3097
    %v3099 = vsel %vm2951, %v2870, -inf
    %v3100 = vrot.slane %v3099, 4
    %v3101 = vmax.f32 %v3099, %v3100
    %v3102 = vrot.slane %v3101, 2
    %v3103 = vmax.f32 %v3101, %v3102
    %v3104 = vrot.slane %v3103, 1
    %v3105 = vmax.f32 %v3103, %v3104
    %v3106 = vsel %vm2951, %v2871, -inf
    %v3107 = vrot.slane %v3106, 4
    %v3108 = vmax.f32 %v3106, %v3107
    %v3109 = vrot.slane %v3108, 2
    %v3110 = vmax.f32 %v3108, %v3109
    %v3111 = vrot.slane %v3110, 1
    %v3112 = vmax.f32 %v3110, %v3111
    %v3113 = vsel %vm2951, %v2872, -inf
    %v3114 = vrot.slane %v3113, 4
    %v3115 = vmax.f32 %v3113, %v3114
    %v3116 = vrot.slane %v3115, 2
    %v3117 = vmax.f32 %v3115, %v3116
    %v3118 = vrot.slane %v3117, 1
    %v3119 = vmax.f32 %v3117, %v3118
    %v3120 = vsel %vm2951, %v2829, -inf
    %v3121 = vrot.slane %v3120, 4
    %v3122 = vmax.f32 %v3120, %v3121
    %v3123 = vrot.slane %v3122, 2
    %v3124 = vmax.f32 %v3122, %v3123
    %v3125 = vrot.slane %v3124, 1
    %v3126 = vmax.f32 %v3124, %v3125
    %v3127 = vsel %vm2951, %v2873, -inf
    %v3128 = vrot.slane %v3127, 4
    %v3129 = vmax.f32 %v3127, %v3128
    %v3130 = vrot.slane %v3129, 2
    %v3131 = vmax.f32 %v3129, %v3130
    %v3132 = vrot.slane %v3131, 1
    %v3133 = vmax.f32 %v3131, %v3132
    %v3134 = vsel %vm2951, %v2874, -inf
    %v3135 = vrot.slane %v3134, 4
    %v3136 = vmax.f32 %v3134, %v3135
    %v3137 = vrot.slane %v3136, 2
    %v3138 = vmax.f32 %v3136, %v3137
    %v3139 = vrot.slane %v3138, 1
    %v3140 = vmax.f32 %v3138, %v3139
    %v3141 = vsel %vm2951, %v2875, -inf
    %v3142 = vrot.slane %v3141, 4
    %v3143 = vmax.f32 %v3141, %v3142
    %v3144 = vrot.slane %v3143, 2
    %v3145 = vmax.f32 %v3143, %v3144
    %v3146 = vrot.slane %v3145, 1
    %v3147 = vmax.f32 %v3145, %v3146
    %v3148 = vsel %vm2951, %v2830, -inf
    %v3149 = vrot.slane %v3148, 4
    %v3150 = vmax.f32 %v3148, %v3149
    %v3151 = vrot.slane %v3150, 2
    %v3152 = vmax.f32 %v3150, %v3151
    %v3153 = vrot.slane %v3152, 1
    %v3154 = vmax.f32 %v3152, %v3153
    %v3155 = vsel %vm2951, %v2876, -inf
    %v3156 = vrot.slane %v3155, 4
    %v3157 = vmax.f32 %v3155, %v3156
    %v3158 = vrot.slane %v3157, 2
    %v3159 = vmax.f32 %v3157, %v3158
    %v3160 = vrot.slane %v3159, 1
    %v3161 = vmax.f32 %v3159, %v3160
    %v3162 = vsel %vm2951, %v2877, -inf
    %v3163 = vrot.slane %v3162, 4
    %v3164 = vmax.f32 %v3162, %v3163
    %v3165 = vrot.slane %v3164, 2
    %v3166 = vmax.f32 %v3164, %v3165
    %v3167 = vrot.slane %v3166, 1
    %v3168 = vmax.f32 %v3166, %v3167
    %v3169 = vsel %vm2951, %v2878, -inf
    %v3170 = vrot.slane %v3169, 4
    %v3171 = vmax.f32 %v3169, %v3170
    %v3172 = vrot.slane %v3171, 2
    %v3173 = vmax.f32 %v3171, %v3172
    %v3174 = vrot.slane %v3173, 1
    %v3175 = vmax.f32 %v3173, %v3174
    %v3176 = vsel %vm2951, %v2831, -inf
    %v3177 = vrot.slane %v3176, 4
    %v3178 = vmax.f32 %v3176, %v3177
    %v3179 = vrot.slane %v3178, 2
    %v3180 = vmax.f32 %v3178, %v3179
    %v3181 = vrot.slane %v3180, 1
    %v3182 = vmax.f32 %v3180, %v3181
    %v3183 = vsel %vm2951, %v2879, -inf
    %v3184 = vrot.slane %v3183, 4
    %v3185 = vmax.f32 %v3183, %v3184
    %v3186 = vrot.slane %v3185, 2
    %v3187 = vmax.f32 %v3185, %v3186
    %v3188 = vrot.slane %v3187, 1
    %v3189 = vmax.f32 %v3187, %v3188
    %v3190 = vsel %vm2951, %v2880, -inf
    %v3191 = vrot.slane %v3190, 4
    %v3192 = vmax.f32 %v3190, %v3191
    %v3193 = vrot.slane %v3192, 2
    %v3194 = vmax.f32 %v3192, %v3193
    %v3195 = vrot.slane %v3194, 1
    %v3196 = vmax.f32 %v3194, %v3195
    %v3197 = vsel %vm2951, %v2881, -inf
    %v3198 = vrot.slane %v3197, 4
    %v3199 = vmax.f32 %v3197, %v3198
    %v3200 = vrot.slane %v3199, 2
    %v3201 = vmax.f32 %v3199, %v3200
    %v3202 = vrot.slane %v3201, 1
    %v3203 = vmax.f32 %v3201, %v3202
    %v3204 = vsel %vm2951, %v2832, -inf
    %v3205 = vrot.slane %v3204, 4
    %v3206 = vmax.f32 %v3204, %v3205
    %v3207 = vrot.slane %v3206, 2
    %v3208 = vmax.f32 %v3206, %v3207
    %v3209 = vrot.slane %v3208, 1
    %v3210 = vmax.f32 %v3208, %v3209
    %v3211 = vsel %vm2951, %v2882, -inf
    %v3212 = vrot.slane %v3211, 4
    %v3213 = vmax.f32 %v3211, %v3212
    %v3214 = vrot.slane %v3213, 2
    %v3215 = vmax.f32 %v3213, %v3214
    %v3216 = vrot.slane %v3215, 1
    %v3217 = vmax.f32 %v3215, %v3216
    %v3218 = vsel %vm2951, %v2883, -inf
    %v3219 = vrot.slane %v3218, 4
    %v3220 = vmax.f32 %v3218, %v3219
    %v3221 = vrot.slane %v3220, 2
    %v3222 = vmax.f32 %v3220, %v3221
    %v3223 = vrot.slane %v3222, 1
    %v3224 = vmax.f32 %v3222, %v3223
    %v3225 = vsel %vm2951, %v2884, -inf
    %v3226 = vrot.slane %v3225, 4
    %v3227 = vmax.f32 %v3225, %v3226
    %v3228 = vrot.slane %v3227, 2
    %v3229 = vmax.f32 %v3227, %v3228
    %v3230 = vrot.slane %v3229, 1
    %v3231 = vmax.f32 %v3229, %v3230
    %v3232 = vsel %vm2951, %v2833, -inf
    %v3233 = vrot.slane %v3232, 4
    %v3234 = vmax.f32 %v3232, %v3233
    %v3235 = vrot.slane %v3234, 2
    %v3236 = vmax.f32 %v3234, %v3235
    %v3237 = vrot.slane %v3236, 1
    %v3238 = vmax.f32 %v3236, %v3237
    %v3239 = vsel %vm2951, %v2885, -inf
    %v3240 = vrot.slane %v3239, 4
    %v3241 = vmax.f32 %v3239, %v3240
    %v3242 = vrot.slane %v3241, 2
    %v3243 = vmax.f32 %v3241, %v3242
    %v3244 = vrot.slane %v3243, 1
    %v3245 = vmax.f32 %v3243, %v3244
    %v3246 = vsel %vm2951, %v2886, -inf
    %v3247 = vrot.slane %v3246, 4
    %v3248 = vmax.f32 %v3246, %v3247
    %v3249 = vrot.slane %v3248, 2
    %v3250 = vmax.f32 %v3248, %v3249
    %v3251 = vrot.slane %v3250, 1
    %v3252 = vmax.f32 %v3250, %v3251
    %v3253 = vsel %vm2951, %v2887, -inf
    %v3254 = vrot.slane %v3253, 4
    %v3255 = vmax.f32 %v3253, %v3254
    %v3256 = vrot.slane %v3255, 2
    %v3257 = vmax.f32 %v3255, %v3256
    %v3258 = vrot.slane %v3257, 1
    %v3259 = vmax.f32 %v3257, %v3258
    %v3260 = vsel %vm2951, %v2834, -inf
    %v3261 = vrot.slane %v3260, 4
    %v3262 = vmax.f32 %v3260, %v3261
    %v3263 = vrot.slane %v3262, 2
    %v3264 = vmax.f32 %v3262, %v3263
    %v3265 = vrot.slane %v3264, 1
    %v3266 = vmax.f32 %v3264, %v3265
    %v3267 = vsel %vm2951, %v2888, -inf
    %v3268 = vrot.slane %v3267, 4
    %v3269 = vmax.f32 %v3267, %v3268
    %v3270 = vrot.slane %v3269, 2
    %v3271 = vmax.f32 %v3269, %v3270
    %v3272 = vrot.slane %v3271, 1
    %v3273 = vmax.f32 %v3271, %v3272
    %v3274 = vsel %vm2951, %v2889, -inf
    %v3275 = vrot.slane %v3274, 4
    %v3276 = vmax.f32 %v3274, %v3275
    %v3277 = vrot.slane %v3276, 2
    %v3278 = vmax.f32 %v3276, %v3277
    %v3279 = vrot.slane %v3278, 1
    %v3280 = vmax.f32 %v3278, %v3279
    %v3281 = vsel %vm2951, %v2890, -inf
    %v3282 = vrot.slane %v3281, 4
    %v3283 = vmax.f32 %v3281, %v3282
    %v3284 = vrot.slane %v3283, 2
    %v3285 = vmax.f32 %v3283, %v3284
    %v3286 = vrot.slane %v3285, 1
    %v3287 = vmax.f32 %v3285, %v3286
    %v3288 = vsel %vm2951, %v2835, -inf
    %v3289 = vrot.slane %v3288, 4
    %v3290 = vmax.f32 %v3288, %v3289
    %v3291 = vrot.slane %v3290, 2
    %v3292 = vmax.f32 %v3290, %v3291
    %v3293 = vrot.slane %v3292, 1
    %v3294 = vmax.f32 %v3292, %v3293
    %v3295 = vsel %vm2951, %v2891, -inf
    %v3296 = vrot.slane %v3295, 4
    %v3297 = vmax.f32 %v3295, %v3296
    %v3298 = vrot.slane %v3297, 2
    %v3299 = vmax.f32 %v3297, %v3298
    %v3300 = vrot.slane %v3299, 1
    %v3301 = vmax.f32 %v3299, %v3300
    %v3302 = vsel %vm2951, %v2892, -inf
    %v3303 = vrot.slane %v3302, 4
    %v3304 = vmax.f32 %v3302, %v3303
    %v3305 = vrot.slane %v3304, 2
    %v3306 = vmax.f32 %v3304, %v3305
    %v3307 = vrot.slane %v3306, 1
    %v3308 = vmax.f32 %v3306, %v3307
    %v3309 = vsel %vm2951, %v2893, -inf
    %v3310 = vrot.slane %v3309, 4
    %v3311 = vmax.f32 %v3309, %v3310
    %v3312 = vrot.slane %v3311, 2
    %v3313 = vmax.f32 %v3311, %v3312
    %v3314 = vrot.slane %v3313, 1
    %v3315 = vmax.f32 %v3313, %v3314
    %v3316 = vsel %vm2951, %v2836, -inf
    %v3317 = vrot.slane %v3316, 4
    %v3318 = vmax.f32 %v3316, %v3317
    %v3319 = vrot.slane %v3318, 2
    %v3320 = vmax.f32 %v3318, %v3319
    %v3321 = vrot.slane %v3320, 1
    %v3322 = vmax.f32 %v3320, %v3321
    %v3323 = vsel %vm2951, %v2894, -inf
    %v3324 = vrot.slane %v3323, 4
    %v3325 = vmax.f32 %v3323, %v3324
    %v3326 = vrot.slane %v3325, 2
    %v3327 = vmax.f32 %v3325, %v3326
    %v3328 = vrot.slane %v3327, 1
    %v3329 = vmax.f32 %v3327, %v3328
    %v3330 = vsel %vm2951, %v2895, -inf
    %v3331 = vrot.slane %v3330, 4
    %v3332 = vmax.f32 %v3330, %v3331
    %v3333 = vrot.slane %v3332, 2
    %v3334 = vmax.f32 %v3332, %v3333
    %v3335 = vrot.slane %v3334, 1
    %v3336 = vmax.f32 %v3334, %v3335
    %v3337 = vsel %vm2951, %v2896, -inf
    %v3338 = vrot.slane %v3337, 4
    %v3339 = vmax.f32 %v3337, %v3338
    %v3340 = vrot.slane %v3339, 2
    %v3341 = vmax.f32 %v3339, %v3340
    %v3342 = vrot.slane %v3341, 1
    %v3343 = vmax.f32 %v3341, %v3342
    %v3344 = vsel %vm2951, %v2837, -inf
    %v3345 = vrot.slane %v3344, 4
    %v3346 = vmax.f32 %v3344, %v3345
    %v3347 = vrot.slane %v3346, 2
    %v3348 = vmax.f32 %v3346, %v3347
    %v3349 = vrot.slane %v3348, 1
    %v3350 = vmax.f32 %v3348, %v3349
    %v3351 = vsel %vm2951, %v2897, -inf
    %v3352 = vrot.slane %v3351, 4
    %v3353 = vmax.f32 %v3351, %v3352
    %v3354 = vrot.slane %v3353, 2
    %v3355 = vmax.f32 %v3353, %v3354
    %v3356 = vrot.slane %v3355, 1
    %v3357 = vmax.f32 %v3355, %v3356
    %v3358 = vsel %vm2951, %v2898, -inf
    %v3359 = vrot.slane %v3358, 4
    %v3360 = vmax.f32 %v3358, %v3359
    %v3361 = vrot.slane %v3360, 2
    %v3362 = vmax.f32 %v3360, %v3361
    %v3363 = vrot.slane %v3362, 1
    %v3364 = vmax.f32 %v3362, %v3363
    %v3365 = vsel %vm2951, %v2899, -inf
    %v3366 = vrot.slane %v3365, 4
    %v3367 = vmax.f32 %v3365, %v3366
    %v3368 = vrot.slane %v3367, 2
    %v3369 = vmax.f32 %v3367, %v3368
    %v3370 = vrot.slane %v3369, 1
    %v3371 = vmax.f32 %v3369, %v3370
    %v3372 = vsel %vm2951, %v2838, -inf
    %v3373 = vrot.slane %v3372, 4
    %v3374 = vmax.f32 %v3372, %v3373
    %v3375 = vrot.slane %v3374, 2
    %v3376 = vmax.f32 %v3374, %v3375
    %v3377 = vrot.slane %v3376, 1
    %v3378 = vmax.f32 %v3376, %v3377
    %v3379 = vsel %vm2951, %v2900, -inf
    %v3380 = vrot.slane %v3379, 4
    %v3381 = vmax.f32 %v3379, %v3380
    %v3382 = vrot.slane %v3381, 2
    %v3383 = vmax.f32 %v3381, %v3382
    %v3384 = vrot.slane %v3383, 1
    %v3385 = vmax.f32 %v3383, %v3384
    %v3386 = vsel %vm2951, %v2901, -inf
    %v3387 = vrot.slane %v3386, 4
    %v3388 = vmax.f32 %v3386, %v3387
    %v3389 = vrot.slane %v3388, 2
    %v3390 = vmax.f32 %v3388, %v3389
    %v3391 = vrot.slane %v3390, 1
    %v3392 = vmax.f32 %v3390, %v3391
    %v3393 = vsel %vm2951, %v2902, -inf
    %v3394 = vrot.slane %v3393, 4
    %v3395 = vmax.f32 %v3393, %v3394
    %v3396 = vrot.slane %v3395, 2
    %v3397 = vmax.f32 %v3395, %v3396
    %v3398 = vrot.slane %v3397, 1
    %v3399 = vmax.f32 %v3397, %v3398
    %v3400 = vld [vmem:[%s5] sm:$0xff]
    %v3401 = vld [vmem:[%s5 + $0x8] sm:$0xff]
    %v3402 = vld [vmem:[%s5 + $0x10] sm:$0xff]
    %v3403 = vld [vmem:[%s5 + $0x18] sm:$0xff]
    %v3404 = vld [vmem:[%s5 + $0x20] sm:$0xff]
    %v3405 = vld [vmem:[%s5 + $0x28] sm:$0xff]
    %v3406 = vld [vmem:[%s5 + $0x30] sm:$0xff]
    %v3407 = vld [vmem:[%s5 + $0x38] sm:$0xff]
    %v3408 = vld [vmem:[%s5 + $0x40] sm:$0xff]
    %v3409 = vld [vmem:[%s5 + $0x48] sm:$0xff]
    %v3410 = vld [vmem:[%s5 + $0x50] sm:$0xff]
    %v3411 = vld [vmem:[%s5 + $0x58] sm:$0xff]
    %v3412 = vld [vmem:[%s5 + $0x60] sm:$0xff]
    %v3413 = vld [vmem:[%s5 + $0x68] sm:$0xff]
    %v3414 = vld [vmem:[%s5 + $0x70] sm:$0xff]
    %v3415 = vld [vmem:[%s5 + $0x78] sm:$0xff]
    %v3416 = vld [vmem:[%s5 + $0x80] sm:$0xff]
    %v3417 = vld [vmem:[%s5 + $0x88] sm:$0xff]
    %v3418 = vld [vmem:[%s5 + $0x90] sm:$0xff]
    %v3419 = vld [vmem:[%s5 + $0x98] sm:$0xff]
    %v3420 = vld [vmem:[%s5 + $0xa0] sm:$0xff]
    %v3421 = vld [vmem:[%s5 + $0xa8] sm:$0xff]
    %v3422 = vld [vmem:[%s5 + $0xb0] sm:$0xff]
    %v3423 = vld [vmem:[%s5 + $0xb8] sm:$0xff]
    %v3424 = vld [vmem:[%s6] sm:$0x1]
    %v3473 = vsel %vm2169, %v2965, %v2958
    %v3474 = vsel %vm2171, %v2972, %v3473
    %v3475 = vsel %vm2169, %v2993, %v2986
    %v3476 = vsel %vm2171, %v3000, %v3475
    %v3477 = vsel %vm2169, %v3021, %v3014
    %v3478 = vsel %vm2171, %v3028, %v3477
    %v3479 = vsel %vm2169, %v3049, %v3042
    %v3480 = vsel %vm2171, %v3056, %v3479
    %v3481 = vsel %vm2169, %v3077, %v3070
    %v3482 = vsel %vm2171, %v3084, %v3481
    %v3483 = vsel %vm2169, %v3105, %v3098
    %v3484 = vsel %vm2171, %v3112, %v3483
    %v3485 = vsel %vm2169, %v3133, %v3126
    %v3486 = vsel %vm2171, %v3140, %v3485
    %v3487 = vsel %vm2169, %v3161, %v3154
    %v3488 = vsel %vm2171, %v3168, %v3487
    %v3489 = vsel %vm2169, %v3189, %v3182
    %v3490 = vsel %vm2171, %v3196, %v3489
    %v3491 = vsel %vm2169, %v3217, %v3210
    %v3492 = vsel %vm2171, %v3224, %v3491
    %v3493 = vsel %vm2169, %v3245, %v3238
    %v3494 = vsel %vm2171, %v3252, %v3493
    %v3495 = vsel %vm2169, %v3273, %v3266
    %v3496 = vsel %vm2171, %v3280, %v3495
    %v3497 = vsel %vm2169, %v3301, %v3294
    %v3498 = vsel %vm2171, %v3308, %v3497
    %v3499 = vsel %vm2169, %v3329, %v3322
    %v3500 = vsel %vm2171, %v3336, %v3499
    %v3501 = vsel %vm2169, %v3357, %v3350
    %v3502 = vsel %vm2171, %v3364, %v3501
    %v3503 = vsel %vm2169, %v3385, %v3378
    %v3504 = vsel %vm2171, %v3392, %v3503
    %v3521 = vsel %vm103, 0.0, %v3474
    %v3522 = vsel %vm103, 0.0, %v3476
    %v3523 = vsel %vm103, 0.0, %v3478
    %v3524 = vsel %vm103, 0.0, %v3480
    %v3525 = vsel %vm103, 0.0, %v3482
    %v3526 = vsel %vm103, 0.0, %v3484
    %v3527 = vsel %vm103, 0.0, %v3486
    %v3528 = vsel %vm103, 0.0, %v3488
    %v3529 = vsel %vm103, 0.0, %v3490
    %v3530 = vsel %vm103, 0.0, %v3492
    %v3531 = vsel %vm103, 0.0, %v3494
    %v3532 = vsel %vm103, 0.0, %v3496
    %v3533 = vsel %vm103, 0.0, %v3498
    %v3534 = vsel %vm103, 0.0, %v3500
    %v3535 = vsel %vm103, 0.0, %v3502
    %v3536 = vsel %vm103, 0.0, %v3504
    %v3553 = vsel %vm2319, %v2972, %v2965
    %v3554 = vsel %vm2169, %v2979, %v3553
    %v3555 = vsel %vm2319, %v3000, %v2993
    %v3556 = vsel %vm2169, %v3007, %v3555
    %v3557 = vsel %vm2319, %v3028, %v3021
    %v3558 = vsel %vm2169, %v3035, %v3557
    %v3559 = vsel %vm2319, %v3056, %v3049
    %v3560 = vsel %vm2169, %v3063, %v3559
    %v3561 = vsel %vm2319, %v3084, %v3077
    %v3562 = vsel %vm2169, %v3091, %v3561
    %v3563 = vsel %vm2319, %v3112, %v3105
    %v3564 = vsel %vm2169, %v3119, %v3563
    %v3565 = vsel %vm2319, %v3140, %v3133
    %v3566 = vsel %vm2169, %v3147, %v3565
    %v3567 = vsel %vm2319, %v3168, %v3161
    %v3568 = vsel %vm2169, %v3175, %v3567
    %v3569 = vsel %vm2319, %v3196, %v3189
    %v3570 = vsel %vm2169, %v3203, %v3569
    %v3571 = vsel %vm2319, %v3224, %v3217
    %v3572 = vsel %vm2169, %v3231, %v3571
    %v3573 = vsel %vm2319, %v3252, %v3245
    %v3574 = vsel %vm2169, %v3259, %v3573
    %v3575 = vsel %vm2319, %v3280, %v3273
    %v3576 = vsel %vm2169, %v3287, %v3575
    %v3577 = vsel %vm2319, %v3308, %v3301
    %v3578 = vsel %vm2169, %v3315, %v3577
    %v3579 = vsel %vm2319, %v3336, %v3329
    %v3580 = vsel %vm2169, %v3343, %v3579
    %v3581 = vsel %vm2319, %v3364, %v3357
    %v3582 = vsel %vm2169, %v3371, %v3581
    %v3583 = vsel %vm2319, %v3392, %v3385
    %v3584 = vsel %vm2169, %v3399, %v3583
    %vm3601 = vcmask 1042432
    %v3602 = vsel %vm3601, %v3554, 0.0
    %v3603 = vsel %vm3601, %v3556, 0.0
    %v3604 = vsel %vm3601, %v3558, 0.0
    %v3605 = vsel %vm3601, %v3560, 0.0
    %v3606 = vsel %vm3601, %v3562, 0.0
    %v3607 = vsel %vm3601, %v3564, 0.0
    %v3608 = vsel %vm3601, %v3566, 0.0
    %v3609 = vsel %vm3601, %v3568, 0.0
    %v3610 = vsel %vm3601, %v3570, 0.0
    %v3611 = vsel %vm3601, %v3572, 0.0
    %v3612 = vsel %vm3601, %v3574, 0.0
    %v3613 = vsel %vm3601, %v3576, 0.0
    %v3614 = vsel %vm3601, %v3578, 0.0
    %v3615 = vsel %vm3601, %v3580, 0.0
    %v3616 = vsel %vm3601, %v3582, 0.0
    %v3617 = vsel %vm3601, %v3584, 0.0
    %v3618 = vsel %vm2319, %v2965, %v2958
    %v3619 = vsel %vm2169, %v2972, %v3618
    %v3620 = vsel %vm2171, %v2979, %v3619
    %v3621 = vsel %vm2319, %v2993, %v2986
    %v3622 = vsel %vm2169, %v3000, %v3621
    %v3623 = vsel %vm2171, %v3007, %v3622
    %v3624 = vsel %vm2319, %v3021, %v3014
    %v3625 = vsel %vm2169, %v3028, %v3624
    %v3626 = vsel %vm2171, %v3035, %v3625
    %v3627 = vsel %vm2319, %v3049, %v3042
    %v3628 = vsel %vm2169, %v3056, %v3627
    %v3629 = vsel %vm2171, %v3063, %v3628
    %v3630 = vsel %vm2319, %v3077, %v3070
    %v3631 = vsel %vm2169, %v3084, %v3630
    %v3632 = vsel %vm2171, %v3091, %v3631
    %v3633 = vsel %vm2319, %v3105, %v3098
    %v3634 = vsel %vm2169, %v3112, %v3633
    %v3635 = vsel %vm2171, %v3119, %v3634
    %v3636 = vsel %vm2319, %v3133, %v3126
    %v3637 = vsel %vm2169, %v3140, %v3636
    %v3638 = vsel %vm2171, %v3147, %v3637
    %v3639 = vsel %vm2319, %v3161, %v3154
    %v3640 = vsel %vm2169, %v3168, %v3639
    %v3641 = vsel %vm2171, %v3175, %v3640
    %v3642 = vsel %vm2319, %v3189, %v3182
    %v3643 = vsel %vm2169, %v3196, %v3642
    %v3644 = vsel %vm2171, %v3203, %v3643
    %v3645 = vsel %vm2319, %v3217, %v3210
    %v3646 = vsel %vm2169, %v3224, %v3645
    %v3647 = vsel %vm2171, %v3231, %v3646
    %v3648 = vsel %vm2319, %v3245, %v3238
    %v3649 = vsel %vm2169, %v3252, %v3648
    %v3650 = vsel %vm2171, %v3259, %v3649
    %v3651 = vsel %vm2319, %v3273, %v3266
    %v3652 = vsel %vm2169, %v3280, %v3651
    %v3653 = vsel %vm2171, %v3287, %v3652
    %v3654 = vsel %vm2319, %v3301, %v3294
    %v3655 = vsel %vm2169, %v3308, %v3654
    %v3656 = vsel %vm2171, %v3315, %v3655
    %v3657 = vsel %vm2319, %v3329, %v3322
    %v3658 = vsel %vm2169, %v3336, %v3657
    %v3659 = vsel %vm2171, %v3343, %v3658
    %v3660 = vsel %vm2319, %v3357, %v3350
    %v3661 = vsel %vm2169, %v3364, %v3660
    %v3662 = vsel %vm2171, %v3371, %v3661
    %v3663 = vsel %vm2319, %v3385, %v3378
    %v3664 = vsel %vm2169, %v3392, %v3663
    %v3665 = vsel %vm2171, %v3399, %v3664
    %3666 = vrot.lane.b32.xlu0 %v3620, 64
    %v3667 = vpop.permute.xlu0 %3666
    %3668 = vrot.lane.b32.xlu0 %v3623, 64
    %v3669 = vpop.permute.xlu0 %3668
    %3670 = vrot.lane.b32.xlu0 %v3626, 64
    %v3671 = vpop.permute.xlu0 %3670
    %3672 = vrot.lane.b32.xlu0 %v3629, 64
    %v3673 = vpop.permute.xlu0 %3672
    %3674 = vrot.lane.b32.xlu0 %v3632, 64
    %v3675 = vpop.permute.xlu0 %3674
    %3676 = vrot.lane.b32.xlu0 %v3635, 64
    %v3677 = vpop.permute.xlu0 %3676
    %3678 = vrot.lane.b32.xlu0 %v3638, 64
    %v3679 = vpop.permute.xlu0 %3678
    %3680 = vrot.lane.b32.xlu0 %v3641, 64
    %v3681 = vpop.permute.xlu0 %3680
    %3682 = vrot.lane.b32.xlu0 %v3644, 64
    %v3683 = vpop.permute.xlu0 %3682
    %3684 = vrot.lane.b32.xlu0 %v3647, 64
    %v3685 = vpop.permute.xlu0 %3684
    %3686 = vrot.lane.b32.xlu0 %v3650, 64
    %v3687 = vpop.permute.xlu0 %3686
    %3688 = vrot.lane.b32.xlu0 %v3653, 64
    %v3689 = vpop.permute.xlu0 %3688
    %3690 = vrot.lane.b32.xlu0 %v3656, 64
    %v3691 = vpop.permute.xlu0 %3690
    %3692 = vrot.lane.b32.xlu0 %v3659, 64
    %v3693 = vpop.permute.xlu0 %3692
    %3694 = vrot.lane.b32.xlu0 %v3662, 64
    %v3695 = vpop.permute.xlu0 %3694
    %3696 = vrot.lane.b32.xlu0 %v3665, 64
    %v3697 = vpop.permute.xlu0 %3696
    %v3714 = vsel %vm2689, %v3521, %v3667
    %v3715 = vsel %vm2689, %v3522, %v3669
    %v3716 = vsel %vm2689, %v3523, %v3671
    %v3717 = vsel %vm2689, %v3524, %v3673
    %v3718 = vsel %vm2689, %v3525, %v3675
    %v3719 = vsel %vm2689, %v3526, %v3677
    %v3720 = vsel %vm2689, %v3527, %v3679
    %v3721 = vsel %vm2689, %v3528, %v3681
    %v3722 = vsel %vm2689, %v3529, %v3683
    %v3723 = vsel %vm2689, %v3530, %v3685
    %v3724 = vsel %vm2689, %v3531, %v3687
    %v3725 = vsel %vm2689, %v3532, %v3689
    %v3726 = vsel %vm2689, %v3533, %v3691
    %v3727 = vsel %vm2689, %v3534, %v3693
    %v3728 = vsel %vm2689, %v3535, %v3695
    %v3729 = vsel %vm2689, %v3536, %v3697
    %v3762 = vrot.slane %v3602, 4
    %v3763 = vrot.slane %v3603, 4
    %v3764 = vrot.slane %v3604, 4
    %v3765 = vrot.slane %v3605, 4
    %v3766 = vrot.slane %v3606, 4
    %v3767 = vrot.slane %v3607, 4
    %v3768 = vrot.slane %v3608, 4
    %v3769 = vrot.slane %v3609, 4
    %v3770 = vrot.slane %v3610, 4
    %v3771 = vrot.slane %v3611, 4
    %v3772 = vrot.slane %v3612, 4
    %v3773 = vrot.slane %v3613, 4
    %v3774 = vrot.slane %v3614, 4
    %v3775 = vrot.slane %v3615, 4
    %v3776 = vrot.slane %v3616, 4
    %v3777 = vrot.slane %v3617, 4
    %vm3778 = vcmask 1043456
    %v3779 = vsel %vm3778, %v3714, %v3762
    %v3780 = vsel %vm3778, %v3715, %v3763
    %v3781 = vsel %vm3778, %v3716, %v3764
    %v3782 = vsel %vm3778, %v3717, %v3765
    %v3783 = vsel %vm3778, %v3718, %v3766
    %v3784 = vsel %vm3778, %v3719, %v3767
    %v3785 = vsel %vm3778, %v3720, %v3768
    %v3786 = vsel %vm3778, %v3721, %v3769
    %v3787 = vsel %vm3778, %v3722, %v3770
    %v3788 = vsel %vm3778, %v3723, %v3771
    %v3789 = vsel %vm3778, %v3724, %v3772
    %v3790 = vsel %vm3778, %v3725, %v3773
    %v3791 = vsel %vm3778, %v3726, %v3774
    %v3792 = vsel %vm3778, %v3727, %v3775
    %v3793 = vsel %vm3778, %v3728, %v3776
    %v3794 = vsel %vm3778, %v3729, %v3777
    %v3796 = vperm.slane %v3424, 0
    %3798 = vst [vmem:[#allocation1] ss:$2 sm:$0xff] %v3779
    %s3799 = scalar_lea.vmem [#allocation1], 1
    %3800 = vst [vmem:[%s3799] ss:$2 sm:$0xff] %v3780
    %s3801 = scalar_lea.vmem [#allocation1], 16
    %3802 = vst [vmem:[%s3801] ss:$2 sm:$0xff] %v3781
    %s3803 = scalar_lea.vmem [#allocation1], 17
    %3804 = vst [vmem:[%s3803] ss:$2 sm:$0xff] %v3782
    %s3805 = scalar_lea.vmem [#allocation1], 32
    %3806 = vst [vmem:[%s3805] ss:$2 sm:$0xff] %v3783
    %s3807 = scalar_lea.vmem [#allocation1], 33
    %3808 = vst [vmem:[%s3807] ss:$2 sm:$0xff] %v3784
    %s3809 = scalar_lea.vmem [#allocation1], 48
    %3810 = vst [vmem:[%s3809] ss:$2 sm:$0xff] %v3785
    %s3811 = scalar_lea.vmem [#allocation1], 49
    %3812 = vst [vmem:[%s3811] ss:$2 sm:$0xff] %v3786
    %v3813 = vld.sshfl [vmem:[#allocation1] sm:$0xff pattern:$0x75316420]
    %v3814 = vld.sshfl [vmem:[#allocation1 + $0x8] sm:$0xff pattern:$0x75316420]
    %v3815 = vld.sshfl [vmem:[#allocation1 + $0x10] sm:$0xff pattern:$0x75316420]
    %v3816 = vld.sshfl [vmem:[#allocation1 + $0x18] sm:$0xff pattern:$0x75316420]
    %v3817 = vld.sshfl [vmem:[#allocation1 + $0x20] sm:$0xff pattern:$0x75316420]
    %v3818 = vld.sshfl [vmem:[#allocation1 + $0x28] sm:$0xff pattern:$0x75316420]
    %v3819 = vld.sshfl [vmem:[#allocation1 + $0x30] sm:$0xff pattern:$0x75316420]
    %v3820 = vld.sshfl [vmem:[#allocation1 + $0x38] sm:$0xff pattern:$0x75316420]
    %3821 = vst [vmem:[#allocation1] ss:$2 sm:$0xff] %v3787
    %3822 = vst [vmem:[%s3799] ss:$2 sm:$0xff] %v3788
    %3823 = vst [vmem:[%s3801] ss:$2 sm:$0xff] %v3789
    %3824 = vst [vmem:[%s3803] ss:$2 sm:$0xff] %v3790
    %3825 = vst [vmem:[%s3805] ss:$2 sm:$0xff] %v3791
    %3826 = vst [vmem:[%s3807] ss:$2 sm:$0xff] %v3792
    %3827 = vst [vmem:[%s3809] ss:$2 sm:$0xff] %v3793
    %3828 = vst [vmem:[%s3811] ss:$2 sm:$0xff] %v3794
    %v3829 = vld.sshfl [vmem:[#allocation1] sm:$0xff pattern:$0x75316420]
    %v3830 = vld.sshfl [vmem:[#allocation1 + $0x8] sm:$0xff pattern:$0x75316420]
    %v3831 = vld.sshfl [vmem:[#allocation1 + $0x10] sm:$0xff pattern:$0x75316420]
    %v3832 = vld.sshfl [vmem:[#allocation1 + $0x18] sm:$0xff pattern:$0x75316420]
    %v3833 = vld.sshfl [vmem:[#allocation1 + $0x20] sm:$0xff pattern:$0x75316420]
    %v3834 = vld.sshfl [vmem:[#allocation1 + $0x28] sm:$0xff pattern:$0x75316420]
    %v3835 = vld.sshfl [vmem:[#allocation1 + $0x30] sm:$0xff pattern:$0x75316420]
    %v3836 = vld.sshfl [vmem:[#allocation1 + $0x38] sm:$0xff pattern:$0x75316420]
    %v3845 = vsel %vm2689, %v3814, 0
    %v3847 = vsel %vm2689, %v3816, 0
    %v3849 = vsel %vm2689, %v3818, 0
    %v3851 = vsel %vm2689, %v3820, 0
    %v3853 = vsel %vm2689, %v3830, 0
    %v3855 = vsel %vm2689, %v3832, 0
    %v3857 = vsel %vm2689, %v3834, 0
    %v3859 = vsel %vm2689, %v3836, 0
    %3861 = vmatpush.msra.mxu0 %v3415
    %3862 = vmatpush.msra.mxu0 %v3414
    %3863 = vmatpush.msra.mxu0 %v3413
    %3864 = vmatpush.msra.mxu0 %v3412
    %3865 = vmatpush.msra.mxu0 %v3411
    %3866 = vmatpush.msra.mxu0 %v3410
    %3867 = vmatpush.msra.mxu0 %v3409
    %3868 = vmatpush.msra.mxu0 %v3408
    %3869 = vmatpush.msra.mxu0 %v3407
    %3870 = vmatpush.msra.mxu0 %v3406
    %3871 = vmatpush.msra.mxu0 %v3405
    %3872 = vmatpush.msra.mxu0 %v3404
    %3873 = vmatpush.msra.mxu0 %v3403
    %3874 = vmatpush.msra.mxu0 %v3402
    %3875 = vmatpush.msra.mxu0 %v3401
    %3876 = vmatpush.msra.mxu0 %v3400
    %3877 = vmatmul.f32.gmra.mxu0 %v3813
    %v3878 = vpop.f32.mrf.mxu0
    %v3879 = vadd.f32 %v3796, %v3878
    %3880 = vmatmul.f32.gmra.mxu0 %v3815
    %v3881 = vpop.f32.mrf.mxu0
    %v3882 = vadd.f32 %v3796, %v3881
    %3883 = vmatmul.f32.gmra.mxu0 %v3817
    %v3884 = vpop.f32.mrf.mxu0
    %v3885 = vadd.f32 %v3796, %v3884
    %3886 = vmatmul.f32.gmra.mxu0 %v3819
    %v3887 = vpop.f32.mrf.mxu0
    %v3888 = vadd.f32 %v3796, %v3887
    %3889 = vmatmul.f32.gmra.mxu0 %v3829
    %v3890 = vpop.f32.mrf.mxu0
    %v3891 = vadd.f32 %v3796, %v3890
    %3892 = vmatmul.f32.gmra.mxu0 %v3831
    %v3893 = vpop.f32.mrf.mxu0
    %v3894 = vadd.f32 %v3796, %v3893
    %3895 = vmatmul.f32.gmra.mxu0 %v3833
    %v3896 = vpop.f32.mrf.mxu0
    %v3897 = vadd.f32 %v3796, %v3896
    %3898 = vmatmul.f32.gmra.mxu0 %v3835
    %v3899 = vpop.f32.mrf.mxu0
    %v3900 = vadd.f32 %v3796, %v3899
    %3901 = vdwg.mxu0
    %3902 = vmatpush.msra.mxu0 0.0
    %3903 = vmatpush.msra.mxu0 0.0
    %3904 = vmatpush.msra.mxu0 0.0
    %3905 = vmatpush.msra.mxu0 0.0
    %3906 = vmatpush.msra.mxu0 0.0
    %3907 = vmatpush.msra.mxu0 0.0
    %3908 = vmatpush.msra.mxu0 0.0
    %3909 = vmatpush.msra.mxu0 0.0
    %3910 = vmatpush.msra.mxu0 %v3423
    %3911 = vmatpush.msra.mxu0 %v3422
    %3912 = vmatpush.msra.mxu0 %v3421
    %3913 = vmatpush.msra.mxu0 %v3420
    %3914 = vmatpush.msra.mxu0 %v3419
    %3915 = vmatpush.msra.mxu0 %v3418
    %3916 = vmatpush.msra.mxu0 %v3417
    %3917 = vmatpush.msra.mxu0 %v3416
    %3918 = vmatmul.f32.gmra.mxu0 %v3845
    %v3919 = vpop.f32.mrf.mxu0
    %v3920 = vadd.f32 %v3879, %v3919
    %3921 = vmatmul.f32.gmra.mxu0 %v3847
    %v3922 = vpop.f32.mrf.mxu0
    %v3923 = vadd.f32 %v3882, %v3922
    %3924 = vmatmul.f32.gmra.mxu0 %v3849
    %v3925 = vpop.f32.mrf.mxu0
    %v3926 = vadd.f32 %v3885, %v3925
    %3927 = vmatmul.f32.gmra.mxu0 %v3851
    %v3928 = vpop.f32.mrf.mxu0
    %v3929 = vadd.f32 %v3888, %v3928
    %3930 = vmatmul.f32.gmra.mxu0 %v3853
    %v3931 = vpop.f32.mrf.mxu0
    %v3932 = vadd.f32 %v3891, %v3931
    %3933 = vmatmul.f32.gmra.mxu0 %v3855
    %v3934 = vpop.f32.mrf.mxu0
    %v3935 = vadd.f32 %v3894, %v3934
    %3936 = vmatmul.f32.gmra.mxu0 %v3857
    %v3937 = vpop.f32.mrf.mxu0
    %v3938 = vadd.f32 %v3897, %v3937
    %3939 = vmatmul.f32.gmra.mxu0 %v3859
    %v3940 = vpop.f32.mrf.mxu0
    %v3941 = vadd.f32 %v3900, %v3940
    %3942 = vdwg.mxu0
    %v3951 = vrot.slane %v3920, 4
    %v3952 = vrot.slane %v3923, 4
    %v3953 = vrot.slane %v3926, 4
    %v3954 = vrot.slane %v3929, 4
    %v3955 = vrot.slane %v3932, 4
    %v3956 = vrot.slane %v3935, 4
    %v3957 = vrot.slane %v3938, 4
    %v3958 = vrot.slane %v3941, 4
    %v3967 = vmax.f32 %v3920, 0.0
    %v3968 = vmax.f32 %v3951, 0.0
    %v3969 = vmax.f32 %v3923, 0.0
    %v3970 = vmax.f32 %v3952, 0.0
    %v3971 = vmax.f32 %v3926, 0.0
    %v3972 = vmax.f32 %v3953, 0.0
    %v3973 = vmax.f32 %v3929, 0.0
    %v3974 = vmax.f32 %v3954, 0.0
    %v3975 = vmax.f32 %v3932, 0.0
    %v3976 = vmax.f32 %v3955, 0.0
    %v3977 = vmax.f32 %v3935, 0.0
    %v3978 = vmax.f32 %v3956, 0.0
    %v3979 = vmax.f32 %v3938, 0.0
    %v3980 = vmax.f32 %v3957, 0.0
    %v3981 = vmax.f32 %v3941, 0.0
    %v3982 = vmax.f32 %v3958, 0.0
    %v3983 = vld [vmem:[%s7] sm:$0xff]
    %v3984 = vld [vmem:[%s7 + $0x8] sm:$0xff]
    %v3985 = vld [vmem:[%s7 + $0x10] sm:$0xff]
    %v3986 = vld [vmem:[%s7 + $0x18] sm:$0xff]
    %v3987 = vld [vmem:[%s7 + $0x20] sm:$0xff]
    %v3988 = vld [vmem:[%s7 + $0x28] sm:$0xff]
    %v3989 = vld [vmem:[%s7 + $0x30] sm:$0xff]
    %v3990 = vld [vmem:[%s7 + $0x38] sm:$0xff]
    %s3991 = scalar_lea.vmem %s7, 64
    %v3992 = vld [vmem:[%s3991] sm:$0xff]
    %v3993 = vld [vmem:[%s3991 + $0x8] sm:$0xff]
    %v3994 = vld [vmem:[%s3991 + $0x10] sm:$0xff]
    %v3995 = vld [vmem:[%s3991 + $0x18] sm:$0xff]
    %v3996 = vld [vmem:[%s3991 + $0x20] sm:$0xff]
    %v3997 = vld [vmem:[%s3991 + $0x28] sm:$0xff]
    %v3998 = vld [vmem:[%s3991 + $0x30] sm:$0xff]
    %v3999 = vld [vmem:[%s3991 + $0x38] sm:$0xff]
    %v4016 = vperm.slane %v3967, 1
    %v4017 = vperm.slane %v3968, 1
    %v4018 = vperm.slane %v3969, 1
    %v4019 = vperm.slane %v3970, 1
    %v4020 = vperm.slane %v3971, 1
    %v4021 = vperm.slane %v3972, 1
    %v4022 = vperm.slane %v3973, 1
    %v4023 = vperm.slane %v3974, 1
    %v4024 = vperm.slane %v3975, 1
    %v4025 = vperm.slane %v3976, 1
    %v4026 = vperm.slane %v3977, 1
    %v4027 = vperm.slane %v3978, 1
    %v4028 = vperm.slane %v3979, 1
    %v4029 = vperm.slane %v3980, 1
    %v4030 = vperm.slane %v3981, 1
    %v4031 = vperm.slane %v3982, 1
    %v4032 = vsel %vm2319, %v4017, %v4016
    %v4033 = vsel %vm2169, %v4018, %v4032
    %v4034 = vsel %vm2171, %v4019, %v4033
    %v4035 = vsel %vm2173, %v4020, %v4034
    %v4036 = vsel %vm2175, %v4021, %v4035
    %v4037 = vsel %vm2177, %v4022, %v4036
    %v4038 = vsel %vm2179, %v4023, %v4037
    %v4039 = vsel %vm2319, %v4025, %v4024
    %v4040 = vsel %vm2169, %v4026, %v4039
    %v4041 = vsel %vm2171, %v4027, %v4040
    %v4042 = vsel %vm2173, %v4028, %v4041
    %v4043 = vsel %vm2175, %v4029, %v4042
    %v4044 = vsel %vm2177, %v4030, %v4043
    %v4045 = vsel %vm2179, %v4031, %v4044
    %v4046 = vsel %vm2689, %v4038, 0
    %v4048 = vsel %vm2689, %v4045, 0
    %4050 = vmatpush.msra.mxu0 0.0
    %4051 = vmatpush.msra.mxu0 0.0
    %4052 = vmatpush.msra.mxu0 0.0
    %4053 = vmatpush.msra.mxu0 0.0
    %4054 = vmatpush.msra.mxu0 0.0
    %4055 = vmatpush.msra.mxu0 0.0
    %4056 = vmatpush.msra.mxu0 0.0
    %4057 = vmatpush.msra.mxu0 0.0
    %4058 = vmatpush.msra.mxu0 %v3999
    %4059 = vmatpush.msra.mxu0 %v3998
    %4060 = vmatpush.msra.mxu0 %v3997
    %4061 = vmatpush.msra.mxu0 %v3996
    %4062 = vmatpush.msra.mxu0 %v3995
    %4063 = vmatpush.msra.mxu0 %v3994
    %4064 = vmatpush.msra.mxu0 %v3993
    %4065 = vmatpush.msra.mxu0 %v3992
    %4066 = vmatmul.f32.gmra.mxu0 %v4046
    %v4067 = vpop.f32.mrf.mxu0
    %v4068 = vadd.f32 0.0, %v4067
    %4069 = vmatmul.f32.gmra.mxu0 %v4048
    %v4070 = vpop.f32.mrf.mxu0
    %v4071 = vadd.f32 0.0, %v4070
    %4072 = vdwg.mxu0
    %v4073 = vperm.slane %v3967, 0
    %v4074 = vperm.slane %v3968, 0
    %v4075 = vperm.slane %v3969, 0
    %v4076 = vperm.slane %v3970, 0
    %v4077 = vperm.slane %v3971, 0
    %v4078 = vperm.slane %v3972, 0
    %v4079 = vperm.slane %v3973, 0
    %v4080 = vperm.slane %v3974, 0
    %v4081 = vperm.slane %v3975, 0
    %v4082 = vperm.slane %v3976, 0
    %v4083 = vperm.slane %v3977, 0
    %v4084 = vperm.slane %v3978, 0
    %v4085 = vperm.slane %v3979, 0
    %v4086 = vperm.slane %v3980, 0
    %v4087 = vperm.slane %v3981, 0
    %v4088 = vperm.slane %v3982, 0
    %v4089 = vsel %vm2319, %v4074, %v4073
    %v4090 = vsel %vm2169, %v4075, %v4089
    %v4091 = vsel %vm2171, %v4076, %v4090
    %v4092 = vsel %vm2173, %v4077, %v4091
    %v4093 = vsel %vm2175, %v4078, %v4092
    %v4094 = vsel %vm2177, %v4079, %v4093
    %v4095 = vsel %vm2179, %v4080, %v4094
    %v4096 = vsel %vm2319, %v4082, %v4081
    %v4097 = vsel %vm2169, %v4083, %v4096
    %v4098 = vsel %vm2171, %v4084, %v4097
    %v4099 = vsel %vm2173, %v4085, %v4098
    %v4100 = vsel %vm2175, %v4086, %v4099
    %v4101 = vsel %vm2177, %v4087, %v4100
    %v4102 = vsel %vm2179, %v4088, %v4101
    %v4103 = vsel %vm2689, %v4095, 0
    %v4105 = vsel %vm2689, %v4102, 0
    %4107 = vmatpush.msra.mxu0 0.0
    %4108 = vmatpush.msra.mxu0 0.0
    %4109 = vmatpush.msra.mxu0 0.0
    %4110 = vmatpush.msra.mxu0 0.0
    %4111 = vmatpush.msra.mxu0 0.0
    %4112 = vmatpush.msra.mxu0 0.0
    %4113 = vmatpush.msra.mxu0 0.0
    %4114 = vmatpush.msra.mxu0 0.0
    %4115 = vmatpush.msra.mxu0 %v3990
    %4116 = vmatpush.msra.mxu0 %v3989
    %4117 = vmatpush.msra.mxu0 %v3988
    %4118 = vmatpush.msra.mxu0 %v3987
    %4119 = vmatpush.msra.mxu0 %v3986
    %4120 = vmatpush.msra.mxu0 %v3985
    %4121 = vmatpush.msra.mxu0 %v3984
    %4122 = vmatpush.msra.mxu0 %v3983
    %4123 = vmatmul.f32.gmra.mxu0 %v4103
    %v4124 = vpop.f32.mrf.mxu0
    %v4125 = vadd.f32 %v4068, %v4124
    %4126 = vmatmul.f32.gmra.mxu0 %v4105
    %v4127 = vpop.f32.mrf.mxu0
    %v4128 = vadd.f32 %v4071, %v4127
    %4129 = vdwg.mxu0
    %s4130 = scalar_lea.vmem %s7, 128
    %v4131 = vld [vmem:[%s4130] sm:$0xff]
    %v4132 = vld [vmem:[%s4130 + $0x8] sm:$0xff]
    %v4133 = vld [vmem:[%s4130 + $0x10] sm:$0xff]
    %v4134 = vld [vmem:[%s4130 + $0x18] sm:$0xff]
    %v4135 = vld [vmem:[%s4130 + $0x20] sm:$0xff]
    %v4136 = vld [vmem:[%s4130 + $0x28] sm:$0xff]
    %v4137 = vld [vmem:[%s4130 + $0x30] sm:$0xff]
    %v4138 = vld [vmem:[%s4130 + $0x38] sm:$0xff]
    %v4139 = vperm.slane %v3967, 2
    %v4140 = vperm.slane %v3968, 2
    %v4141 = vperm.slane %v3969, 2
    %v4142 = vperm.slane %v3970, 2
    %v4143 = vperm.slane %v3971, 2
    %v4144 = vperm.slane %v3972, 2
    %v4145 = vperm.slane %v3973, 2
    %v4146 = vperm.slane %v3974, 2
    %v4147 = vperm.slane %v3975, 2
    %v4148 = vperm.slane %v3976, 2
    %v4149 = vperm.slane %v3977, 2
    %v4150 = vperm.slane %v3978, 2
    %v4151 = vperm.slane %v3979, 2
    %v4152 = vperm.slane %v3980, 2
    %v4153 = vperm.slane %v3981, 2
    %v4154 = vperm.slane %v3982, 2
    %v4155 = vsel %vm2319, %v4140, %v4139
    %v4156 = vsel %vm2169, %v4141, %v4155
    %v4157 = vsel %vm2171, %v4142, %v4156
    %v4158 = vsel %vm2173, %v4143, %v4157
    %v4159 = vsel %vm2175, %v4144, %v4158
    %v4160 = vsel %vm2177, %v4145, %v4159
    %v4161 = vsel %vm2179, %v4146, %v4160
    %v4162 = vsel %vm2319, %v4148, %v4147
    %v4163 = vsel %vm2169, %v4149, %v4162
    %v4164 = vsel %vm2171, %v4150, %v4163
    %v4165 = vsel %vm2173, %v4151, %v4164
    %v4166 = vsel %vm2175, %v4152, %v4165
    %v4167 = vsel %vm2177, %v4153, %v4166
    %v4168 = vsel %vm2179, %v4154, %v4167
    %v4169 = vsel %vm2689, %v4161, 0
    %v4171 = vsel %vm2689, %v4168, 0
    %4173 = vmatpush.msra.mxu0 0.0
    %4174 = vmatpush.msra.mxu0 0.0
    %4175 = vmatpush.msra.mxu0 0.0
    %4176 = vmatpush.msra.mxu0 0.0
    %4177 = vmatpush.msra.mxu0 0.0
    %4178 = vmatpush.msra.mxu0 0.0
    %4179 = vmatpush.msra.mxu0 0.0
    %4180 = vmatpush.msra.mxu0 0.0
    %4181 = vmatpush.msra.mxu0 %v4138
    %4182 = vmatpush.msra.mxu0 %v4137
    %4183 = vmatpush.msra.mxu0 %v4136
    %4184 = vmatpush.msra.mxu0 %v4135
    %4185 = vmatpush.msra.mxu0 %v4134
    %4186 = vmatpush.msra.mxu0 %v4133
    %4187 = vmatpush.msra.mxu0 %v4132
    %4188 = vmatpush.msra.mxu0 %v4131
    %4189 = vmatmul.f32.gmra.mxu0 %v4169
    %v4190 = vpop.f32.mrf.mxu0
    %v4191 = vadd.f32 0.0, %v4190
    %4192 = vmatmul.f32.gmra.mxu0 %v4171
    %v4193 = vpop.f32.mrf.mxu0
    %v4194 = vadd.f32 0.0, %v4193
    %4195 = vdwg.mxu0
    %v4196 = vadd.f32 %v4125, %v4191
    %v4197 = vadd.f32 %v4128, %v4194
    %s4198 = scalar_lea.vmem %s7, 192
    %v4199 = vld [vmem:[%s4198] sm:$0xff]
    %v4200 = vld [vmem:[%s4198 + $0x8] sm:$0xff]
    %v4201 = vld [vmem:[%s4198 + $0x10] sm:$0xff]
    %v4202 = vld [vmem:[%s4198 + $0x18] sm:$0xff]
    %v4203 = vld [vmem:[%s4198 + $0x20] sm:$0xff]
    %v4204 = vld [vmem:[%s4198 + $0x28] sm:$0xff]
    %v4205 = vld [vmem:[%s4198 + $0x30] sm:$0xff]
    %v4206 = vld [vmem:[%s4198 + $0x38] sm:$0xff]
    %v4207 = vperm.slane %v3967, 3
    %v4208 = vperm.slane %v3968, 3
    %v4209 = vperm.slane %v3969, 3
    %v4210 = vperm.slane %v3970, 3
    %v4211 = vperm.slane %v3971, 3
    %v4212 = vperm.slane %v3972, 3
    %v4213 = vperm.slane %v3973, 3
    %v4214 = vperm.slane %v3974, 3
    %v4215 = vperm.slane %v3975, 3
    %v4216 = vperm.slane %v3976, 3
    %v4217 = vperm.slane %v3977, 3
    %v4218 = vperm.slane %v3978, 3
    %v4219 = vperm.slane %v3979, 3
    %v4220 = vperm.slane %v3980, 3
    %v4221 = vperm.slane %v3981, 3
    %v4222 = vperm.slane %v3982, 3
    %v4223 = vsel %vm2319, %v4208, %v4207
    %v4224 = vsel %vm2169, %v4209, %v4223
    %v4225 = vsel %vm2171, %v4210, %v4224
    %v4226 = vsel %vm2173, %v4211, %v4225
    %v4227 = vsel %vm2175, %v4212, %v4226
    %v4228 = vsel %vm2177, %v4213, %v4227
    %v4229 = vsel %vm2179, %v4214, %v4228
    %v4230 = vsel %vm2319, %v4216, %v4215
    %v4231 = vsel %vm2169, %v4217, %v4230
    %v4232 = vsel %vm2171, %v4218, %v4231
    %v4233 = vsel %vm2173, %v4219, %v4232
    %v4234 = vsel %vm2175, %v4220, %v4233
    %v4235 = vsel %vm2177, %v4221, %v4234
    %v4236 = vsel %vm2179, %v4222, %v4235
    %v4237 = vsel %vm2689, %v4229, 0
    %v4239 = vsel %vm2689, %v4236, 0
    %4241 = vmatpush.msra.mxu0 0.0
    %4242 = vmatpush.msra.mxu0 0.0
    %4243 = vmatpush.msra.mxu0 0.0
    %4244 = vmatpush.msra.mxu0 0.0
    %4245 = vmatpush.msra.mxu0 0.0
    %4246 = vmatpush.msra.mxu0 0.0
    %4247 = vmatpush.msra.mxu0 0.0
    %4248 = vmatpush.msra.mxu0 0.0
    %4249 = vmatpush.msra.mxu0 %v4206
    %4250 = vmatpush.msra.mxu0 %v4205
    %4251 = vmatpush.msra.mxu0 %v4204
    %4252 = vmatpush.msra.mxu0 %v4203
    %4253 = vmatpush.msra.mxu0 %v4202
    %4254 = vmatpush.msra.mxu0 %v4201
    %4255 = vmatpush.msra.mxu0 %v4200
    %4256 = vmatpush.msra.mxu0 %v4199
    %4257 = vmatmul.f32.gmra.mxu0 %v4237
    %v4258 = vpop.f32.mrf.mxu0
    %v4259 = vadd.f32 0.0, %v4258
    %4260 = vmatmul.f32.gmra.mxu0 %v4239
    %v4261 = vpop.f32.mrf.mxu0
    %v4262 = vadd.f32 0.0, %v4261
    %4263 = vdwg.mxu0
    %v4264 = vadd.f32 %v4196, %v4259
    %v4265 = vadd.f32 %v4197, %v4262
    %v4266 = vld [vmem:[%s8] sm:$0x1]
    %v4268 = vperm.slane %v4266, 0
    %v4270 = vadd.f32 %v4264, %v4268
    %v4271 = vadd.f32 %v4265, %v4268
    %v4272 = vmax.f32 %v4270, 0.0
    %v4273 = vmax.f32 %v4271, 0.0
    %v4274 = vld [vmem:[%s9] sm:$0xff]
    %v4275 = vld [vmem:[%s9 + $0x8] sm:$0xff]
    %v4276 = vld [vmem:[%s9 + $0x10] sm:$0xff]
    %v4277 = vld [vmem:[%s9 + $0x18] sm:$0xff]
    %v4278 = vld [vmem:[%s9 + $0x20] sm:$0xff]
    %v4279 = vld [vmem:[%s9 + $0x28] sm:$0xff]
    %v4280 = vld [vmem:[%s9 + $0x30] sm:$0xff]
    %v4281 = vld [vmem:[%s9 + $0x38] sm:$0xff]
    %v4282 = vld [vmem:[%s10] sm:$0x1]
    %v4284 = vperm.slane %v4282, 0
    %v4287 = vsel %vm2689, %v4272, 0
    %v4290 = vsel %vm2689, %v4273, 0
    %4292 = vmatpush.msra.mxu0 0.0
    %4293 = vmatpush.msra.mxu0 0.0
    %4294 = vmatpush.msra.mxu0 0.0
    %4295 = vmatpush.msra.mxu0 0.0
    %4296 = vmatpush.msra.mxu0 0.0
    %4297 = vmatpush.msra.mxu0 0.0
    %4298 = vmatpush.msra.mxu0 0.0
    %4299 = vmatpush.msra.mxu0 0.0
    %4300 = vmatpush.msra.mxu0 %v4281
    %4301 = vmatpush.msra.mxu0 %v4280
    %4302 = vmatpush.msra.mxu0 %v4279
    %4303 = vmatpush.msra.mxu0 %v4278
    %4304 = vmatpush.msra.mxu0 %v4277
    %4305 = vmatpush.msra.mxu0 %v4276
    %4306 = vmatpush.msra.mxu0 %v4275
    %4307 = vmatpush.msra.mxu0 %v4274
    %4308 = vmatmul.f32.gmra.mxu0 %v4287
    %v4309 = vpop.f32.mrf.mxu0
    %v4310 = vadd.f32 %v4284, %v4309
    %4311 = vmatmul.f32.gmra.mxu0 %v4290
    %v4312 = vpop.f32.mrf.mxu0
    %v4313 = vadd.f32 %v4284, %v4312
    %4314 = vdwg.mxu0
    %4315 = vst [vmem:[#allocation2] sm:$0xff] %v4310
    %4316 = vst [vmem:[#allocation2 + $0x8] sm:$0xff] %v4313
    // Predicated region
    $region46: #{tpu_custom_call.1} parent=1 // pred_check
      _
    $region47: #{tpu_custom_call.1} parent=1 // pred_check_branch
      %4318 = sbr.rel (0) target = $region49
    $region48: #{tpu_custom_call.1} parent=1 // pred_region
      %4320 = vsyncadd [#allocation3], 0
      %s4321 = sshll.u32 [#allocation2], 4
      %s4322 = int_to_ptr.vmem [resolvable:$true] %s4321
      %s4323 = sshll.u32 %s11, 4
      %s4324 = int_to_ptr.hbm [resolvable:$true] %s4323
      %4329 = dma.vmem_to_hbm [thread:$0]  %s4322, 256, %s4324, [#allocation3], 128, 128, 8
    $region49: #{tpu_custom_call.1} parent=1 // pred_fallthru
      _
    // Predicated region
    $region50: #{tpu_custom_call.1} parent=1 // pred_check
      _
    $region51: #{tpu_custom_call.1} parent=1 // pred_check_branch
      %4331 = sbr.rel (0) target = $region53
    $region52: #{tpu_custom_call.1} parent=1 // pred_region
      %4333 = dma.done [#allocation3], 256
    $region53: #{tpu_custom_call.1} parent=1 // pred_fallthru
      _
    %4334 = vsyncpa [#allocation3], 1

</llo_original>
